<compile_context>
chip_gen: v6e
topology: v6e:2x2x1
jax: 0.10.0
libtpu: 0.0.40
codegen_flags: <defaults>
</compile_context>

<pallas_src>
import math
import numpy as np
import jax
import jax.numpy as jnp
from jax import lax
from jax.experimental import pallas as pl
from jax.experimental.pallas import tpu as pltpu

H = 128          # rendered image height (small stand-in for nr default 256)
W = 128          # rendered image width
assert H == W, "band matrices below are shared across rows/cols (H == W)"

# ---------------- deterministic mesh (stand-in for load_off) ----------------
CUBE_VERTS = np.array(
    [[-1, -1, -1], [1, -1, -1], [1, 1, -1], [-1, 1, -1],
     [-1, -1,  1], [1, -1,  1], [1, 1,  1], [-1, 1,  1]], dtype=np.float32)
CUBE_FACES = np.array(
    [[0, 1, 2], [0, 2, 3],
     [4, 6, 5], [4, 7, 6],
     [0, 4, 5], [0, 5, 1],
     [3, 2, 6], [3, 6, 7],
     [0, 3, 7], [0, 7, 4],
     [1, 5, 6], [1, 6, 2]], dtype=np.int32)
NFACES = CUBE_FACES.shape[0]

# ------------- separable Canny stencils as banded matrices (numpy) ----------
# blur = G @ img @ G          (5x5 Gaussian, sigma=1, 'same' zero padding)
# gx   = S @ blur @ Dcol      (Sobel-X: smooth rows [1,2,1], d/dx cols [-1,0,1])
# gy   = Drow @ blur @ S      (Sobel-Y: d/dy rows [-1,0,1], smooth cols [1,2,1])
_k = np.arange(5) - 2
_g = np.exp(-(_k ** 2) / 2.0)
_g = (_g / _g.sum()).astype(np.float32)


def _band_matrix(n, taps, center):
    """m[i, j] = taps[j - i + center] for |j - i| <= center, else 0."""
    m = np.zeros((n, n), np.float32)
    idx = np.arange(n)
    for off, t in enumerate(taps):
        if t == 0.0:
            continue
        j = idx + (off - center)
        valid = (j >= 0) & (j < n)
        m[idx[valid], j[valid]] = t
    return m


G_BAND = _band_matrix(H, _g, 2)                                       # symmetric
S_BAND = _band_matrix(H, np.array([1.0, 2.0, 1.0], np.float32), 1)    # symmetric
DROW_BAND = _band_matrix(H, np.array([-1.0, 0.0, 1.0], np.float32), 1)
DCOL_BAND = np.ascontiguousarray(DROW_BAND.T)                          # d[m-k+1]


# --------------- fused Pallas kernel: raster + Canny magnitude ---------------
def _fused_kernel(face_ref, g_ref, s_ref, drow_ref, dcol_ref,
                  img_ref, mag_ref, mean_ref):
    # --- silhouette rasterizer (VALU) ---
    row = lax.broadcasted_iota(jnp.int32, (H, W), 0).astype(jnp.float32) + 0.5
    col = lax.broadcasted_iota(jnp.int32, (H, W), 1).astype(jnp.float32) + 0.5

    def covered(f):
        a0 = face_ref[f, 0]; b0 = face_ref[f, 1]; c0 = face_ref[f, 2]
        a1 = face_ref[f, 3]; b1 = face_ref[f, 4]; c1 = face_ref[f, 5]
        a2 = face_ref[f, 6]; b2 = face_ref[f, 7]; c2 = face_ref[f, 8]
        e0 = a0 * row + b0 * col + c0
        e1 = a1 * row + b1 * col + c1
        e2 = a2 * row + b2 * col + c2
        emin = jnp.minimum(jnp.minimum(e0, e1), e2)
        emax = jnp.maximum(jnp.maximum(e0, e1), e2)
        return (emin >= 0.0) | (emax <= 0.0)     # all-non-neg OR all-non-pos

    cov = covered(0)
    for f in range(1, NFACES):                   # static unroll, small F
        cov = cov | covered(f)
    img = cov.astype(jnp.float32)                # single cast after the loop
    img_ref[...] = img

    # --- Canny stages as MXU matmuls (band matrices absorb zero padding) ---
    g = g_ref[...]
    s = s_ref[...]
    drow = drow_ref[...]
    dcol = dcol_ref[...]
    blur = jnp.dot(jnp.dot(g, img, preferred_element_type=jnp.float32), g,
                   preferred_element_type=jnp.float32)
    gx = jnp.dot(jnp.dot(s, blur, preferred_element_type=jnp.float32), dcol,
                 preferred_element_type=jnp.float32)
    gy = jnp.dot(jnp.dot(drow, blur, preferred_element_type=jnp.float32), s,
                 preferred_element_type=jnp.float32)
    mag = jnp.sqrt(gx * gx + gy * gy)
    mag_ref[...] = mag
    mean_ref[0, 0] = jnp.sum(mag) * (1.0 / float(H * W))


def render_and_edge(face_coeffs, g_band, s_band, drow_band, dcol_band):
    """Single fused pallas_call: silhouette image, grad magnitude, its mean."""
    img, mag, mean = pl.pallas_call(
        _fused_kernel,
        out_shape=(jax.ShapeDtypeStruct((H, W), jnp.float32),
                   jax.ShapeDtypeStruct((H, W), jnp.float32),
                   jax.ShapeDtypeStruct((1, 1), jnp.float32)),
        in_specs=[pl.BlockSpec(memory_space=pltpu.MemorySpace.SMEM),
                  pl.BlockSpec(memory_space=pltpu.MemorySpace.VMEM),
                  pl.BlockSpec(memory_space=pltpu.MemorySpace.VMEM),
                  pl.BlockSpec(memory_space=pltpu.MemorySpace.VMEM),
                  pl.BlockSpec(memory_space=pltpu.MemorySpace.VMEM)],
        out_specs=(pl.BlockSpec(memory_space=pltpu.MemorySpace.VMEM),
                   pl.BlockSpec(memory_space=pltpu.MemorySpace.VMEM),
                   pl.BlockSpec(memory_space=pltpu.MemorySpace.SMEM)),
    )(face_coeffs, g_band, s_band, drow_band, dcol_band)
    return img, mag, mean[0, 0]


# --------------------------------- Model ------------------------------------
class Model:
    def __init__(self, key):
        self.vertices = jnp.asarray(CUBE_VERTS)[None]       # (1, V, 3) buffer
        self.faces = jnp.asarray(CUBE_FACES)[None]          # (1, F, 3) buffer
        texture_size = 2
        self.textures = jnp.ones(
            (1, NFACES, texture_size, texture_size, texture_size, 3),
            jnp.float32)                                     # unused in silhouettes
        # camera parameter [3, 5, -7] with a tiny deterministic perturbation
        self.camera_position = (jnp.array([3.0, 5.0, -7.0], jnp.float32)
                                + 0.01 * jax.random.normal(key, (3,), jnp.float32))
        self.viewing_angle = 30.0                            # nr.Renderer default
        self.entropy = 0.0
        # constant banded stencil matrices (buffers)
        self.g_band = jnp.asarray(G_BAND)
        self.s_band = jnp.asarray(S_BAND)
        self.drow_band = jnp.asarray(DROW_BAND)
        self.dcol_band = jnp.asarray(DCOL_BAND)

    def _project_faces(self):
        # look_at + perspective (V=8: parameter/geometry setup -> JAX glue)
        eye = self.camera_position
        at = jnp.zeros(3, jnp.float32)
        up = jnp.array([0.0, 1.0, 0.0], jnp.float32)
        z = at - eye
        z = z / jnp.linalg.norm(z)
        x = jnp.cross(up, z)
        x = x / jnp.linalg.norm(x)
        y = jnp.cross(z, x)
        rot = jnp.stack([x, y, z], axis=0)                   # (3, 3)
        v_cam = (self.vertices[0] - eye) @ rot.T             # (V, 3)
        wfov = math.tan(math.radians(self.viewing_angle))
        x_ndc = v_cam[:, 0] / (v_cam[:, 2] * wfov)
        y_ndc = v_cam[:, 1] / (v_cam[:, 2] * wfov)
        px = (x_ndc + 1.0) * 0.5 * W
        py = (1.0 - y_ndc) * 0.5 * H
        pxy = jnp.stack([px, py], axis=-1)                   # (V, 2)
        tri = pxy[self.faces[0]]                             # (F, 3, 2)

        # per-edge coefficients so the kernel evaluates e = A*row + B*col + C
        # (identical to (x1-x0)*(row-y0) - (y1-y0)*(col-x0) in the original)
        def edge(xa, ya, xb, yb):
            A = xb - xa
            B = -(yb - ya)
            C = -A * ya - B * xa
            return A, B, C

        x0, y0 = tri[:, 0, 0], tri[:, 0, 1]
        x1, y1 = tri[:, 1, 0], tri[:, 1, 1]
        x2, y2 = tri[:, 2, 0], tri[:, 2, 1]
        A0, B0, C0 = edge(x0, y0, x1, y1)
        A1, B1, C1 = edge(x1, y1, x2, y2)
        A2, B2, C2 = edge(x2, y2, x0, y0)
        return jnp.stack([A0, B0, C0, A1, B1, C1, A2, B2, C2], axis=-1)  # (F, 9)

    def forward(self):
        face_coeffs = self._project_faces()
        image, mag, mean = render_and_edge(                  # single fused Pallas call
            face_coeffs, self.g_band, self.s_band, self.drow_band, self.dcol_band)
        self.entropy = mag.reshape(1, 1, H, W)               # (1,1,H,W) like torch
        self.image = image
        loss = 10000.0 / mean
        return loss


if __name__ == "__main__":
    key = jax.random.PRNGKey(0)
    model = Model(key)
    loss = model.forward()
    jax.block_until_ready(loss)
    assert bool(jnp.isfinite(loss)), "rendered silhouette produced no edges"
    print("KERNEL_OK")
</pallas_src>

<mosaic_0001>
module attributes {stable_mosaic.version = 11 : i64} {
  func.func @_fused_kernel(%arg0: memref<12x9xf32, #tpu.memory_space<smem>>, %arg1: memref<128x128xf32, #tpu.memory_space<vmem>>, %arg2: memref<128x128xf32, #tpu.memory_space<vmem>>, %arg3: memref<128x128xf32, #tpu.memory_space<vmem>>, %arg4: memref<128x128xf32, #tpu.memory_space<vmem>>, %arg5: memref<128x128xf32, #tpu.memory_space<vmem>>, %arg6: memref<128x128xf32, #tpu.memory_space<vmem>>, %arg7: memref<1x1xf32, #tpu.memory_space<smem>>) attributes {dimension_semantics = [], scalar_prefetch = 0 : i64, scratch_operands = 0 : i64, tpu.core_type = #tpu.core_type<tc>} {
    %0 = tpu.iota {dimensions = array<i32: 0>} : vector<128x128xi32>
    %1 = arith.sitofp %0 : vector<128x128xi32> to vector<128x128xf32>
    %cst = arith.constant 5.000000e-01 : f32
    %2 = vector.broadcast %cst : f32 to vector<128x128xf32>
    %3 = arith.addf %1, %2 : vector<128x128xf32>
    %4 = tpu.iota {dimensions = array<i32: 1>} : vector<128x128xi32>
    %5 = arith.sitofp %4 : vector<128x128xi32> to vector<128x128xf32>
    %cst_0 = arith.constant 5.000000e-01 : f32
    %6 = vector.broadcast %cst_0 : f32 to vector<128x128xf32>
    %7 = arith.addf %5, %6 : vector<128x128xf32>
    %c0 = arith.constant 0 : index
    %c0_1 = arith.constant 0 : index
    %8 = memref.load %arg0[%c0, %c0_1] : memref<12x9xf32, #tpu.memory_space<smem>>
    %c0_2 = arith.constant 0 : index
    %c1 = arith.constant 1 : index
    %9 = memref.load %arg0[%c0_2, %c1] : memref<12x9xf32, #tpu.memory_space<smem>>
    %c0_3 = arith.constant 0 : index
    %c2 = arith.constant 2 : index
    %10 = memref.load %arg0[%c0_3, %c2] : memref<12x9xf32, #tpu.memory_space<smem>>
    %c0_4 = arith.constant 0 : index
    %c3 = arith.constant 3 : index
    %11 = memref.load %arg0[%c0_4, %c3] : memref<12x9xf32, #tpu.memory_space<smem>>
    %c0_5 = arith.constant 0 : index
    %c4 = arith.constant 4 : index
    %12 = memref.load %arg0[%c0_5, %c4] : memref<12x9xf32, #tpu.memory_space<smem>>
    %c0_6 = arith.constant 0 : index
    %c5 = arith.constant 5 : index
    %13 = memref.load %arg0[%c0_6, %c5] : memref<12x9xf32, #tpu.memory_space<smem>>
    %c0_7 = arith.constant 0 : index
    %c6 = arith.constant 6 : index
    %14 = memref.load %arg0[%c0_7, %c6] : memref<12x9xf32, #tpu.memory_space<smem>>
    %c0_8 = arith.constant 0 : index
    %c7 = arith.constant 7 : index
    %15 = memref.load %arg0[%c0_8, %c7] : memref<12x9xf32, #tpu.memory_space<smem>>
    %c0_9 = arith.constant 0 : index
    %c8 = arith.constant 8 : index
    %16 = memref.load %arg0[%c0_9, %c8] : memref<12x9xf32, #tpu.memory_space<smem>>
    %17 = vector.broadcast %8 : f32 to vector<128x128xf32>
    %18 = arith.mulf %17, %3 : vector<128x128xf32>
    %19 = vector.broadcast %9 : f32 to vector<128x128xf32>
    %20 = arith.mulf %19, %7 : vector<128x128xf32>
    %21 = arith.addf %18, %20 : vector<128x128xf32>
    %22 = vector.broadcast %10 : f32 to vector<128x128xf32>
    %23 = arith.addf %21, %22 : vector<128x128xf32>
    %24 = vector.broadcast %11 : f32 to vector<128x128xf32>
    %25 = arith.mulf %24, %3 : vector<128x128xf32>
    %26 = vector.broadcast %12 : f32 to vector<128x128xf32>
    %27 = arith.mulf %26, %7 : vector<128x128xf32>
    %28 = arith.addf %25, %27 : vector<128x128xf32>
    %29 = vector.broadcast %13 : f32 to vector<128x128xf32>
    %30 = arith.addf %28, %29 : vector<128x128xf32>
    %31 = vector.broadcast %14 : f32 to vector<128x128xf32>
    %32 = arith.mulf %31, %3 : vector<128x128xf32>
    %33 = vector.broadcast %15 : f32 to vector<128x128xf32>
    %34 = arith.mulf %33, %7 : vector<128x128xf32>
    %35 = arith.addf %32, %34 : vector<128x128xf32>
    %36 = vector.broadcast %16 : f32 to vector<128x128xf32>
    %37 = arith.addf %35, %36 : vector<128x128xf32>
    %38 = arith.minimumf %23, %30 : vector<128x128xf32>
    %39 = arith.minimumf %38, %37 : vector<128x128xf32>
    %40 = arith.maximumf %23, %30 : vector<128x128xf32>
    %41 = arith.maximumf %40, %37 : vector<128x128xf32>
    %cst_10 = arith.constant 0.000000e+00 : f32
    %42 = vector.broadcast %cst_10 : f32 to vector<128x128xf32>
    %43 = arith.cmpf oge, %39, %42 : vector<128x128xf32>
    %cst_11 = arith.constant 0.000000e+00 : f32
    %44 = vector.broadcast %cst_11 : f32 to vector<128x128xf32>
    %45 = arith.cmpf ole, %41, %44 : vector<128x128xf32>
    %46 = arith.ori %43, %45 : vector<128x128xi1>
    %c1_12 = arith.constant 1 : index
    %c0_13 = arith.constant 0 : index
    %47 = memref.load %arg0[%c1_12, %c0_13] : memref<12x9xf32, #tpu.memory_space<smem>>
    %c1_14 = arith.constant 1 : index
    %c1_15 = arith.constant 1 : index
    %48 = memref.load %arg0[%c1_14, %c1_15] : memref<12x9xf32, #tpu.memory_space<smem>>
    %c1_16 = arith.constant 1 : index
    %c2_17 = arith.constant 2 : index
    %49 = memref.load %arg0[%c1_16, %c2_17] : memref<12x9xf32, #tpu.memory_space<smem>>
    %c1_18 = arith.constant 1 : index
    %c3_19 = arith.constant 3 : index
    %50 = memref.load %arg0[%c1_18, %c3_19] : memref<12x9xf32, #tpu.memory_space<smem>>
    %c1_20 = arith.constant 1 : index
    %c4_21 = arith.constant 4 : index
    %51 = memref.load %arg0[%c1_20, %c4_21] : memref<12x9xf32, #tpu.memory_space<smem>>
    %c1_22 = arith.constant 1 : index
    %c5_23 = arith.constant 5 : index
    %52 = memref.load %arg0[%c1_22, %c5_23] : memref<12x9xf32, #tpu.memory_space<smem>>
    %c1_24 = arith.constant 1 : index
    %c6_25 = arith.constant 6 : index
    %53 = memref.load %arg0[%c1_24, %c6_25] : memref<12x9xf32, #tpu.memory_space<smem>>
    %c1_26 = arith.constant 1 : index
    %c7_27 = arith.constant 7 : index
    %54 = memref.load %arg0[%c1_26, %c7_27] : memref<12x9xf32, #tpu.memory_space<smem>>
    %c1_28 = arith.constant 1 : index
    %c8_29 = arith.constant 8 : index
    %55 = memref.load %arg0[%c1_28, %c8_29] : memref<12x9xf32, #tpu.memory_space<smem>>
    %56 = vector.broadcast %47 : f32 to vector<128x128xf32>
    %57 = arith.mulf %56, %3 : vector<128x128xf32>
    %58 = vector.broadcast %48 : f32 to vector<128x128xf32>
    %59 = arith.mulf %58, %7 : vector<128x128xf32>
    %60 = arith.addf %57, %59 : vector<128x128xf32>
    %61 = vector.broadcast %49 : f32 to vector<128x128xf32>
    %62 = arith.addf %60, %61 : vector<128x128xf32>
    %63 = vector.broadcast %50 : f32 to vector<128x128xf32>
    %64 = arith.mulf %63, %3 : vector<128x128xf32>
    %65 = vector.broadcast %51 : f32 to vector<128x128xf32>
    %66 = arith.mulf %65, %7 : vector<128x128xf32>
    %67 = arith.addf %64, %66 : vector<128x128xf32>
    %68 = vector.broadcast %52 : f32 to vector<128x128xf32>
    %69 = arith.addf %67, %68 : vector<128x128xf32>
    %70 = vector.broadcast %53 : f32 to vector<128x128xf32>
    %71 = arith.mulf %70, %3 : vector<128x128xf32>
    %72 = vector.broadcast %54 : f32 to vector<128x128xf32>
    %73 = arith.mulf %72, %7 : vector<128x128xf32>
    %74 = arith.addf %71, %73 : vector<128x128xf32>
    %75 = vector.broadcast %55 : f32 to vector<128x128xf32>
    %76 = arith.addf %74, %75 : vector<128x128xf32>
    %77 = arith.minimumf %62, %69 : vector<128x128xf32>
    %78 = arith.minimumf %77, %76 : vector<128x128xf32>
    %79 = arith.maximumf %62, %69 : vector<128x128xf32>
    %80 = arith.maximumf %79, %76 : vector<128x128xf32>
    %cst_30 = arith.constant 0.000000e+00 : f32
    %81 = vector.broadcast %cst_30 : f32 to vector<128x128xf32>
    %82 = arith.cmpf oge, %78, %81 : vector<128x128xf32>
    %cst_31 = arith.constant 0.000000e+00 : f32
    %83 = vector.broadcast %cst_31 : f32 to vector<128x128xf32>
    %84 = arith.cmpf ole, %80, %83 : vector<128x128xf32>
    %85 = arith.ori %82, %84 : vector<128x128xi1>
    %86 = arith.ori %46, %85 : vector<128x128xi1>
    %c2_32 = arith.constant 2 : index
    %c0_33 = arith.constant 0 : index
    %87 = memref.load %arg0[%c2_32, %c0_33] : memref<12x9xf32, #tpu.memory_space<smem>>
    %c2_34 = arith.constant 2 : index
    %c1_35 = arith.constant 1 : index
    %88 = memref.load %arg0[%c2_34, %c1_35] : memref<12x9xf32, #tpu.memory_space<smem>>
    %c2_36 = arith.constant 2 : index
    %c2_37 = arith.constant 2 : index
    %89 = memref.load %arg0[%c2_36, %c2_37] : memref<12x9xf32, #tpu.memory_space<smem>>
    %c2_38 = arith.constant 2 : index
    %c3_39 = arith.constant 3 : index
    %90 = memref.load %arg0[%c2_38, %c3_39] : memref<12x9xf32, #tpu.memory_space<smem>>
    %c2_40 = arith.constant 2 : index
    %c4_41 = arith.constant 4 : index
    %91 = memref.load %arg0[%c2_40, %c4_41] : memref<12x9xf32, #tpu.memory_space<smem>>
    %c2_42 = arith.constant 2 : index
    %c5_43 = arith.constant 5 : index
    %92 = memref.load %arg0[%c2_42, %c5_43] : memref<12x9xf32, #tpu.memory_space<smem>>
    %c2_44 = arith.constant 2 : index
    %c6_45 = arith.constant 6 : index
    %93 = memref.load %arg0[%c2_44, %c6_45] : memref<12x9xf32, #tpu.memory_space<smem>>
    %c2_46 = arith.constant 2 : index
    %c7_47 = arith.constant 7 : index
    %94 = memref.load %arg0[%c2_46, %c7_47] : memref<12x9xf32, #tpu.memory_space<smem>>
    %c2_48 = arith.constant 2 : index
    %c8_49 = arith.constant 8 : index
    %95 = memref.load %arg0[%c2_48, %c8_49] : memref<12x9xf32, #tpu.memory_space<smem>>
    %96 = vector.broadcast %87 : f32 to vector<128x128xf32>
    %97 = arith.mulf %96, %3 : vector<128x128xf32>
    %98 = vector.broadcast %88 : f32 to vector<128x128xf32>
    %99 = arith.mulf %98, %7 : vector<128x128xf32>
    %100 = arith.addf %97, %99 : vector<128x128xf32>
    %101 = vector.broadcast %89 : f32 to vector<128x128xf32>
    %102 = arith.addf %100, %101 : vector<128x128xf32>
    %103 = vector.broadcast %90 : f32 to vector<128x128xf32>
    %104 = arith.mulf %103, %3 : vector<128x128xf32>
    %105 = vector.broadcast %91 : f32 to vector<128x128xf32>
    %106 = arith.mulf %105, %7 : vector<128x128xf32>
    %107 = arith.addf %104, %106 : vector<128x128xf32>
    %108 = vector.broadcast %92 : f32 to vector<128x128xf32>
    %109 = arith.addf %107, %108 : vector<128x128xf32>
    %110 = vector.broadcast %93 : f32 to vector<128x128xf32>
    %111 = arith.mulf %110, %3 : vector<128x128xf32>
    %112 = vector.broadcast %94 : f32 to vector<128x128xf32>
    %113 = arith.mulf %112, %7 : vector<128x128xf32>
    %114 = arith.addf %111, %113 : vector<128x128xf32>
    %115 = vector.broadcast %95 : f32 to vector<128x128xf32>
    %116 = arith.addf %114, %115 : vector<128x128xf32>
    %117 = arith.minimumf %102, %109 : vector<128x128xf32>
    %118 = arith.minimumf %117, %116 : vector<128x128xf32>
    %119 = arith.maximumf %102, %109 : vector<128x128xf32>
    %120 = arith.maximumf %119, %116 : vector<128x128xf32>
    %cst_50 = arith.constant 0.000000e+00 : f32
    %121 = vector.broadcast %cst_50 : f32 to vector<128x128xf32>
    %122 = arith.cmpf oge, %118, %121 : vector<128x128xf32>
    %cst_51 = arith.constant 0.000000e+00 : f32
    %123 = vector.broadcast %cst_51 : f32 to vector<128x128xf32>
    %124 = arith.cmpf ole, %120, %123 : vector<128x128xf32>
    %125 = arith.ori %122, %124 : vector<128x128xi1>
    %126 = arith.ori %86, %125 : vector<128x128xi1>
    %c3_52 = arith.constant 3 : index
    %c0_53 = arith.constant 0 : index
    %127 = memref.load %arg0[%c3_52, %c0_53] : memref<12x9xf32, #tpu.memory_space<smem>>
    %c3_54 = arith.constant 3 : index
    %c1_55 = arith.constant 1 : index
    %128 = memref.load %arg0[%c3_54, %c1_55] : memref<12x9xf32, #tpu.memory_space<smem>>
    %c3_56 = arith.constant 3 : index
    %c2_57 = arith.constant 2 : index
    %129 = memref.load %arg0[%c3_56, %c2_57] : memref<12x9xf32, #tpu.memory_space<smem>>
    %c3_58 = arith.constant 3 : index
    %c3_59 = arith.constant 3 : index
    %130 = memref.load %arg0[%c3_58, %c3_59] : memref<12x9xf32, #tpu.memory_space<smem>>
    %c3_60 = arith.constant 3 : index
    %c4_61 = arith.constant 4 : index
    %131 = memref.load %arg0[%c3_60, %c4_61] : memref<12x9xf32, #tpu.memory_space<smem>>
    %c3_62 = arith.constant 3 : index
    %c5_63 = arith.constant 5 : index
    %132 = memref.load %arg0[%c3_62, %c5_63] : memref<12x9xf32, #tpu.memory_space<smem>>
    %c3_64 = arith.constant 3 : index
    %c6_65 = arith.constant 6 : index
    %133 = memref.load %arg0[%c3_64, %c6_65] : memref<12x9xf32, #tpu.memory_space<smem>>
    %c3_66 = arith.constant 3 : index
    %c7_67 = arith.constant 7 : index
    %134 = memref.load %arg0[%c3_66, %c7_67] : memref<12x9xf32, #tpu.memory_space<smem>>
    %c3_68 = arith.constant 3 : index
    %c8_69 = arith.constant 8 : index
    %135 = memref.load %arg0[%c3_68, %c8_69] : memref<12x9xf32, #tpu.memory_space<smem>>
    %136 = vector.broadcast %127 : f32 to vector<128x128xf32>
    %137 = arith.mulf %136, %3 : vector<128x128xf32>
    %138 = vector.broadcast %128 : f32 to vector<128x128xf32>
    %139 = arith.mulf %138, %7 : vector<128x128xf32>
    %140 = arith.addf %137, %139 : vector<128x128xf32>
    %141 = vector.broadcast %129 : f32 to vector<128x128xf32>
    %142 = arith.addf %140, %141 : vector<128x128xf32>
    %143 = vector.broadcast %130 : f32 to vector<128x128xf32>
    %144 = arith.mulf %143, %3 : vector<128x128xf32>
    %145 = vector.broadcast %131 : f32 to vector<128x128xf32>
    %146 = arith.mulf %145, %7 : vector<128x128xf32>
    %147 = arith.addf %144, %146 : vector<128x128xf32>
    %148 = vector.broadcast %132 : f32 to vector<128x128xf32>
    %149 = arith.addf %147, %148 : vector<128x128xf32>
    %150 = vector.broadcast %133 : f32 to vector<128x128xf32>
    %151 = arith.mulf %150, %3 : vector<128x128xf32>
    %152 = vector.broadcast %134 : f32 to vector<128x128xf32>
    %153 = arith.mulf %152, %7 : vector<128x128xf32>
    %154 = arith.addf %151, %153 : vector<128x128xf32>
    %155 = vector.broadcast %135 : f32 to vector<128x128xf32>
    %156 = arith.addf %154, %155 : vector<128x128xf32>
    %157 = arith.minimumf %142, %149 : vector<128x128xf32>
    %158 = arith.minimumf %157, %156 : vector<128x128xf32>
    %159 = arith.maximumf %142, %149 : vector<128x128xf32>
    %160 = arith.maximumf %159, %156 : vector<128x128xf32>
    %cst_70 = arith.constant 0.000000e+00 : f32
    %161 = vector.broadcast %cst_70 : f32 to vector<128x128xf32>
    %162 = arith.cmpf oge, %158, %161 : vector<128x128xf32>
    %cst_71 = arith.constant 0.000000e+00 : f32
    %163 = vector.broadcast %cst_71 : f32 to vector<128x128xf32>
    %164 = arith.cmpf ole, %160, %163 : vector<128x128xf32>
    %165 = arith.ori %162, %164 : vector<128x128xi1>
    %166 = arith.ori %126, %165 : vector<128x128xi1>
    %c4_72 = arith.constant 4 : index
    %c0_73 = arith.constant 0 : index
    %167 = memref.load %arg0[%c4_72, %c0_73] : memref<12x9xf32, #tpu.memory_space<smem>>
    %c4_74 = arith.constant 4 : index
    %c1_75 = arith.constant 1 : index
    %168 = memref.load %arg0[%c4_74, %c1_75] : memref<12x9xf32, #tpu.memory_space<smem>>
    %c4_76 = arith.constant 4 : index
    %c2_77 = arith.constant 2 : index
    %169 = memref.load %arg0[%c4_76, %c2_77] : memref<12x9xf32, #tpu.memory_space<smem>>
    %c4_78 = arith.constant 4 : index
    %c3_79 = arith.constant 3 : index
    %170 = memref.load %arg0[%c4_78, %c3_79] : memref<12x9xf32, #tpu.memory_space<smem>>
    %c4_80 = arith.constant 4 : index
    %c4_81 = arith.constant 4 : index
    %171 = memref.load %arg0[%c4_80, %c4_81] : memref<12x9xf32, #tpu.memory_space<smem>>
    %c4_82 = arith.constant 4 : index
    %c5_83 = arith.constant 5 : index
    %172 = memref.load %arg0[%c4_82, %c5_83] : memref<12x9xf32, #tpu.memory_space<smem>>
    %c4_84 = arith.constant 4 : index
    %c6_85 = arith.constant 6 : index
    %173 = memref.load %arg0[%c4_84, %c6_85] : memref<12x9xf32, #tpu.memory_space<smem>>
    %c4_86 = arith.constant 4 : index
    %c7_87 = arith.constant 7 : index
    %174 = memref.load %arg0[%c4_86, %c7_87] : memref<12x9xf32, #tpu.memory_space<smem>>
    %c4_88 = arith.constant 4 : index
    %c8_89 = arith.constant 8 : index
    %175 = memref.load %arg0[%c4_88, %c8_89] : memref<12x9xf32, #tpu.memory_space<smem>>
    %176 = vector.broadcast %167 : f32 to vector<128x128xf32>
    %177 = arith.mulf %176, %3 : vector<128x128xf32>
    %178 = vector.broadcast %168 : f32 to vector<128x128xf32>
    %179 = arith.mulf %178, %7 : vector<128x128xf32>
    %180 = arith.addf %177, %179 : vector<128x128xf32>
    %181 = vector.broadcast %169 : f32 to vector<128x128xf32>
    %182 = arith.addf %180, %181 : vector<128x128xf32>
    %183 = vector.broadcast %170 : f32 to vector<128x128xf32>
    %184 = arith.mulf %183, %3 : vector<128x128xf32>
    %185 = vector.broadcast %171 : f32 to vector<128x128xf32>
    %186 = arith.mulf %185, %7 : vector<128x128xf32>
    %187 = arith.addf %184, %186 : vector<128x128xf32>
    %188 = vector.broadcast %172 : f32 to vector<128x128xf32>
    %189 = arith.addf %187, %188 : vector<128x128xf32>
    %190 = vector.broadcast %173 : f32 to vector<128x128xf32>
    %191 = arith.mulf %190, %3 : vector<128x128xf32>
    %192 = vector.broadcast %174 : f32 to vector<128x128xf32>
    %193 = arith.mulf %192, %7 : vector<128x128xf32>
    %194 = arith.addf %191, %193 : vector<128x128xf32>
    %195 = vector.broadcast %175 : f32 to vector<128x128xf32>
    %196 = arith.addf %194, %195 : vector<128x128xf32>
    %197 = arith.minimumf %182, %189 : vector<128x128xf32>
    %198 = arith.minimumf %197, %196 : vector<128x128xf32>
    %199 = arith.maximumf %182, %189 : vector<128x128xf32>
    %200 = arith.maximumf %199, %196 : vector<128x128xf32>
    %cst_90 = arith.constant 0.000000e+00 : f32
    %201 = vector.broadcast %cst_90 : f32 to vector<128x128xf32>
    %202 = arith.cmpf oge, %198, %201 : vector<128x128xf32>
    %cst_91 = arith.constant 0.000000e+00 : f32
    %203 = vector.broadcast %cst_91 : f32 to vector<128x128xf32>
    %204 = arith.cmpf ole, %200, %203 : vector<128x128xf32>
    %205 = arith.ori %202, %204 : vector<128x128xi1>
    %206 = arith.ori %166, %205 : vector<128x128xi1>
    %c5_92 = arith.constant 5 : index
    %c0_93 = arith.constant 0 : index
    %207 = memref.load %arg0[%c5_92, %c0_93] : memref<12x9xf32, #tpu.memory_space<smem>>
    %c5_94 = arith.constant 5 : index
    %c1_95 = arith.constant 1 : index
    %208 = memref.load %arg0[%c5_94, %c1_95] : memref<12x9xf32, #tpu.memory_space<smem>>
    %c5_96 = arith.constant 5 : index
    %c2_97 = arith.constant 2 : index
    %209 = memref.load %arg0[%c5_96, %c2_97] : memref<12x9xf32, #tpu.memory_space<smem>>
    %c5_98 = arith.constant 5 : index
    %c3_99 = arith.constant 3 : index
    %210 = memref.load %arg0[%c5_98, %c3_99] : memref<12x9xf32, #tpu.memory_space<smem>>
    %c5_100 = arith.constant 5 : index
    %c4_101 = arith.constant 4 : index
    %211 = memref.load %arg0[%c5_100, %c4_101] : memref<12x9xf32, #tpu.memory_space<smem>>
    %c5_102 = arith.constant 5 : index
    %c5_103 = arith.constant 5 : index
    %212 = memref.load %arg0[%c5_102, %c5_103] : memref<12x9xf32, #tpu.memory_space<smem>>
    %c5_104 = arith.constant 5 : index
    %c6_105 = arith.constant 6 : index
    %213 = memref.load %arg0[%c5_104, %c6_105] : memref<12x9xf32, #tpu.memory_space<smem>>
    %c5_106 = arith.constant 5 : index
    %c7_107 = arith.constant 7 : index
    %214 = memref.load %arg0[%c5_106, %c7_107] : memref<12x9xf32, #tpu.memory_space<smem>>
    %c5_108 = arith.constant 5 : index
    %c8_109 = arith.constant 8 : index
    %215 = memref.load %arg0[%c5_108, %c8_109] : memref<12x9xf32, #tpu.memory_space<smem>>
    %216 = vector.broadcast %207 : f32 to vector<128x128xf32>
    %217 = arith.mulf %216, %3 : vector<128x128xf32>
    %218 = vector.broadcast %208 : f32 to vector<128x128xf32>
    %219 = arith.mulf %218, %7 : vector<128x128xf32>
    %220 = arith.addf %217, %219 : vector<128x128xf32>
    %221 = vector.broadcast %209 : f32 to vector<128x128xf32>
    %222 = arith.addf %220, %221 : vector<128x128xf32>
    %223 = vector.broadcast %210 : f32 to vector<128x128xf32>
    %224 = arith.mulf %223, %3 : vector<128x128xf32>
    %225 = vector.broadcast %211 : f32 to vector<128x128xf32>
    %226 = arith.mulf %225, %7 : vector<128x128xf32>
    %227 = arith.addf %224, %226 : vector<128x128xf32>
    %228 = vector.broadcast %212 : f32 to vector<128x128xf32>
    %229 = arith.addf %227, %228 : vector<128x128xf32>
    %230 = vector.broadcast %213 : f32 to vector<128x128xf32>
    %231 = arith.mulf %230, %3 : vector<128x128xf32>
    %232 = vector.broadcast %214 : f32 to vector<128x128xf32>
    %233 = arith.mulf %232, %7 : vector<128x128xf32>
    %234 = arith.addf %231, %233 : vector<128x128xf32>
    %235 = vector.broadcast %215 : f32 to vector<128x128xf32>
    %236 = arith.addf %234, %235 : vector<128x128xf32>
    %237 = arith.minimumf %222, %229 : vector<128x128xf32>
    %238 = arith.minimumf %237, %236 : vector<128x128xf32>
    %239 = arith.maximumf %222, %229 : vector<128x128xf32>
    %240 = arith.maximumf %239, %236 : vector<128x128xf32>
    %cst_110 = arith.constant 0.000000e+00 : f32
    %241 = vector.broadcast %cst_110 : f32 to vector<128x128xf32>
    %242 = arith.cmpf oge, %238, %241 : vector<128x128xf32>
    %cst_111 = arith.constant 0.000000e+00 : f32
    %243 = vector.broadcast %cst_111 : f32 to vector<128x128xf32>
    %244 = arith.cmpf ole, %240, %243 : vector<128x128xf32>
    %245 = arith.ori %242, %244 : vector<128x128xi1>
    %246 = arith.ori %206, %245 : vector<128x128xi1>
    %c6_112 = arith.constant 6 : index
    %c0_113 = arith.constant 0 : index
    %247 = memref.load %arg0[%c6_112, %c0_113] : memref<12x9xf32, #tpu.memory_space<smem>>
    %c6_114 = arith.constant 6 : index
    %c1_115 = arith.constant 1 : index
    %248 = memref.load %arg0[%c6_114, %c1_115] : memref<12x9xf32, #tpu.memory_space<smem>>
    %c6_116 = arith.constant 6 : index
    %c2_117 = arith.constant 2 : index
    %249 = memref.load %arg0[%c6_116, %c2_117] : memref<12x9xf32, #tpu.memory_space<smem>>
    %c6_118 = arith.constant 6 : index
    %c3_119 = arith.constant 3 : index
    %250 = memref.load %arg0[%c6_118, %c3_119] : memref<12x9xf32, #tpu.memory_space<smem>>
    %c6_120 = arith.constant 6 : index
    %c4_121 = arith.constant 4 : index
    %251 = memref.load %arg0[%c6_120, %c4_121] : memref<12x9xf32, #tpu.memory_space<smem>>
    %c6_122 = arith.constant 6 : index
    %c5_123 = arith.constant 5 : index
    %252 = memref.load %arg0[%c6_122, %c5_123] : memref<12x9xf32, #tpu.memory_space<smem>>
    %c6_124 = arith.constant 6 : index
    %c6_125 = arith.constant 6 : index
    %253 = memref.load %arg0[%c6_124, %c6_125] : memref<12x9xf32, #tpu.memory_space<smem>>
    %c6_126 = arith.constant 6 : index
    %c7_127 = arith.constant 7 : index
    %254 = memref.load %arg0[%c6_126, %c7_127] : memref<12x9xf32, #tpu.memory_space<smem>>
    %c6_128 = arith.constant 6 : index
    %c8_129 = arith.constant 8 : index
    %255 = memref.load %arg0[%c6_128, %c8_129] : memref<12x9xf32, #tpu.memory_space<smem>>
    %256 = vector.broadcast %247 : f32 to vector<128x128xf32>
    %257 = arith.mulf %256, %3 : vector<128x128xf32>
    %258 = vector.broadcast %248 : f32 to vector<128x128xf32>
    %259 = arith.mulf %258, %7 : vector<128x128xf32>
    %260 = arith.addf %257, %259 : vector<128x128xf32>
    %261 = vector.broadcast %249 : f32 to vector<128x128xf32>
    %262 = arith.addf %260, %261 : vector<128x128xf32>
    %263 = vector.broadcast %250 : f32 to vector<128x128xf32>
    %264 = arith.mulf %263, %3 : vector<128x128xf32>
    %265 = vector.broadcast %251 : f32 to vector<128x128xf32>
    %266 = arith.mulf %265, %7 : vector<128x128xf32>
    %267 = arith.addf %264, %266 : vector<128x128xf32>
    %268 = vector.broadcast %252 : f32 to vector<128x128xf32>
    %269 = arith.addf %267, %268 : vector<128x128xf32>
    %270 = vector.broadcast %253 : f32 to vector<128x128xf32>
    %271 = arith.mulf %270, %3 : vector<128x128xf32>
    %272 = vector.broadcast %254 : f32 to vector<128x128xf32>
    %273 = arith.mulf %272, %7 : vector<128x128xf32>
    %274 = arith.addf %271, %273 : vector<128x128xf32>
    %275 = vector.broadcast %255 : f32 to vector<128x128xf32>
    %276 = arith.addf %274, %275 : vector<128x128xf32>
    %277 = arith.minimumf %262, %269 : vector<128x128xf32>
    %278 = arith.minimumf %277, %276 : vector<128x128xf32>
    %279 = arith.maximumf %262, %269 : vector<128x128xf32>
    %280 = arith.maximumf %279, %276 : vector<128x128xf32>
    %cst_130 = arith.constant 0.000000e+00 : f32
    %281 = vector.broadcast %cst_130 : f32 to vector<128x128xf32>
    %282 = arith.cmpf oge, %278, %281 : vector<128x128xf32>
    %cst_131 = arith.constant 0.000000e+00 : f32
    %283 = vector.broadcast %cst_131 : f32 to vector<128x128xf32>
    %284 = arith.cmpf ole, %280, %283 : vector<128x128xf32>
    %285 = arith.ori %282, %284 : vector<128x128xi1>
    %286 = arith.ori %246, %285 : vector<128x128xi1>
    %c7_132 = arith.constant 7 : index
    %c0_133 = arith.constant 0 : index
    %287 = memref.load %arg0[%c7_132, %c0_133] : memref<12x9xf32, #tpu.memory_space<smem>>
    %c7_134 = arith.constant 7 : index
    %c1_135 = arith.constant 1 : index
    %288 = memref.load %arg0[%c7_134, %c1_135] : memref<12x9xf32, #tpu.memory_space<smem>>
    %c7_136 = arith.constant 7 : index
    %c2_137 = arith.constant 2 : index
    %289 = memref.load %arg0[%c7_136, %c2_137] : memref<12x9xf32, #tpu.memory_space<smem>>
    %c7_138 = arith.constant 7 : index
    %c3_139 = arith.constant 3 : index
    %290 = memref.load %arg0[%c7_138, %c3_139] : memref<12x9xf32, #tpu.memory_space<smem>>
    %c7_140 = arith.constant 7 : index
    %c4_141 = arith.constant 4 : index
    %291 = memref.load %arg0[%c7_140, %c4_141] : memref<12x9xf32, #tpu.memory_space<smem>>
    %c7_142 = arith.constant 7 : index
    %c5_143 = arith.constant 5 : index
    %292 = memref.load %arg0[%c7_142, %c5_143] : memref<12x9xf32, #tpu.memory_space<smem>>
    %c7_144 = arith.constant 7 : index
    %c6_145 = arith.constant 6 : index
    %293 = memref.load %arg0[%c7_144, %c6_145] : memref<12x9xf32, #tpu.memory_space<smem>>
    %c7_146 = arith.constant 7 : index
    %c7_147 = arith.constant 7 : index
    %294 = memref.load %arg0[%c7_146, %c7_147] : memref<12x9xf32, #tpu.memory_space<smem>>
    %c7_148 = arith.constant 7 : index
    %c8_149 = arith.constant 8 : index
    %295 = memref.load %arg0[%c7_148, %c8_149] : memref<12x9xf32, #tpu.memory_space<smem>>
    %296 = vector.broadcast %287 : f32 to vector<128x128xf32>
    %297 = arith.mulf %296, %3 : vector<128x128xf32>
    %298 = vector.broadcast %288 : f32 to vector<128x128xf32>
    %299 = arith.mulf %298, %7 : vector<128x128xf32>
    %300 = arith.addf %297, %299 : vector<128x128xf32>
    %301 = vector.broadcast %289 : f32 to vector<128x128xf32>
    %302 = arith.addf %300, %301 : vector<128x128xf32>
    %303 = vector.broadcast %290 : f32 to vector<128x128xf32>
    %304 = arith.mulf %303, %3 : vector<128x128xf32>
    %305 = vector.broadcast %291 : f32 to vector<128x128xf32>
    %306 = arith.mulf %305, %7 : vector<128x128xf32>
    %307 = arith.addf %304, %306 : vector<128x128xf32>
    %308 = vector.broadcast %292 : f32 to vector<128x128xf32>
    %309 = arith.addf %307, %308 : vector<128x128xf32>
    %310 = vector.broadcast %293 : f32 to vector<128x128xf32>
    %311 = arith.mulf %310, %3 : vector<128x128xf32>
    %312 = vector.broadcast %294 : f32 to vector<128x128xf32>
    %313 = arith.mulf %312, %7 : vector<128x128xf32>
    %314 = arith.addf %311, %313 : vector<128x128xf32>
    %315 = vector.broadcast %295 : f32 to vector<128x128xf32>
    %316 = arith.addf %314, %315 : vector<128x128xf32>
    %317 = arith.minimumf %302, %309 : vector<128x128xf32>
    %318 = arith.minimumf %317, %316 : vector<128x128xf32>
    %319 = arith.maximumf %302, %309 : vector<128x128xf32>
    %320 = arith.maximumf %319, %316 : vector<128x128xf32>
    %cst_150 = arith.constant 0.000000e+00 : f32
    %321 = vector.broadcast %cst_150 : f32 to vector<128x128xf32>
    %322 = arith.cmpf oge, %318, %321 : vector<128x128xf32>
    %cst_151 = arith.constant 0.000000e+00 : f32
    %323 = vector.broadcast %cst_151 : f32 to vector<128x128xf32>
    %324 = arith.cmpf ole, %320, %323 : vector<128x128xf32>
    %325 = arith.ori %322, %324 : vector<128x128xi1>
    %326 = arith.ori %286, %325 : vector<128x128xi1>
    %c8_152 = arith.constant 8 : index
    %c0_153 = arith.constant 0 : index
    %327 = memref.load %arg0[%c8_152, %c0_153] : memref<12x9xf32, #tpu.memory_space<smem>>
    %c8_154 = arith.constant 8 : index
    %c1_155 = arith.constant 1 : index
    %328 = memref.load %arg0[%c8_154, %c1_155] : memref<12x9xf32, #tpu.memory_space<smem>>
    %c8_156 = arith.constant 8 : index
    %c2_157 = arith.constant 2 : index
    %329 = memref.load %arg0[%c8_156, %c2_157] : memref<12x9xf32, #tpu.memory_space<smem>>
    %c8_158 = arith.constant 8 : index
    %c3_159 = arith.constant 3 : index
    %330 = memref.load %arg0[%c8_158, %c3_159] : memref<12x9xf32, #tpu.memory_space<smem>>
    %c8_160 = arith.constant 8 : index
    %c4_161 = arith.constant 4 : index
    %331 = memref.load %arg0[%c8_160, %c4_161] : memref<12x9xf32, #tpu.memory_space<smem>>
    %c8_162 = arith.constant 8 : index
    %c5_163 = arith.constant 5 : index
    %332 = memref.load %arg0[%c8_162, %c5_163] : memref<12x9xf32, #tpu.memory_space<smem>>
    %c8_164 = arith.constant 8 : index
    %c6_165 = arith.constant 6 : index
    %333 = memref.load %arg0[%c8_164, %c6_165] : memref<12x9xf32, #tpu.memory_space<smem>>
    %c8_166 = arith.constant 8 : index
    %c7_167 = arith.constant 7 : index
    %334 = memref.load %arg0[%c8_166, %c7_167] : memref<12x9xf32, #tpu.memory_space<smem>>
    %c8_168 = arith.constant 8 : index
    %c8_169 = arith.constant 8 : index
    %335 = memref.load %arg0[%c8_168, %c8_169] : memref<12x9xf32, #tpu.memory_space<smem>>
    %336 = vector.broadcast %327 : f32 to vector<128x128xf32>
    %337 = arith.mulf %336, %3 : vector<128x128xf32>
    %338 = vector.broadcast %328 : f32 to vector<128x128xf32>
    %339 = arith.mulf %338, %7 : vector<128x128xf32>
    %340 = arith.addf %337, %339 : vector<128x128xf32>
    %341 = vector.broadcast %329 : f32 to vector<128x128xf32>
    %342 = arith.addf %340, %341 : vector<128x128xf32>
    %343 = vector.broadcast %330 : f32 to vector<128x128xf32>
    %344 = arith.mulf %343, %3 : vector<128x128xf32>
    %345 = vector.broadcast %331 : f32 to vector<128x128xf32>
    %346 = arith.mulf %345, %7 : vector<128x128xf32>
    %347 = arith.addf %344, %346 : vector<128x128xf32>
    %348 = vector.broadcast %332 : f32 to vector<128x128xf32>
    %349 = arith.addf %347, %348 : vector<128x128xf32>
    %350 = vector.broadcast %333 : f32 to vector<128x128xf32>
    %351 = arith.mulf %350, %3 : vector<128x128xf32>
    %352 = vector.broadcast %334 : f32 to vector<128x128xf32>
    %353 = arith.mulf %352, %7 : vector<128x128xf32>
    %354 = arith.addf %351, %353 : vector<128x128xf32>
    %355 = vector.broadcast %335 : f32 to vector<128x128xf32>
    %356 = arith.addf %354, %355 : vector<128x128xf32>
    %357 = arith.minimumf %342, %349 : vector<128x128xf32>
    %358 = arith.minimumf %357, %356 : vector<128x128xf32>
    %359 = arith.maximumf %342, %349 : vector<128x128xf32>
    %360 = arith.maximumf %359, %356 : vector<128x128xf32>
    %cst_170 = arith.constant 0.000000e+00 : f32
    %361 = vector.broadcast %cst_170 : f32 to vector<128x128xf32>
    %362 = arith.cmpf oge, %358, %361 : vector<128x128xf32>
    %cst_171 = arith.constant 0.000000e+00 : f32
    %363 = vector.broadcast %cst_171 : f32 to vector<128x128xf32>
    %364 = arith.cmpf ole, %360, %363 : vector<128x128xf32>
    %365 = arith.ori %362, %364 : vector<128x128xi1>
    %366 = arith.ori %326, %365 : vector<128x128xi1>
    %c9 = arith.constant 9 : index
    %c0_172 = arith.constant 0 : index
    %367 = memref.load %arg0[%c9, %c0_172] : memref<12x9xf32, #tpu.memory_space<smem>>
    %c9_173 = arith.constant 9 : index
    %c1_174 = arith.constant 1 : index
    %368 = memref.load %arg0[%c9_173, %c1_174] : memref<12x9xf32, #tpu.memory_space<smem>>
    %c9_175 = arith.constant 9 : index
    %c2_176 = arith.constant 2 : index
    %369 = memref.load %arg0[%c9_175, %c2_176] : memref<12x9xf32, #tpu.memory_space<smem>>
    %c9_177 = arith.constant 9 : index
    %c3_178 = arith.constant 3 : index
    %370 = memref.load %arg0[%c9_177, %c3_178] : memref<12x9xf32, #tpu.memory_space<smem>>
    %c9_179 = arith.constant 9 : index
    %c4_180 = arith.constant 4 : index
    %371 = memref.load %arg0[%c9_179, %c4_180] : memref<12x9xf32, #tpu.memory_space<smem>>
    %c9_181 = arith.constant 9 : index
    %c5_182 = arith.constant 5 : index
    %372 = memref.load %arg0[%c9_181, %c5_182] : memref<12x9xf32, #tpu.memory_space<smem>>
    %c9_183 = arith.constant 9 : index
    %c6_184 = arith.constant 6 : index
    %373 = memref.load %arg0[%c9_183, %c6_184] : memref<12x9xf32, #tpu.memory_space<smem>>
    %c9_185 = arith.constant 9 : index
    %c7_186 = arith.constant 7 : index
    %374 = memref.load %arg0[%c9_185, %c7_186] : memref<12x9xf32, #tpu.memory_space<smem>>
    %c9_187 = arith.constant 9 : index
    %c8_188 = arith.constant 8 : index
    %375 = memref.load %arg0[%c9_187, %c8_188] : memref<12x9xf32, #tpu.memory_space<smem>>
    %376 = vector.broadcast %367 : f32 to vector<128x128xf32>
    %377 = arith.mulf %376, %3 : vector<128x128xf32>
    %378 = vector.broadcast %368 : f32 to vector<128x128xf32>
    %379 = arith.mulf %378, %7 : vector<128x128xf32>
    %380 = arith.addf %377, %379 : vector<128x128xf32>
    %381 = vector.broadcast %369 : f32 to vector<128x128xf32>
    %382 = arith.addf %380, %381 : vector<128x128xf32>
    %383 = vector.broadcast %370 : f32 to vector<128x128xf32>
    %384 = arith.mulf %383, %3 : vector<128x128xf32>
    %385 = vector.broadcast %371 : f32 to vector<128x128xf32>
    %386 = arith.mulf %385, %7 : vector<128x128xf32>
    %387 = arith.addf %384, %386 : vector<128x128xf32>
    %388 = vector.broadcast %372 : f32 to vector<128x128xf32>
    %389 = arith.addf %387, %388 : vector<128x128xf32>
    %390 = vector.broadcast %373 : f32 to vector<128x128xf32>
    %391 = arith.mulf %390, %3 : vector<128x128xf32>
    %392 = vector.broadcast %374 : f32 to vector<128x128xf32>
    %393 = arith.mulf %392, %7 : vector<128x128xf32>
    %394 = arith.addf %391, %393 : vector<128x128xf32>
    %395 = vector.broadcast %375 : f32 to vector<128x128xf32>
    %396 = arith.addf %394, %395 : vector<128x128xf32>
    %397 = arith.minimumf %382, %389 : vector<128x128xf32>
    %398 = arith.minimumf %397, %396 : vector<128x128xf32>
    %399 = arith.maximumf %382, %389 : vector<128x128xf32>
    %400 = arith.maximumf %399, %396 : vector<128x128xf32>
    %cst_189 = arith.constant 0.000000e+00 : f32
    %401 = vector.broadcast %cst_189 : f32 to vector<128x128xf32>
    %402 = arith.cmpf oge, %398, %401 : vector<128x128xf32>
    %cst_190 = arith.constant 0.000000e+00 : f32
    %403 = vector.broadcast %cst_190 : f32 to vector<128x128xf32>
    %404 = arith.cmpf ole, %400, %403 : vector<128x128xf32>
    %405 = arith.ori %402, %404 : vector<128x128xi1>
    %406 = arith.ori %366, %405 : vector<128x128xi1>
    %c10 = arith.constant 10 : index
    %c0_191 = arith.constant 0 : index
    %407 = memref.load %arg0[%c10, %c0_191] : memref<12x9xf32, #tpu.memory_space<smem>>
    %c10_192 = arith.constant 10 : index
    %c1_193 = arith.constant 1 : index
    %408 = memref.load %arg0[%c10_192, %c1_193] : memref<12x9xf32, #tpu.memory_space<smem>>
    %c10_194 = arith.constant 10 : index
    %c2_195 = arith.constant 2 : index
    %409 = memref.load %arg0[%c10_194, %c2_195] : memref<12x9xf32, #tpu.memory_space<smem>>
    %c10_196 = arith.constant 10 : index
    %c3_197 = arith.constant 3 : index
    %410 = memref.load %arg0[%c10_196, %c3_197] : memref<12x9xf32, #tpu.memory_space<smem>>
    %c10_198 = arith.constant 10 : index
    %c4_199 = arith.constant 4 : index
    %411 = memref.load %arg0[%c10_198, %c4_199] : memref<12x9xf32, #tpu.memory_space<smem>>
    %c10_200 = arith.constant 10 : index
    %c5_201 = arith.constant 5 : index
    %412 = memref.load %arg0[%c10_200, %c5_201] : memref<12x9xf32, #tpu.memory_space<smem>>
    %c10_202 = arith.constant 10 : index
    %c6_203 = arith.constant 6 : index
    %413 = memref.load %arg0[%c10_202, %c6_203] : memref<12x9xf32, #tpu.memory_space<smem>>
    %c10_204 = arith.constant 10 : index
    %c7_205 = arith.constant 7 : index
    %414 = memref.load %arg0[%c10_204, %c7_205] : memref<12x9xf32, #tpu.memory_space<smem>>
    %c10_206 = arith.constant 10 : index
    %c8_207 = arith.constant 8 : index
    %415 = memref.load %arg0[%c10_206, %c8_207] : memref<12x9xf32, #tpu.memory_space<smem>>
    %416 = vector.broadcast %407 : f32 to vector<128x128xf32>
    %417 = arith.mulf %416, %3 : vector<128x128xf32>
    %418 = vector.broadcast %408 : f32 to vector<128x128xf32>
    %419 = arith.mulf %418, %7 : vector<128x128xf32>
    %420 = arith.addf %417, %419 : vector<128x128xf32>
    %421 = vector.broadcast %409 : f32 to vector<128x128xf32>
    %422 = arith.addf %420, %421 : vector<128x128xf32>
    %423 = vector.broadcast %410 : f32 to vector<128x128xf32>
    %424 = arith.mulf %423, %3 : vector<128x128xf32>
    %425 = vector.broadcast %411 : f32 to vector<128x128xf32>
    %426 = arith.mulf %425, %7 : vector<128x128xf32>
    %427 = arith.addf %424, %426 : vector<128x128xf32>
    %428 = vector.broadcast %412 : f32 to vector<128x128xf32>
    %429 = arith.addf %427, %428 : vector<128x128xf32>
    %430 = vector.broadcast %413 : f32 to vector<128x128xf32>
    %431 = arith.mulf %430, %3 : vector<128x128xf32>
    %432 = vector.broadcast %414 : f32 to vector<128x128xf32>
    %433 = arith.mulf %432, %7 : vector<128x128xf32>
    %434 = arith.addf %431, %433 : vector<128x128xf32>
    %435 = vector.broadcast %415 : f32 to vector<128x128xf32>
    %436 = arith.addf %434, %435 : vector<128x128xf32>
    %437 = arith.minimumf %422, %429 : vector<128x128xf32>
    %438 = arith.minimumf %437, %436 : vector<128x128xf32>
    %439 = arith.maximumf %422, %429 : vector<128x128xf32>
    %440 = arith.maximumf %439, %436 : vector<128x128xf32>
    %cst_208 = arith.constant 0.000000e+00 : f32
    %441 = vector.broadcast %cst_208 : f32 to vector<128x128xf32>
    %442 = arith.cmpf oge, %438, %441 : vector<128x128xf32>
    %cst_209 = arith.constant 0.000000e+00 : f32
    %443 = vector.broadcast %cst_209 : f32 to vector<128x128xf32>
    %444 = arith.cmpf ole, %440, %443 : vector<128x128xf32>
    %445 = arith.ori %442, %444 : vector<128x128xi1>
    %446 = arith.ori %406, %445 : vector<128x128xi1>
    %c11 = arith.constant 11 : index
    %c0_210 = arith.constant 0 : index
    %447 = memref.load %arg0[%c11, %c0_210] : memref<12x9xf32, #tpu.memory_space<smem>>
    %c11_211 = arith.constant 11 : index
    %c1_212 = arith.constant 1 : index
    %448 = memref.load %arg0[%c11_211, %c1_212] : memref<12x9xf32, #tpu.memory_space<smem>>
    %c11_213 = arith.constant 11 : index
    %c2_214 = arith.constant 2 : index
    %449 = memref.load %arg0[%c11_213, %c2_214] : memref<12x9xf32, #tpu.memory_space<smem>>
    %c11_215 = arith.constant 11 : index
    %c3_216 = arith.constant 3 : index
    %450 = memref.load %arg0[%c11_215, %c3_216] : memref<12x9xf32, #tpu.memory_space<smem>>
    %c11_217 = arith.constant 11 : index
    %c4_218 = arith.constant 4 : index
    %451 = memref.load %arg0[%c11_217, %c4_218] : memref<12x9xf32, #tpu.memory_space<smem>>
    %c11_219 = arith.constant 11 : index
    %c5_220 = arith.constant 5 : index
    %452 = memref.load %arg0[%c11_219, %c5_220] : memref<12x9xf32, #tpu.memory_space<smem>>
    %c11_221 = arith.constant 11 : index
    %c6_222 = arith.constant 6 : index
    %453 = memref.load %arg0[%c11_221, %c6_222] : memref<12x9xf32, #tpu.memory_space<smem>>
    %c11_223 = arith.constant 11 : index
    %c7_224 = arith.constant 7 : index
    %454 = memref.load %arg0[%c11_223, %c7_224] : memref<12x9xf32, #tpu.memory_space<smem>>
    %c11_225 = arith.constant 11 : index
    %c8_226 = arith.constant 8 : index
    %455 = memref.load %arg0[%c11_225, %c8_226] : memref<12x9xf32, #tpu.memory_space<smem>>
    %456 = vector.broadcast %447 : f32 to vector<128x128xf32>
    %457 = arith.mulf %456, %3 : vector<128x128xf32>
    %458 = vector.broadcast %448 : f32 to vector<128x128xf32>
    %459 = arith.mulf %458, %7 : vector<128x128xf32>
    %460 = arith.addf %457, %459 : vector<128x128xf32>
    %461 = vector.broadcast %449 : f32 to vector<128x128xf32>
    %462 = arith.addf %460, %461 : vector<128x128xf32>
    %463 = vector.broadcast %450 : f32 to vector<128x128xf32>
    %464 = arith.mulf %463, %3 : vector<128x128xf32>
    %465 = vector.broadcast %451 : f32 to vector<128x128xf32>
    %466 = arith.mulf %465, %7 : vector<128x128xf32>
    %467 = arith.addf %464, %466 : vector<128x128xf32>
    %468 = vector.broadcast %452 : f32 to vector<128x128xf32>
    %469 = arith.addf %467, %468 : vector<128x128xf32>
    %470 = vector.broadcast %453 : f32 to vector<128x128xf32>
    %471 = arith.mulf %470, %3 : vector<128x128xf32>
    %472 = vector.broadcast %454 : f32 to vector<128x128xf32>
    %473 = arith.mulf %472, %7 : vector<128x128xf32>
    %474 = arith.addf %471, %473 : vector<128x128xf32>
    %475 = vector.broadcast %455 : f32 to vector<128x128xf32>
    %476 = arith.addf %474, %475 : vector<128x128xf32>
    %477 = arith.minimumf %462, %469 : vector<128x128xf32>
    %478 = arith.minimumf %477, %476 : vector<128x128xf32>
    %479 = arith.maximumf %462, %469 : vector<128x128xf32>
    %480 = arith.maximumf %479, %476 : vector<128x128xf32>
    %cst_227 = arith.constant 0.000000e+00 : f32
    %481 = vector.broadcast %cst_227 : f32 to vector<128x128xf32>
    %482 = arith.cmpf oge, %478, %481 : vector<128x128xf32>
    %cst_228 = arith.constant 0.000000e+00 : f32
    %483 = vector.broadcast %cst_228 : f32 to vector<128x128xf32>
    %484 = arith.cmpf ole, %480, %483 : vector<128x128xf32>
    %485 = arith.ori %482, %484 : vector<128x128xi1>
    %486 = arith.ori %446, %485 : vector<128x128xi1>
    %487 = arith.extui %486 : vector<128x128xi1> to vector<128x128xi32>
    %488 = arith.sitofp %487 : vector<128x128xi32> to vector<128x128xf32>
    %c0_229 = arith.constant 0 : index
    %c0_230 = arith.constant 0 : index
    %489 = vector.load %arg5[%c0_229, %c0_230] : memref<128x128xf32, #tpu.memory_space<vmem>>, vector<128x128xf32>
    tpu.vector_store %arg5[%c0_229, %c0_230], %488 {strides = array<i32>} : memref<128x128xf32, #tpu.memory_space<vmem>>, vector<128x128xf32>,
    %c0_231 = arith.constant 0 : index
    %c0_232 = arith.constant 0 : index
    %490 = vector.load %arg1[%c0_231, %c0_232] : memref<128x128xf32, #tpu.memory_space<vmem>>, vector<128x128xf32>
    %c0_233 = arith.constant 0 : index
    %c0_234 = arith.constant 0 : index
    %491 = vector.load %arg2[%c0_233, %c0_234] : memref<128x128xf32, #tpu.memory_space<vmem>>, vector<128x128xf32>
    %c0_235 = arith.constant 0 : index
    %c0_236 = arith.constant 0 : index
    %492 = vector.load %arg3[%c0_235, %c0_236] : memref<128x128xf32, #tpu.memory_space<vmem>>, vector<128x128xf32>
    %c0_237 = arith.constant 0 : index
    %c0_238 = arith.constant 0 : index
    %493 = vector.load %arg4[%c0_237, %c0_238] : memref<128x128xf32, #tpu.memory_space<vmem>>, vector<128x128xf32>
    %cst_239 = arith.constant dense<0.000000e+00> : vector<128x128xf32>
    %494 = tpu.matmul %490, %488, %cst_239 {dimension_numbers = #tpu.dot_dimension_numbers<[1], [0], [0], [1], [0, 0, 1, 1], [], []>} : vector<128x128xf32>, vector<128x128xf32>, vector<128x128xf32> -> vector<128x128xf32>
    %cst_240 = arith.constant dense<0.000000e+00> : vector<128x128xf32>
    %495 = tpu.matmul %494, %490, %cst_240 {dimension_numbers = #tpu.dot_dimension_numbers<[1], [0], [0], [1], [0, 0, 1, 1], [], []>} : vector<128x128xf32>, vector<128x128xf32>, vector<128x128xf32> -> vector<128x128xf32>
    %cst_241 = arith.constant dense<0.000000e+00> : vector<128x128xf32>
    %496 = tpu.matmul %491, %495, %cst_241 {dimension_numbers = #tpu.dot_dimension_numbers<[1], [0], [0], [1], [0, 0, 1, 1], [], []>} : vector<128x128xf32>, vector<128x128xf32>, vector<128x128xf32> -> vector<128x128xf32>
    %cst_242 = arith.constant dense<0.000000e+00> : vector<128x128xf32>
    %497 = tpu.matmul %496, %493, %cst_242 {dimension_numbers = #tpu.dot_dimension_numbers<[1], [0], [0], [1], [0, 0, 1, 1], [], []>} : vector<128x128xf32>, vector<128x128xf32>, vector<128x128xf32> -> vector<128x128xf32>
    %cst_243 = arith.constant dense<0.000000e+00> : vector<128x128xf32>
    %498 = tpu.matmul %492, %495, %cst_243 {dimension_numbers = #tpu.dot_dimension_numbers<[1], [0], [0], [1], [0, 0, 1, 1], [], []>} : vector<128x128xf32>, vector<128x128xf32>, vector<128x128xf32> -> vector<128x128xf32>
    %cst_244 = arith.constant dense<0.000000e+00> : vector<128x128xf32>
    %499 = tpu.matmul %498, %491, %cst_244 {dimension_numbers = #tpu.dot_dimension_numbers<[1], [0], [0], [1], [0, 0, 1, 1], [], []>} : vector<128x128xf32>, vector<128x128xf32>, vector<128x128xf32> -> vector<128x128xf32>
    %500 = arith.mulf %497, %497 : vector<128x128xf32>
    %501 = arith.mulf %499, %499 : vector<128x128xf32>
    %502 = arith.addf %500, %501 : vector<128x128xf32>
    %503 = math.sqrt %502 : vector<128x128xf32>
    %c0_245 = arith.constant 0 : index
    %c0_246 = arith.constant 0 : index
    %504 = vector.load %arg6[%c0_245, %c0_246] : memref<128x128xf32, #tpu.memory_space<vmem>>, vector<128x128xf32>
    tpu.vector_store %arg6[%c0_245, %c0_246], %503 {strides = array<i32>} : memref<128x128xf32, #tpu.memory_space<vmem>>, vector<128x128xf32>,
    %505 = vector.shape_cast %503 : vector<128x128xf32> to vector<1x128x128xf32>
    %cst_247 = arith.constant dense<0.000000e+00> : vector<1xf32>
    %506 = vector.multi_reduction <add>, %505, %cst_247 [1, 2] : vector<1x128x128xf32> to vector<1xf32>
    %507 = vector.shape_cast %506 : vector<1xf32> to vector<1x1x1xf32>
    %508 = vector.extract %507[0, 0, 0] : f32 from vector<1x1x1xf32>
    %cst_248 = arith.constant 6.10351563E-5 : f32
    %509 = arith.mulf %508, %cst_248 : f32
    %c0_249 = arith.constant 0 : index
    %c0_250 = arith.constant 0 : index
    %510 = memref.load %arg7[%c0_249, %c0_250] : memref<1x1xf32, #tpu.memory_space<smem>>
    memref.store %509, %arg7[%c0_249, %c0_250] : memref<1x1xf32, #tpu.memory_space<smem>>
    return
  }
}

</mosaic_0001>

<llo_original>
// kernel: tpu_custom_call.1
$region0: #{tpu_custom_call.1}
  #allocation0 [shape = 'u32[]', space=smem, size = 0x4, offset = 0x4, fixed_abs, tag = 'smem constant byte address 0x4 - core index']
  #allocation1 [shape = 'u32[144,128]{1,0:T(1,128)}', space=vmem, size = 0x12000, scoped, tag = 'internal scratch']
  %s0 = inlined_call_operand.hbm [shape: f32[12,9], index: 0, kind: input, shape index: {}]
  %s1 = inlined_call_operand.hbm [shape: f32[128,128], index: 1, kind: input, shape index: {}]
  %s2 = inlined_call_operand.hbm [shape: f32[128,128], index: 2, kind: input, shape index: {}]
  %s3 = inlined_call_operand.hbm [shape: f32[128,128], index: 3, kind: input, shape index: {}]
  %s4 = inlined_call_operand.hbm [shape: f32[128,128], index: 4, kind: input, shape index: {}]
  %s5 = inlined_call_operand.hbm [shape: f32[128,128], index: 5, kind: output, shape index: {0}]
  %s6 = inlined_call_operand.hbm [shape: f32[128,128], index: 6, kind: output, shape index: {1}]
  %s7 = inlined_call_operand.hbm [shape: f32[1,1], index: 7, kind: output, shape index: {2}]
  %8 = xla_tuple %s5, %s6, %s7
  %s9 = sld [smem:[#allocation0]]
  $region66: #{tpu_custom_call.1} parent=0
    _
  %s11 = ssub.s32 1, %s9
  %s12 = scalar_select 0, %s11, %s9
  $region1: #{tpu_custom_call.1} parent=0
    #allocation2 [shape = 'u8[8192]{0}', space=smem, size = 0x2000, scoped, tag = 'input window, operand 0, single buffered']
    #allocation3 [shape = 's32[1]{0}', space=sflag, size = 0x4, scoped, tag = 'scoped memory for tpu_custom_call.1']
    #allocation4 [shape = 's32[1]{0}', space=sflag, size = 0x4, scoped, tag = 'scoped memory for tpu_custom_call.1']
    #allocation5 [shape = 's32[1]{0}', space=sflag, size = 0x4, scoped, tag = 'scoped memory for tpu_custom_call.1']
    #allocation6 [shape = 's32[1]{0}', space=sflag, size = 0x4, scoped, tag = 'scoped memory for tpu_custom_call.1']
    #allocation7 [shape = 'u8[65536]{0}', space=vmem, size = 0x10000, scoped, tag = 'input window, operand 1, single buffered']
    #allocation8 [shape = 'u8[65536]{0}', space=vmem, size = 0x10000, scoped, tag = 'input window, operand 2, single buffered']
    #allocation9 [shape = 's32[1]{0}', space=sflag, size = 0x4, scoped, tag = 'scoped memory for tpu_custom_call.1']
    #allocation10 [shape = 'u8[65536]{0}', space=vmem, size = 0x10000, scoped, tag = 'input window, operand 3, single buffered']
    #allocation11 [shape = 'u8[65536]{0}', space=vmem, size = 0x10000, scoped, tag = 'input window, operand 4, single buffered']
    #allocation12 [shape = 's32[1]{0}', space=sflag, size = 0x4, scoped, tag = 'scoped memory for tpu_custom_call.1']
    #allocation13 [shape = 'u8[65536]{0}', space=vmem, size = 0x10000, scoped, tag = 'output window, operand 0, single buffered']
    #allocation14 [shape = 'u8[65536]{0}', space=vmem, size = 0x10000, scoped, tag = 'output window, operand 1, single buffered']
    #allocation15 [shape = 's32[1]{0}', space=sflag, size = 0x4, scoped, tag = 'scoped memory for tpu_custom_call.1']
    #allocation16 [shape = 'u8[512]{0}', space=smem, size = 0x200, scoped, tag = 'output window, operand 2, single buffered']
    %13 = vsyncpa [#allocation5], 0
    %14 = vsyncpa [#allocation3], 0
    %15 = vsyncpa [#allocation9], 0
    %16 = vsyncpa [#allocation12], 0
    %17 = vsyncpa [#allocation4], 0
    %18 = vsyncpa [#allocation15], 0
    %19 = vsyncpa [#allocation6], 0
    // Predicated region
    $region2: #{tpu_custom_call.1} parent=1 // pred_check
      _
    $region3: #{tpu_custom_call.1} parent=1 // pred_check_branch
      %21 = sbr.rel (0) target = $region5
    $region4: #{tpu_custom_call.1} parent=1 // pred_region
      %s23 = ssub.s32 256, 256
      %24 = vsyncadd [#allocation5], %s23
      %29 = dma.hbm_to_smem %s0, 256, [#allocation2], [#allocation5], 128, 128, 8
    $region5: #{tpu_custom_call.1} parent=1 // pred_fallthru
      _
    // Predicated region
    $region6: #{tpu_custom_call.1} parent=1 // pred_check
      _
    $region7: #{tpu_custom_call.1} parent=1 // pred_check_branch
      %31 = sbr.rel (0) target = $region9
    $region8: #{tpu_custom_call.1} parent=1 // pred_region
      %s33 = ssub.s32 2048, 2048
      %34 = vsyncadd [#allocation3], %s33
      %s35 = sshll.u32 [#allocation7], 4
      %s36 = int_to_ptr.vmem [resolvable:$true] %s35
      %41 = dma.hbm_to_vmem [thread:$0]  %s1, 2048, %s36, [#allocation3], 128, 128, 8
    $region9: #{tpu_custom_call.1} parent=1 // pred_fallthru
      _
    // Predicated region
    $region10: #{tpu_custom_call.1} parent=1 // pred_check
      _
    $region11: #{tpu_custom_call.1} parent=1 // pred_check_branch
      %43 = sbr.rel (0) target = $region13
    $region12: #{tpu_custom_call.1} parent=1 // pred_region
      %s45 = ssub.s32 2048, 2048
      %46 = vsyncadd [#allocation9], %s45
      %s47 = sshll.u32 [#allocation8], 4
      %s48 = int_to_ptr.vmem [resolvable:$true] %s47
      %53 = dma.hbm_to_vmem [thread:$0]  %s2, 2048, %s48, [#allocation9], 128, 128, 8
    $region13: #{tpu_custom_call.1} parent=1 // pred_fallthru
      _
    // Predicated region
    $region14: #{tpu_custom_call.1} parent=1 // pred_check
      _
    $region15: #{tpu_custom_call.1} parent=1 // pred_check_branch
      %55 = sbr.rel (0) target = $region17
    $region16: #{tpu_custom_call.1} parent=1 // pred_region
      %s57 = ssub.s32 2048, 2048
      %58 = vsyncadd [#allocation9], %s57
      %s59 = sshll.u32 [#allocation10], 4
      %s60 = int_to_ptr.vmem [resolvable:$true] %s59
      %65 = dma.hbm_to_vmem [thread:$0]  %s3, 2048, %s60, [#allocation9], 128, 128, 8
    $region17: #{tpu_custom_call.1} parent=1 // pred_fallthru
      _
    // Predicated region
    $region18: #{tpu_custom_call.1} parent=1 // pred_check
      _
    $region19: #{tpu_custom_call.1} parent=1 // pred_check_branch
      %67 = sbr.rel (0) target = $region21
    $region20: #{tpu_custom_call.1} parent=1 // pred_region
      %s69 = ssub.s32 2048, 2048
      %70 = vsyncadd [#allocation12], %s69
      %s71 = sshll.u32 [#allocation11], 4
      %s72 = int_to_ptr.vmem [resolvable:$true] %s71
      %77 = dma.hbm_to_vmem [thread:$0]  %s4, 2048, %s72, [#allocation12], 128, 128, 8
    $region21: #{tpu_custom_call.1} parent=1 // pred_fallthru
      _
    // Predicated region
    $region22: #{tpu_custom_call.1} parent=1 // pred_check
      _
    $region23: #{tpu_custom_call.1} parent=1 // pred_check_branch
      %79 = sbr.rel (0) target = $region25
    $region24: #{tpu_custom_call.1} parent=1 // pred_region
      %80 = dma.done [#allocation5], 256
    $region25: #{tpu_custom_call.1} parent=1 // pred_fallthru
      _
    // Predicated region
    $region26: #{tpu_custom_call.1} parent=1 // pred_check
      _
    $region27: #{tpu_custom_call.1} parent=1 // pred_check_branch
      %82 = sbr.rel (0) target = $region29
    $region28: #{tpu_custom_call.1} parent=1 // pred_region
      %83 = dma.done [#allocation3], 2048
    $region29: #{tpu_custom_call.1} parent=1 // pred_fallthru
      _
    // Predicated region
    $region30: #{tpu_custom_call.1} parent=1 // pred_check
      _
    $region31: #{tpu_custom_call.1} parent=1 // pred_check_branch
      %85 = sbr.rel (0) target = $region33
    $region32: #{tpu_custom_call.1} parent=1 // pred_region
      %86 = dma.done [#allocation9], 2048
    $region33: #{tpu_custom_call.1} parent=1 // pred_fallthru
      _
    // Predicated region
    $region34: #{tpu_custom_call.1} parent=1 // pred_check
      _
    $region35: #{tpu_custom_call.1} parent=1 // pred_check_branch
      %88 = sbr.rel (0) target = $region37
    $region36: #{tpu_custom_call.1} parent=1 // pred_region
      %89 = dma.done [#allocation9], 2048
    $region37: #{tpu_custom_call.1} parent=1 // pred_fallthru
      _
    // Predicated region
    $region38: #{tpu_custom_call.1} parent=1 // pred_check
      _
    $region39: #{tpu_custom_call.1} parent=1 // pred_check_branch
      %91 = sbr.rel (0) target = $region41
    $region40: #{tpu_custom_call.1} parent=1 // pred_region
      %92 = dma.done [#allocation12], 2048
    $region41: #{tpu_custom_call.1} parent=1 // pred_fallthru
      _
    %93 = sfence
    %v94 = vlaneseq
    %v95 = vshrl.u32 %v94, 7
    %v96 = vadd.s32 %v95, 8
    %v97 = vadd.s32 %v95, 16
    %v98 = vadd.s32 %v95, 24
    %v99 = vadd.s32 %v95, 32
    %v100 = vadd.s32 %v95, 40
    %v101 = vadd.s32 %v95, 48
    %v102 = vadd.s32 %v95, 56
    %v103 = vadd.s32 %v95, 64
    %v104 = vadd.s32 %v95, 72
    %v105 = vadd.s32 %v95, 80
    %v106 = vadd.s32 %v95, 88
    %v107 = vadd.s32 %v95, 96
    %v108 = vadd.s32 %v95, 104
    %v109 = vadd.s32 %v95, 112
    %v110 = vadd.s32 %v95, 120
    %v111 = vcvt.s32.f32 %v95
    %v112 = vcvt.s32.f32 %v96
    %v113 = vcvt.s32.f32 %v97
    %v114 = vcvt.s32.f32 %v98
    %v115 = vcvt.s32.f32 %v99
    %v116 = vcvt.s32.f32 %v100
    %v117 = vcvt.s32.f32 %v101
    %v118 = vcvt.s32.f32 %v102
    %v119 = vcvt.s32.f32 %v103
    %v120 = vcvt.s32.f32 %v104
    %v121 = vcvt.s32.f32 %v105
    %v122 = vcvt.s32.f32 %v106
    %v123 = vcvt.s32.f32 %v107
    %v124 = vcvt.s32.f32 %v108
    %v125 = vcvt.s32.f32 %v109
    %v126 = vcvt.s32.f32 %v110
    %v127 = vadd.f32 %v111, 0.5
    %v128 = vadd.f32 %v112, 0.5
    %v129 = vadd.f32 %v113, 0.5
    %v130 = vadd.f32 %v114, 0.5
    %v131 = vadd.f32 %v115, 0.5
    %v132 = vadd.f32 %v116, 0.5
    %v133 = vadd.f32 %v117, 0.5
    %v134 = vadd.f32 %v118, 0.5
    %v135 = vadd.f32 %v119, 0.5
    %v136 = vadd.f32 %v120, 0.5
    %v137 = vadd.f32 %v121, 0.5
    %v138 = vadd.f32 %v122, 0.5
    %v139 = vadd.f32 %v123, 0.5
    %v140 = vadd.f32 %v124, 0.5
    %v141 = vadd.f32 %v125, 0.5
    %v142 = vadd.f32 %v126, 0.5
    %v143 = vlaneseq
    %v144 = vand.u32 %v143, 127
    %v145 = vcvt.s32.f32 %v144
    %v146 = vadd.f32 %v145, 0.5
    %s147 = sld [smem:[#allocation2]]
    %s148 = sld [smem:[#allocation2 + $0x1]]
    %s149 = sld [smem:[#allocation2 + $0x2]]
    %s150 = sld [smem:[#allocation2 + $0x3]]
    %s151 = sld [smem:[#allocation2 + $0x4]]
    %s152 = sld [smem:[#allocation2 + $0x5]]
    %s153 = sld [smem:[#allocation2 + $0x6]]
    %s154 = sld [smem:[#allocation2 + $0x7]]
    %s155 = sld [smem:[#allocation2 + $0x8]]
    %v156 = vstv %s147
    %v157 = vmul.f32 %v156, %v127
    %v158 = vmul.f32 %v156, %v128
    %v159 = vmul.f32 %v156, %v129
    %v160 = vmul.f32 %v156, %v130
    %v161 = vmul.f32 %v156, %v131
    %v162 = vmul.f32 %v156, %v132
    %v163 = vmul.f32 %v156, %v133
    %v164 = vmul.f32 %v156, %v134
    %v165 = vmul.f32 %v156, %v135
    %v166 = vmul.f32 %v156, %v136
    %v167 = vmul.f32 %v156, %v137
    %v168 = vmul.f32 %v156, %v138
    %v169 = vmul.f32 %v156, %v139
    %v170 = vmul.f32 %v156, %v140
    %v171 = vmul.f32 %v156, %v141
    %v172 = vmul.f32 %v156, %v142
    %v173 = vstv %s148
    %v174 = vmul.f32 %v173, %v146
    %v175 = vadd.f32 %v157, %v174
    %v176 = vadd.f32 %v158, %v174
    %v177 = vadd.f32 %v159, %v174
    %v178 = vadd.f32 %v160, %v174
    %v179 = vadd.f32 %v161, %v174
    %v180 = vadd.f32 %v162, %v174
    %v181 = vadd.f32 %v163, %v174
    %v182 = vadd.f32 %v164, %v174
    %v183 = vadd.f32 %v165, %v174
    %v184 = vadd.f32 %v166, %v174
    %v185 = vadd.f32 %v167, %v174
    %v186 = vadd.f32 %v168, %v174
    %v187 = vadd.f32 %v169, %v174
    %v188 = vadd.f32 %v170, %v174
    %v189 = vadd.f32 %v171, %v174
    %v190 = vadd.f32 %v172, %v174
    %v191 = vstv %s149
    %v192 = vadd.f32 %v175, %v191
    %v193 = vadd.f32 %v176, %v191
    %v194 = vadd.f32 %v177, %v191
    %v195 = vadd.f32 %v178, %v191
    %v196 = vadd.f32 %v179, %v191
    %v197 = vadd.f32 %v180, %v191
    %v198 = vadd.f32 %v181, %v191
    %v199 = vadd.f32 %v182, %v191
    %v200 = vadd.f32 %v183, %v191
    %v201 = vadd.f32 %v184, %v191
    %v202 = vadd.f32 %v185, %v191
    %v203 = vadd.f32 %v186, %v191
    %v204 = vadd.f32 %v187, %v191
    %v205 = vadd.f32 %v188, %v191
    %v206 = vadd.f32 %v189, %v191
    %v207 = vadd.f32 %v190, %v191
    %v208 = vstv %s150
    %v209 = vmul.f32 %v208, %v127
    %v210 = vmul.f32 %v208, %v128
    %v211 = vmul.f32 %v208, %v129
    %v212 = vmul.f32 %v208, %v130
    %v213 = vmul.f32 %v208, %v131
    %v214 = vmul.f32 %v208, %v132
    %v215 = vmul.f32 %v208, %v133
    %v216 = vmul.f32 %v208, %v134
    %v217 = vmul.f32 %v208, %v135
    %v218 = vmul.f32 %v208, %v136
    %v219 = vmul.f32 %v208, %v137
    %v220 = vmul.f32 %v208, %v138
    %v221 = vmul.f32 %v208, %v139
    %v222 = vmul.f32 %v208, %v140
    %v223 = vmul.f32 %v208, %v141
    %v224 = vmul.f32 %v208, %v142
    %v225 = vstv %s151
    %v226 = vmul.f32 %v225, %v146
    %v227 = vadd.f32 %v209, %v226
    %v228 = vadd.f32 %v210, %v226
    %v229 = vadd.f32 %v211, %v226
    %v230 = vadd.f32 %v212, %v226
    %v231 = vadd.f32 %v213, %v226
    %v232 = vadd.f32 %v214, %v226
    %v233 = vadd.f32 %v215, %v226
    %v234 = vadd.f32 %v216, %v226
    %v235 = vadd.f32 %v217, %v226
    %v236 = vadd.f32 %v218, %v226
    %v237 = vadd.f32 %v219, %v226
    %v238 = vadd.f32 %v220, %v226
    %v239 = vadd.f32 %v221, %v226
    %v240 = vadd.f32 %v222, %v226
    %v241 = vadd.f32 %v223, %v226
    %v242 = vadd.f32 %v224, %v226
    %v243 = vstv %s152
    %v244 = vadd.f32 %v227, %v243
    %v245 = vadd.f32 %v228, %v243
    %v246 = vadd.f32 %v229, %v243
    %v247 = vadd.f32 %v230, %v243
    %v248 = vadd.f32 %v231, %v243
    %v249 = vadd.f32 %v232, %v243
    %v250 = vadd.f32 %v233, %v243
    %v251 = vadd.f32 %v234, %v243
    %v252 = vadd.f32 %v235, %v243
    %v253 = vadd.f32 %v236, %v243
    %v254 = vadd.f32 %v237, %v243
    %v255 = vadd.f32 %v238, %v243
    %v256 = vadd.f32 %v239, %v243
    %v257 = vadd.f32 %v240, %v243
    %v258 = vadd.f32 %v241, %v243
    %v259 = vadd.f32 %v242, %v243
    %v260 = vstv %s153
    %v261 = vmul.f32 %v260, %v127
    %v262 = vmul.f32 %v260, %v128
    %v263 = vmul.f32 %v260, %v129
    %v264 = vmul.f32 %v260, %v130
    %v265 = vmul.f32 %v260, %v131
    %v266 = vmul.f32 %v260, %v132
    %v267 = vmul.f32 %v260, %v133
    %v268 = vmul.f32 %v260, %v134
    %v269 = vmul.f32 %v260, %v135
    %v270 = vmul.f32 %v260, %v136
    %v271 = vmul.f32 %v260, %v137
    %v272 = vmul.f32 %v260, %v138
    %v273 = vmul.f32 %v260, %v139
    %v274 = vmul.f32 %v260, %v140
    %v275 = vmul.f32 %v260, %v141
    %v276 = vmul.f32 %v260, %v142
    %v277 = vstv %s154
    %v278 = vmul.f32 %v277, %v146
    %v279 = vadd.f32 %v261, %v278
    %v280 = vadd.f32 %v262, %v278
    %v281 = vadd.f32 %v263, %v278
    %v282 = vadd.f32 %v264, %v278
    %v283 = vadd.f32 %v265, %v278
    %v284 = vadd.f32 %v266, %v278
    %v285 = vadd.f32 %v267, %v278
    %v286 = vadd.f32 %v268, %v278
    %v287 = vadd.f32 %v269, %v278
    %v288 = vadd.f32 %v270, %v278
    %v289 = vadd.f32 %v271, %v278
    %v290 = vadd.f32 %v272, %v278
    %v291 = vadd.f32 %v273, %v278
    %v292 = vadd.f32 %v274, %v278
    %v293 = vadd.f32 %v275, %v278
    %v294 = vadd.f32 %v276, %v278
    %v295 = vstv %s155
    %v296 = vadd.f32 %v279, %v295
    %v297 = vadd.f32 %v280, %v295
    %v298 = vadd.f32 %v281, %v295
    %v299 = vadd.f32 %v282, %v295
    %v300 = vadd.f32 %v283, %v295
    %v301 = vadd.f32 %v284, %v295
    %v302 = vadd.f32 %v285, %v295
    %v303 = vadd.f32 %v286, %v295
    %v304 = vadd.f32 %v287, %v295
    %v305 = vadd.f32 %v288, %v295
    %v306 = vadd.f32 %v289, %v295
    %v307 = vadd.f32 %v290, %v295
    %v308 = vadd.f32 %v291, %v295
    %v309 = vadd.f32 %v292, %v295
    %v310 = vadd.f32 %v293, %v295
    %v311 = vadd.f32 %v294, %v295
    %v312 = vmin.f32 %v192, %v244
    %v313 = vmin.f32 %v193, %v245
    %v314 = vmin.f32 %v194, %v246
    %v315 = vmin.f32 %v195, %v247
    %v316 = vmin.f32 %v196, %v248
    %v317 = vmin.f32 %v197, %v249
    %v318 = vmin.f32 %v198, %v250
    %v319 = vmin.f32 %v199, %v251
    %v320 = vmin.f32 %v200, %v252
    %v321 = vmin.f32 %v201, %v253
    %v322 = vmin.f32 %v202, %v254
    %v323 = vmin.f32 %v203, %v255
    %v324 = vmin.f32 %v204, %v256
    %v325 = vmin.f32 %v205, %v257
    %v326 = vmin.f32 %v206, %v258
    %v327 = vmin.f32 %v207, %v259
    %v328 = vmin.f32 %v312, %v296
    %v329 = vmin.f32 %v313, %v297
    %v330 = vmin.f32 %v314, %v298
    %v331 = vmin.f32 %v315, %v299
    %v332 = vmin.f32 %v316, %v300
    %v333 = vmin.f32 %v317, %v301
    %v334 = vmin.f32 %v318, %v302
    %v335 = vmin.f32 %v319, %v303
    %v336 = vmin.f32 %v320, %v304
    %v337 = vmin.f32 %v321, %v305
    %v338 = vmin.f32 %v322, %v306
    %v339 = vmin.f32 %v323, %v307
    %v340 = vmin.f32 %v324, %v308
    %v341 = vmin.f32 %v325, %v309
    %v342 = vmin.f32 %v326, %v310
    %v343 = vmin.f32 %v327, %v311
    %v344 = vmax.f32 %v192, %v244
    %v345 = vmax.f32 %v193, %v245
    %v346 = vmax.f32 %v194, %v246
    %v347 = vmax.f32 %v195, %v247
    %v348 = vmax.f32 %v196, %v248
    %v349 = vmax.f32 %v197, %v249
    %v350 = vmax.f32 %v198, %v250
    %v351 = vmax.f32 %v199, %v251
    %v352 = vmax.f32 %v200, %v252
    %v353 = vmax.f32 %v201, %v253
    %v354 = vmax.f32 %v202, %v254
    %v355 = vmax.f32 %v203, %v255
    %v356 = vmax.f32 %v204, %v256
    %v357 = vmax.f32 %v205, %v257
    %v358 = vmax.f32 %v206, %v258
    %v359 = vmax.f32 %v207, %v259
    %v360 = vmax.f32 %v344, %v296
    %v361 = vmax.f32 %v345, %v297
    %v362 = vmax.f32 %v346, %v298
    %v363 = vmax.f32 %v347, %v299
    %v364 = vmax.f32 %v348, %v300
    %v365 = vmax.f32 %v349, %v301
    %v366 = vmax.f32 %v350, %v302
    %v367 = vmax.f32 %v351, %v303
    %v368 = vmax.f32 %v352, %v304
    %v369 = vmax.f32 %v353, %v305
    %v370 = vmax.f32 %v354, %v306
    %v371 = vmax.f32 %v355, %v307
    %v372 = vmax.f32 %v356, %v308
    %v373 = vmax.f32 %v357, %v309
    %v374 = vmax.f32 %v358, %v310
    %v375 = vmax.f32 %v359, %v311
    %vm376 = vcmp.ge.f32.partialorder %v328, 0.0
    %vm377 = vcmp.ge.f32.partialorder %v329, 0.0
    %vm378 = vcmp.ge.f32.partialorder %v330, 0.0
    %vm379 = vcmp.ge.f32.partialorder %v331, 0.0
    %vm380 = vcmp.ge.f32.partialorder %v332, 0.0
    %vm381 = vcmp.ge.f32.partialorder %v333, 0.0
    %vm382 = vcmp.ge.f32.partialorder %v334, 0.0
    %vm383 = vcmp.ge.f32.partialorder %v335, 0.0
    %vm384 = vcmp.ge.f32.partialorder %v336, 0.0
    %vm385 = vcmp.ge.f32.partialorder %v337, 0.0
    %vm386 = vcmp.ge.f32.partialorder %v338, 0.0
    %vm387 = vcmp.ge.f32.partialorder %v339, 0.0
    %vm388 = vcmp.ge.f32.partialorder %v340, 0.0
    %vm389 = vcmp.ge.f32.partialorder %v341, 0.0
    %vm390 = vcmp.ge.f32.partialorder %v342, 0.0
    %vm391 = vcmp.ge.f32.partialorder %v343, 0.0
    %vm392 = vcmp.le.f32.partialorder %v360, 0.0
    %vm393 = vcmp.le.f32.partialorder %v361, 0.0
    %vm394 = vcmp.le.f32.partialorder %v362, 0.0
    %vm395 = vcmp.le.f32.partialorder %v363, 0.0
    %vm396 = vcmp.le.f32.partialorder %v364, 0.0
    %vm397 = vcmp.le.f32.partialorder %v365, 0.0
    %vm398 = vcmp.le.f32.partialorder %v366, 0.0
    %vm399 = vcmp.le.f32.partialorder %v367, 0.0
    %vm400 = vcmp.le.f32.partialorder %v368, 0.0
    %vm401 = vcmp.le.f32.partialorder %v369, 0.0
    %vm402 = vcmp.le.f32.partialorder %v370, 0.0
    %vm403 = vcmp.le.f32.partialorder %v371, 0.0
    %vm404 = vcmp.le.f32.partialorder %v372, 0.0
    %vm405 = vcmp.le.f32.partialorder %v373, 0.0
    %vm406 = vcmp.le.f32.partialorder %v374, 0.0
    %vm407 = vcmp.le.f32.partialorder %v375, 0.0
    %vm408 = vmor %vm376, %vm392
    %vm409 = vmor %vm377, %vm393
    %vm410 = vmor %vm378, %vm394
    %vm411 = vmor %vm379, %vm395
    %vm412 = vmor %vm380, %vm396
    %vm413 = vmor %vm381, %vm397
    %vm414 = vmor %vm382, %vm398
    %vm415 = vmor %vm383, %vm399
    %vm416 = vmor %vm384, %vm400
    %vm417 = vmor %vm385, %vm401
    %vm418 = vmor %vm386, %vm402
    %vm419 = vmor %vm387, %vm403
    %vm420 = vmor %vm388, %vm404
    %vm421 = vmor %vm389, %vm405
    %vm422 = vmor %vm390, %vm406
    %vm423 = vmor %vm391, %vm407
    %s424 = sld [smem:[#allocation2 + $0x80]]
    %s425 = sld [smem:[#allocation2 + $0x81]]
    %s426 = sld [smem:[#allocation2 + $0x82]]
    %s427 = sld [smem:[#allocation2 + $0x83]]
    %s428 = sld [smem:[#allocation2 + $0x84]]
    %s429 = sld [smem:[#allocation2 + $0x85]]
    %s430 = sld [smem:[#allocation2 + $0x86]]
    %s431 = sld [smem:[#allocation2 + $0x87]]
    %s432 = sld [smem:[#allocation2 + $0x88]]
    %v433 = vstv %s424
    %v434 = vmul.f32 %v433, %v127
    %v435 = vmul.f32 %v433, %v128
    %v436 = vmul.f32 %v433, %v129
    %v437 = vmul.f32 %v433, %v130
    %v438 = vmul.f32 %v433, %v131
    %v439 = vmul.f32 %v433, %v132
    %v440 = vmul.f32 %v433, %v133
    %v441 = vmul.f32 %v433, %v134
    %v442 = vmul.f32 %v433, %v135
    %v443 = vmul.f32 %v433, %v136
    %v444 = vmul.f32 %v433, %v137
    %v445 = vmul.f32 %v433, %v138
    %v446 = vmul.f32 %v433, %v139
    %v447 = vmul.f32 %v433, %v140
    %v448 = vmul.f32 %v433, %v141
    %v449 = vmul.f32 %v433, %v142
    %v450 = vstv %s425
    %v451 = vmul.f32 %v450, %v146
    %v452 = vadd.f32 %v434, %v451
    %v453 = vadd.f32 %v435, %v451
    %v454 = vadd.f32 %v436, %v451
    %v455 = vadd.f32 %v437, %v451
    %v456 = vadd.f32 %v438, %v451
    %v457 = vadd.f32 %v439, %v451
    %v458 = vadd.f32 %v440, %v451
    %v459 = vadd.f32 %v441, %v451
    %v460 = vadd.f32 %v442, %v451
    %v461 = vadd.f32 %v443, %v451
    %v462 = vadd.f32 %v444, %v451
    %v463 = vadd.f32 %v445, %v451
    %v464 = vadd.f32 %v446, %v451
    %v465 = vadd.f32 %v447, %v451
    %v466 = vadd.f32 %v448, %v451
    %v467 = vadd.f32 %v449, %v451
    %v468 = vstv %s426
    %v469 = vadd.f32 %v452, %v468
    %v470 = vadd.f32 %v453, %v468
    %v471 = vadd.f32 %v454, %v468
    %v472 = vadd.f32 %v455, %v468
    %v473 = vadd.f32 %v456, %v468
    %v474 = vadd.f32 %v457, %v468
    %v475 = vadd.f32 %v458, %v468
    %v476 = vadd.f32 %v459, %v468
    %v477 = vadd.f32 %v460, %v468
    %v478 = vadd.f32 %v461, %v468
    %v479 = vadd.f32 %v462, %v468
    %v480 = vadd.f32 %v463, %v468
    %v481 = vadd.f32 %v464, %v468
    %v482 = vadd.f32 %v465, %v468
    %v483 = vadd.f32 %v466, %v468
    %v484 = vadd.f32 %v467, %v468
    %v485 = vstv %s427
    %v486 = vmul.f32 %v485, %v127
    %v487 = vmul.f32 %v485, %v128
    %v488 = vmul.f32 %v485, %v129
    %v489 = vmul.f32 %v485, %v130
    %v490 = vmul.f32 %v485, %v131
    %v491 = vmul.f32 %v485, %v132
    %v492 = vmul.f32 %v485, %v133
    %v493 = vmul.f32 %v485, %v134
    %v494 = vmul.f32 %v485, %v135
    %v495 = vmul.f32 %v485, %v136
    %v496 = vmul.f32 %v485, %v137
    %v497 = vmul.f32 %v485, %v138
    %v498 = vmul.f32 %v485, %v139
    %v499 = vmul.f32 %v485, %v140
    %v500 = vmul.f32 %v485, %v141
    %v501 = vmul.f32 %v485, %v142
    %v502 = vstv %s428
    %v503 = vmul.f32 %v502, %v146
    %v504 = vadd.f32 %v486, %v503
    %v505 = vadd.f32 %v487, %v503
    %v506 = vadd.f32 %v488, %v503
    %v507 = vadd.f32 %v489, %v503
    %v508 = vadd.f32 %v490, %v503
    %v509 = vadd.f32 %v491, %v503
    %v510 = vadd.f32 %v492, %v503
    %v511 = vadd.f32 %v493, %v503
    %v512 = vadd.f32 %v494, %v503
    %v513 = vadd.f32 %v495, %v503
    %v514 = vadd.f32 %v496, %v503
    %v515 = vadd.f32 %v497, %v503
    %v516 = vadd.f32 %v498, %v503
    %v517 = vadd.f32 %v499, %v503
    %v518 = vadd.f32 %v500, %v503
    %v519 = vadd.f32 %v501, %v503
    %v520 = vstv %s429
    %v521 = vadd.f32 %v504, %v520
    %v522 = vadd.f32 %v505, %v520
    %v523 = vadd.f32 %v506, %v520
    %v524 = vadd.f32 %v507, %v520
    %v525 = vadd.f32 %v508, %v520
    %v526 = vadd.f32 %v509, %v520
    %v527 = vadd.f32 %v510, %v520
    %v528 = vadd.f32 %v511, %v520
    %v529 = vadd.f32 %v512, %v520
    %v530 = vadd.f32 %v513, %v520
    %v531 = vadd.f32 %v514, %v520
    %v532 = vadd.f32 %v515, %v520
    %v533 = vadd.f32 %v516, %v520
    %v534 = vadd.f32 %v517, %v520
    %v535 = vadd.f32 %v518, %v520
    %v536 = vadd.f32 %v519, %v520
    %v537 = vstv %s430
    %v538 = vmul.f32 %v537, %v127
    %v539 = vmul.f32 %v537, %v128
    %v540 = vmul.f32 %v537, %v129
    %v541 = vmul.f32 %v537, %v130
    %v542 = vmul.f32 %v537, %v131
    %v543 = vmul.f32 %v537, %v132
    %v544 = vmul.f32 %v537, %v133
    %v545 = vmul.f32 %v537, %v134
    %v546 = vmul.f32 %v537, %v135
    %v547 = vmul.f32 %v537, %v136
    %v548 = vmul.f32 %v537, %v137
    %v549 = vmul.f32 %v537, %v138
    %v550 = vmul.f32 %v537, %v139
    %v551 = vmul.f32 %v537, %v140
    %v552 = vmul.f32 %v537, %v141
    %v553 = vmul.f32 %v537, %v142
    %v554 = vstv %s431
    %v555 = vmul.f32 %v554, %v146
    %v556 = vadd.f32 %v538, %v555
    %v557 = vadd.f32 %v539, %v555
    %v558 = vadd.f32 %v540, %v555
    %v559 = vadd.f32 %v541, %v555
    %v560 = vadd.f32 %v542, %v555
    %v561 = vadd.f32 %v543, %v555
    %v562 = vadd.f32 %v544, %v555
    %v563 = vadd.f32 %v545, %v555
    %v564 = vadd.f32 %v546, %v555
    %v565 = vadd.f32 %v547, %v555
    %v566 = vadd.f32 %v548, %v555
    %v567 = vadd.f32 %v549, %v555
    %v568 = vadd.f32 %v550, %v555
    %v569 = vadd.f32 %v551, %v555
    %v570 = vadd.f32 %v552, %v555
    %v571 = vadd.f32 %v553, %v555
    %v572 = vstv %s432
    %v573 = vadd.f32 %v556, %v572
    %v574 = vadd.f32 %v557, %v572
    %v575 = vadd.f32 %v558, %v572
    %v576 = vadd.f32 %v559, %v572
    %v577 = vadd.f32 %v560, %v572
    %v578 = vadd.f32 %v561, %v572
    %v579 = vadd.f32 %v562, %v572
    %v580 = vadd.f32 %v563, %v572
    %v581 = vadd.f32 %v564, %v572
    %v582 = vadd.f32 %v565, %v572
    %v583 = vadd.f32 %v566, %v572
    %v584 = vadd.f32 %v567, %v572
    %v585 = vadd.f32 %v568, %v572
    %v586 = vadd.f32 %v569, %v572
    %v587 = vadd.f32 %v570, %v572
    %v588 = vadd.f32 %v571, %v572
    %v589 = vmin.f32 %v469, %v521
    %v590 = vmin.f32 %v470, %v522
    %v591 = vmin.f32 %v471, %v523
    %v592 = vmin.f32 %v472, %v524
    %v593 = vmin.f32 %v473, %v525
    %v594 = vmin.f32 %v474, %v526
    %v595 = vmin.f32 %v475, %v527
    %v596 = vmin.f32 %v476, %v528
    %v597 = vmin.f32 %v477, %v529
    %v598 = vmin.f32 %v478, %v530
    %v599 = vmin.f32 %v479, %v531
    %v600 = vmin.f32 %v480, %v532
    %v601 = vmin.f32 %v481, %v533
    %v602 = vmin.f32 %v482, %v534
    %v603 = vmin.f32 %v483, %v535
    %v604 = vmin.f32 %v484, %v536
    %v605 = vmin.f32 %v589, %v573
    %v606 = vmin.f32 %v590, %v574
    %v607 = vmin.f32 %v591, %v575
    %v608 = vmin.f32 %v592, %v576
    %v609 = vmin.f32 %v593, %v577
    %v610 = vmin.f32 %v594, %v578
    %v611 = vmin.f32 %v595, %v579
    %v612 = vmin.f32 %v596, %v580
    %v613 = vmin.f32 %v597, %v581
    %v614 = vmin.f32 %v598, %v582
    %v615 = vmin.f32 %v599, %v583
    %v616 = vmin.f32 %v600, %v584
    %v617 = vmin.f32 %v601, %v585
    %v618 = vmin.f32 %v602, %v586
    %v619 = vmin.f32 %v603, %v587
    %v620 = vmin.f32 %v604, %v588
    %v621 = vmax.f32 %v469, %v521
    %v622 = vmax.f32 %v470, %v522
    %v623 = vmax.f32 %v471, %v523
    %v624 = vmax.f32 %v472, %v524
    %v625 = vmax.f32 %v473, %v525
    %v626 = vmax.f32 %v474, %v526
    %v627 = vmax.f32 %v475, %v527
    %v628 = vmax.f32 %v476, %v528
    %v629 = vmax.f32 %v477, %v529
    %v630 = vmax.f32 %v478, %v530
    %v631 = vmax.f32 %v479, %v531
    %v632 = vmax.f32 %v480, %v532
    %v633 = vmax.f32 %v481, %v533
    %v634 = vmax.f32 %v482, %v534
    %v635 = vmax.f32 %v483, %v535
    %v636 = vmax.f32 %v484, %v536
    %v637 = vmax.f32 %v621, %v573
    %v638 = vmax.f32 %v622, %v574
    %v639 = vmax.f32 %v623, %v575
    %v640 = vmax.f32 %v624, %v576
    %v641 = vmax.f32 %v625, %v577
    %v642 = vmax.f32 %v626, %v578
    %v643 = vmax.f32 %v627, %v579
    %v644 = vmax.f32 %v628, %v580
    %v645 = vmax.f32 %v629, %v581
    %v646 = vmax.f32 %v630, %v582
    %v647 = vmax.f32 %v631, %v583
    %v648 = vmax.f32 %v632, %v584
    %v649 = vmax.f32 %v633, %v585
    %v650 = vmax.f32 %v634, %v586
    %v651 = vmax.f32 %v635, %v587
    %v652 = vmax.f32 %v636, %v588
    %vm653 = vcmp.ge.f32.partialorder %v605, 0.0
    %vm654 = vcmp.ge.f32.partialorder %v606, 0.0
    %vm655 = vcmp.ge.f32.partialorder %v607, 0.0
    %vm656 = vcmp.ge.f32.partialorder %v608, 0.0
    %vm657 = vcmp.ge.f32.partialorder %v609, 0.0
    %vm658 = vcmp.ge.f32.partialorder %v610, 0.0
    %vm659 = vcmp.ge.f32.partialorder %v611, 0.0
    %vm660 = vcmp.ge.f32.partialorder %v612, 0.0
    %vm661 = vcmp.ge.f32.partialorder %v613, 0.0
    %vm662 = vcmp.ge.f32.partialorder %v614, 0.0
    %vm663 = vcmp.ge.f32.partialorder %v615, 0.0
    %vm664 = vcmp.ge.f32.partialorder %v616, 0.0
    %vm665 = vcmp.ge.f32.partialorder %v617, 0.0
    %vm666 = vcmp.ge.f32.partialorder %v618, 0.0
    %vm667 = vcmp.ge.f32.partialorder %v619, 0.0
    %vm668 = vcmp.ge.f32.partialorder %v620, 0.0
    %vm669 = vcmp.le.f32.partialorder %v637, 0.0
    %vm670 = vcmp.le.f32.partialorder %v638, 0.0
    %vm671 = vcmp.le.f32.partialorder %v639, 0.0
    %vm672 = vcmp.le.f32.partialorder %v640, 0.0
    %vm673 = vcmp.le.f32.partialorder %v641, 0.0
    %vm674 = vcmp.le.f32.partialorder %v642, 0.0
    %vm675 = vcmp.le.f32.partialorder %v643, 0.0
    %vm676 = vcmp.le.f32.partialorder %v644, 0.0
    %vm677 = vcmp.le.f32.partialorder %v645, 0.0
    %vm678 = vcmp.le.f32.partialorder %v646, 0.0
    %vm679 = vcmp.le.f32.partialorder %v647, 0.0
    %vm680 = vcmp.le.f32.partialorder %v648, 0.0
    %vm681 = vcmp.le.f32.partialorder %v649, 0.0
    %vm682 = vcmp.le.f32.partialorder %v650, 0.0
    %vm683 = vcmp.le.f32.partialorder %v651, 0.0
    %vm684 = vcmp.le.f32.partialorder %v652, 0.0
    %vm685 = vmor %vm653, %vm669
    %vm686 = vmor %vm654, %vm670
    %vm687 = vmor %vm655, %vm671
    %vm688 = vmor %vm656, %vm672
    %vm689 = vmor %vm657, %vm673
    %vm690 = vmor %vm658, %vm674
    %vm691 = vmor %vm659, %vm675
    %vm692 = vmor %vm660, %vm676
    %vm693 = vmor %vm661, %vm677
    %vm694 = vmor %vm662, %vm678
    %vm695 = vmor %vm663, %vm679
    %vm696 = vmor %vm664, %vm680
    %vm697 = vmor %vm665, %vm681
    %vm698 = vmor %vm666, %vm682
    %vm699 = vmor %vm667, %vm683
    %vm700 = vmor %vm668, %vm684
    %vm701 = vmor %vm408, %vm685
    %vm702 = vmor %vm409, %vm686
    %vm703 = vmor %vm410, %vm687
    %vm704 = vmor %vm411, %vm688
    %vm705 = vmor %vm412, %vm689
    %vm706 = vmor %vm413, %vm690
    %vm707 = vmor %vm414, %vm691
    %vm708 = vmor %vm415, %vm692
    %vm709 = vmor %vm416, %vm693
    %vm710 = vmor %vm417, %vm694
    %vm711 = vmor %vm418, %vm695
    %vm712 = vmor %vm419, %vm696
    %vm713 = vmor %vm420, %vm697
    %vm714 = vmor %vm421, %vm698
    %vm715 = vmor %vm422, %vm699
    %vm716 = vmor %vm423, %vm700
    %s717 = sld [smem:[#allocation2 + $0x100]]
    %s718 = sld [smem:[#allocation2 + $0x101]]
    %s719 = sld [smem:[#allocation2 + $0x102]]
    %s720 = sld [smem:[#allocation2 + $0x103]]
    %s721 = sld [smem:[#allocation2 + $0x104]]
    %s722 = sld [smem:[#allocation2 + $0x105]]
    %s723 = sld [smem:[#allocation2 + $0x106]]
    %s724 = sld [smem:[#allocation2 + $0x107]]
    %s725 = sld [smem:[#allocation2 + $0x108]]
    %v726 = vstv %s717
    %v727 = vmul.f32 %v726, %v127
    %v728 = vmul.f32 %v726, %v128
    %v729 = vmul.f32 %v726, %v129
    %v730 = vmul.f32 %v726, %v130
    %v731 = vmul.f32 %v726, %v131
    %v732 = vmul.f32 %v726, %v132
    %v733 = vmul.f32 %v726, %v133
    %v734 = vmul.f32 %v726, %v134
    %v735 = vmul.f32 %v726, %v135
    %v736 = vmul.f32 %v726, %v136
    %v737 = vmul.f32 %v726, %v137
    %v738 = vmul.f32 %v726, %v138
    %v739 = vmul.f32 %v726, %v139
    %v740 = vmul.f32 %v726, %v140
    %v741 = vmul.f32 %v726, %v141
    %v742 = vmul.f32 %v726, %v142
    %v743 = vstv %s718
    %v744 = vmul.f32 %v743, %v146
    %v745 = vadd.f32 %v727, %v744
    %v746 = vadd.f32 %v728, %v744
    %v747 = vadd.f32 %v729, %v744
    %v748 = vadd.f32 %v730, %v744
    %v749 = vadd.f32 %v731, %v744
    %v750 = vadd.f32 %v732, %v744
    %v751 = vadd.f32 %v733, %v744
    %v752 = vadd.f32 %v734, %v744
    %v753 = vadd.f32 %v735, %v744
    %v754 = vadd.f32 %v736, %v744
    %v755 = vadd.f32 %v737, %v744
    %v756 = vadd.f32 %v738, %v744
    %v757 = vadd.f32 %v739, %v744
    %v758 = vadd.f32 %v740, %v744
    %v759 = vadd.f32 %v741, %v744
    %v760 = vadd.f32 %v742, %v744
    %v761 = vstv %s719
    %v762 = vadd.f32 %v745, %v761
    %v763 = vadd.f32 %v746, %v761
    %v764 = vadd.f32 %v747, %v761
    %v765 = vadd.f32 %v748, %v761
    %v766 = vadd.f32 %v749, %v761
    %v767 = vadd.f32 %v750, %v761
    %v768 = vadd.f32 %v751, %v761
    %v769 = vadd.f32 %v752, %v761
    %v770 = vadd.f32 %v753, %v761
    %v771 = vadd.f32 %v754, %v761
    %v772 = vadd.f32 %v755, %v761
    %v773 = vadd.f32 %v756, %v761
    %v774 = vadd.f32 %v757, %v761
    %v775 = vadd.f32 %v758, %v761
    %v776 = vadd.f32 %v759, %v761
    %v777 = vadd.f32 %v760, %v761
    %v778 = vstv %s720
    %v779 = vmul.f32 %v778, %v127
    %v780 = vmul.f32 %v778, %v128
    %v781 = vmul.f32 %v778, %v129
    %v782 = vmul.f32 %v778, %v130
    %v783 = vmul.f32 %v778, %v131
    %v784 = vmul.f32 %v778, %v132
    %v785 = vmul.f32 %v778, %v133
    %v786 = vmul.f32 %v778, %v134
    %v787 = vmul.f32 %v778, %v135
    %v788 = vmul.f32 %v778, %v136
    %v789 = vmul.f32 %v778, %v137
    %v790 = vmul.f32 %v778, %v138
    %v791 = vmul.f32 %v778, %v139
    %v792 = vmul.f32 %v778, %v140
    %v793 = vmul.f32 %v778, %v141
    %v794 = vmul.f32 %v778, %v142
    %v795 = vstv %s721
    %v796 = vmul.f32 %v795, %v146
    %v797 = vadd.f32 %v779, %v796
    %v798 = vadd.f32 %v780, %v796
    %v799 = vadd.f32 %v781, %v796
    %v800 = vadd.f32 %v782, %v796
    %v801 = vadd.f32 %v783, %v796
    %v802 = vadd.f32 %v784, %v796
    %v803 = vadd.f32 %v785, %v796
    %v804 = vadd.f32 %v786, %v796
    %v805 = vadd.f32 %v787, %v796
    %v806 = vadd.f32 %v788, %v796
    %v807 = vadd.f32 %v789, %v796
    %v808 = vadd.f32 %v790, %v796
    %v809 = vadd.f32 %v791, %v796
    %v810 = vadd.f32 %v792, %v796
    %v811 = vadd.f32 %v793, %v796
    %v812 = vadd.f32 %v794, %v796
    %v813 = vstv %s722
    %v814 = vadd.f32 %v797, %v813
    %v815 = vadd.f32 %v798, %v813
    %v816 = vadd.f32 %v799, %v813
    %v817 = vadd.f32 %v800, %v813
    %v818 = vadd.f32 %v801, %v813
    %v819 = vadd.f32 %v802, %v813
    %v820 = vadd.f32 %v803, %v813
    %v821 = vadd.f32 %v804, %v813
    %v822 = vadd.f32 %v805, %v813
    %v823 = vadd.f32 %v806, %v813
    %v824 = vadd.f32 %v807, %v813
    %v825 = vadd.f32 %v808, %v813
    %v826 = vadd.f32 %v809, %v813
    %v827 = vadd.f32 %v810, %v813
    %v828 = vadd.f32 %v811, %v813
    %v829 = vadd.f32 %v812, %v813
    %v830 = vstv %s723
    %v831 = vmul.f32 %v830, %v127
    %v832 = vmul.f32 %v830, %v128
    %v833 = vmul.f32 %v830, %v129
    %v834 = vmul.f32 %v830, %v130
    %v835 = vmul.f32 %v830, %v131
    %v836 = vmul.f32 %v830, %v132
    %v837 = vmul.f32 %v830, %v133
    %v838 = vmul.f32 %v830, %v134
    %v839 = vmul.f32 %v830, %v135
    %v840 = vmul.f32 %v830, %v136
    %v841 = vmul.f32 %v830, %v137
    %v842 = vmul.f32 %v830, %v138
    %v843 = vmul.f32 %v830, %v139
    %v844 = vmul.f32 %v830, %v140
    %v845 = vmul.f32 %v830, %v141
    %v846 = vmul.f32 %v830, %v142
    %v847 = vstv %s724
    %v848 = vmul.f32 %v847, %v146
    %v849 = vadd.f32 %v831, %v848
    %v850 = vadd.f32 %v832, %v848
    %v851 = vadd.f32 %v833, %v848
    %v852 = vadd.f32 %v834, %v848
    %v853 = vadd.f32 %v835, %v848
    %v854 = vadd.f32 %v836, %v848
    %v855 = vadd.f32 %v837, %v848
    %v856 = vadd.f32 %v838, %v848
    %v857 = vadd.f32 %v839, %v848
    %v858 = vadd.f32 %v840, %v848
    %v859 = vadd.f32 %v841, %v848
    %v860 = vadd.f32 %v842, %v848
    %v861 = vadd.f32 %v843, %v848
    %v862 = vadd.f32 %v844, %v848
    %v863 = vadd.f32 %v845, %v848
    %v864 = vadd.f32 %v846, %v848
    %v865 = vstv %s725
    %v866 = vadd.f32 %v849, %v865
    %v867 = vadd.f32 %v850, %v865
    %v868 = vadd.f32 %v851, %v865
    %v869 = vadd.f32 %v852, %v865
    %v870 = vadd.f32 %v853, %v865
    %v871 = vadd.f32 %v854, %v865
    %v872 = vadd.f32 %v855, %v865
    %v873 = vadd.f32 %v856, %v865
    %v874 = vadd.f32 %v857, %v865
    %v875 = vadd.f32 %v858, %v865
    %v876 = vadd.f32 %v859, %v865
    %v877 = vadd.f32 %v860, %v865
    %v878 = vadd.f32 %v861, %v865
    %v879 = vadd.f32 %v862, %v865
    %v880 = vadd.f32 %v863, %v865
    %v881 = vadd.f32 %v864, %v865
    %v882 = vmin.f32 %v762, %v814
    %v883 = vmin.f32 %v763, %v815
    %v884 = vmin.f32 %v764, %v816
    %v885 = vmin.f32 %v765, %v817
    %v886 = vmin.f32 %v766, %v818
    %v887 = vmin.f32 %v767, %v819
    %v888 = vmin.f32 %v768, %v820
    %v889 = vmin.f32 %v769, %v821
    %v890 = vmin.f32 %v770, %v822
    %v891 = vmin.f32 %v771, %v823
    %v892 = vmin.f32 %v772, %v824
    %v893 = vmin.f32 %v773, %v825
    %v894 = vmin.f32 %v774, %v826
    %v895 = vmin.f32 %v775, %v827
    %v896 = vmin.f32 %v776, %v828
    %v897 = vmin.f32 %v777, %v829
    %v898 = vmin.f32 %v882, %v866
    %v899 = vmin.f32 %v883, %v867
    %v900 = vmin.f32 %v884, %v868
    %v901 = vmin.f32 %v885, %v869
    %v902 = vmin.f32 %v886, %v870
    %v903 = vmin.f32 %v887, %v871
    %v904 = vmin.f32 %v888, %v872
    %v905 = vmin.f32 %v889, %v873
    %v906 = vmin.f32 %v890, %v874
    %v907 = vmin.f32 %v891, %v875
    %v908 = vmin.f32 %v892, %v876
    %v909 = vmin.f32 %v893, %v877
    %v910 = vmin.f32 %v894, %v878
    %v911 = vmin.f32 %v895, %v879
    %v912 = vmin.f32 %v896, %v880
    %v913 = vmin.f32 %v897, %v881
    %v914 = vmax.f32 %v762, %v814
    %v915 = vmax.f32 %v763, %v815
    %v916 = vmax.f32 %v764, %v816
    %v917 = vmax.f32 %v765, %v817
    %v918 = vmax.f32 %v766, %v818
    %v919 = vmax.f32 %v767, %v819
    %v920 = vmax.f32 %v768, %v820
    %v921 = vmax.f32 %v769, %v821
    %v922 = vmax.f32 %v770, %v822
    %v923 = vmax.f32 %v771, %v823
    %v924 = vmax.f32 %v772, %v824
    %v925 = vmax.f32 %v773, %v825
    %v926 = vmax.f32 %v774, %v826
    %v927 = vmax.f32 %v775, %v827
    %v928 = vmax.f32 %v776, %v828
    %v929 = vmax.f32 %v777, %v829
    %v930 = vmax.f32 %v914, %v866
    %v931 = vmax.f32 %v915, %v867
    %v932 = vmax.f32 %v916, %v868
    %v933 = vmax.f32 %v917, %v869
    %v934 = vmax.f32 %v918, %v870
    %v935 = vmax.f32 %v919, %v871
    %v936 = vmax.f32 %v920, %v872
    %v937 = vmax.f32 %v921, %v873
    %v938 = vmax.f32 %v922, %v874
    %v939 = vmax.f32 %v923, %v875
    %v940 = vmax.f32 %v924, %v876
    %v941 = vmax.f32 %v925, %v877
    %v942 = vmax.f32 %v926, %v878
    %v943 = vmax.f32 %v927, %v879
    %v944 = vmax.f32 %v928, %v880
    %v945 = vmax.f32 %v929, %v881
    %vm946 = vcmp.ge.f32.partialorder %v898, 0.0
    %vm947 = vcmp.ge.f32.partialorder %v899, 0.0
    %vm948 = vcmp.ge.f32.partialorder %v900, 0.0
    %vm949 = vcmp.ge.f32.partialorder %v901, 0.0
    %vm950 = vcmp.ge.f32.partialorder %v902, 0.0
    %vm951 = vcmp.ge.f32.partialorder %v903, 0.0
    %vm952 = vcmp.ge.f32.partialorder %v904, 0.0
    %vm953 = vcmp.ge.f32.partialorder %v905, 0.0
    %vm954 = vcmp.ge.f32.partialorder %v906, 0.0
    %vm955 = vcmp.ge.f32.partialorder %v907, 0.0
    %vm956 = vcmp.ge.f32.partialorder %v908, 0.0
    %vm957 = vcmp.ge.f32.partialorder %v909, 0.0
    %vm958 = vcmp.ge.f32.partialorder %v910, 0.0
    %vm959 = vcmp.ge.f32.partialorder %v911, 0.0
    %vm960 = vcmp.ge.f32.partialorder %v912, 0.0
    %vm961 = vcmp.ge.f32.partialorder %v913, 0.0
    %vm962 = vcmp.le.f32.partialorder %v930, 0.0
    %vm963 = vcmp.le.f32.partialorder %v931, 0.0
    %vm964 = vcmp.le.f32.partialorder %v932, 0.0
    %vm965 = vcmp.le.f32.partialorder %v933, 0.0
    %vm966 = vcmp.le.f32.partialorder %v934, 0.0
    %vm967 = vcmp.le.f32.partialorder %v935, 0.0
    %vm968 = vcmp.le.f32.partialorder %v936, 0.0
    %vm969 = vcmp.le.f32.partialorder %v937, 0.0
    %vm970 = vcmp.le.f32.partialorder %v938, 0.0
    %vm971 = vcmp.le.f32.partialorder %v939, 0.0
    %vm972 = vcmp.le.f32.partialorder %v940, 0.0
    %vm973 = vcmp.le.f32.partialorder %v941, 0.0
    %vm974 = vcmp.le.f32.partialorder %v942, 0.0
    %vm975 = vcmp.le.f32.partialorder %v943, 0.0
    %vm976 = vcmp.le.f32.partialorder %v944, 0.0
    %vm977 = vcmp.le.f32.partialorder %v945, 0.0
    %vm978 = vmor %vm946, %vm962
    %vm979 = vmor %vm947, %vm963
    %vm980 = vmor %vm948, %vm964
    %vm981 = vmor %vm949, %vm965
    %vm982 = vmor %vm950, %vm966
    %vm983 = vmor %vm951, %vm967
    %vm984 = vmor %vm952, %vm968
    %vm985 = vmor %vm953, %vm969
    %vm986 = vmor %vm954, %vm970
    %vm987 = vmor %vm955, %vm971
    %vm988 = vmor %vm956, %vm972
    %vm989 = vmor %vm957, %vm973
    %vm990 = vmor %vm958, %vm974
    %vm991 = vmor %vm959, %vm975
    %vm992 = vmor %vm960, %vm976
    %vm993 = vmor %vm961, %vm977
    %vm994 = vmor %vm701, %vm978
    %vm995 = vmor %vm702, %vm979
    %vm996 = vmor %vm703, %vm980
    %vm997 = vmor %vm704, %vm981
    %vm998 = vmor %vm705, %vm982
    %vm999 = vmor %vm706, %vm983
    %vm1000 = vmor %vm707, %vm984
    %vm1001 = vmor %vm708, %vm985
    %vm1002 = vmor %vm709, %vm986
    %vm1003 = vmor %vm710, %vm987
    %vm1004 = vmor %vm711, %vm988
    %vm1005 = vmor %vm712, %vm989
    %vm1006 = vmor %vm713, %vm990
    %vm1007 = vmor %vm714, %vm991
    %vm1008 = vmor %vm715, %vm992
    %vm1009 = vmor %vm716, %vm993
    %s1010 = sld [smem:[#allocation2 + $0x180]]
    %s1011 = sld [smem:[#allocation2 + $0x181]]
    %s1012 = sld [smem:[#allocation2 + $0x182]]
    %s1013 = sld [smem:[#allocation2 + $0x183]]
    %s1014 = sld [smem:[#allocation2 + $0x184]]
    %s1015 = sld [smem:[#allocation2 + $0x185]]
    %s1016 = sld [smem:[#allocation2 + $0x186]]
    %s1017 = sld [smem:[#allocation2 + $0x187]]
    %s1018 = sld [smem:[#allocation2 + $0x188]]
    %v1019 = vstv %s1010
    %v1020 = vmul.f32 %v1019, %v127
    %v1021 = vmul.f32 %v1019, %v128
    %v1022 = vmul.f32 %v1019, %v129
    %v1023 = vmul.f32 %v1019, %v130
    %v1024 = vmul.f32 %v1019, %v131
    %v1025 = vmul.f32 %v1019, %v132
    %v1026 = vmul.f32 %v1019, %v133
    %v1027 = vmul.f32 %v1019, %v134
    %v1028 = vmul.f32 %v1019, %v135
    %v1029 = vmul.f32 %v1019, %v136
    %v1030 = vmul.f32 %v1019, %v137
    %v1031 = vmul.f32 %v1019, %v138
    %v1032 = vmul.f32 %v1019, %v139
    %v1033 = vmul.f32 %v1019, %v140
    %v1034 = vmul.f32 %v1019, %v141
    %v1035 = vmul.f32 %v1019, %v142
    %v1036 = vstv %s1011
    %v1037 = vmul.f32 %v1036, %v146
    %v1038 = vadd.f32 %v1020, %v1037
    %v1039 = vadd.f32 %v1021, %v1037
    %v1040 = vadd.f32 %v1022, %v1037
    %v1041 = vadd.f32 %v1023, %v1037
    %v1042 = vadd.f32 %v1024, %v1037
    %v1043 = vadd.f32 %v1025, %v1037
    %v1044 = vadd.f32 %v1026, %v1037
    %v1045 = vadd.f32 %v1027, %v1037
    %v1046 = vadd.f32 %v1028, %v1037
    %v1047 = vadd.f32 %v1029, %v1037
    %v1048 = vadd.f32 %v1030, %v1037
    %v1049 = vadd.f32 %v1031, %v1037
    %v1050 = vadd.f32 %v1032, %v1037
    %v1051 = vadd.f32 %v1033, %v1037
    %v1052 = vadd.f32 %v1034, %v1037
    %v1053 = vadd.f32 %v1035, %v1037
    %v1054 = vstv %s1012
    %v1055 = vadd.f32 %v1038, %v1054
    %v1056 = vadd.f32 %v1039, %v1054
    %v1057 = vadd.f32 %v1040, %v1054
    %v1058 = vadd.f32 %v1041, %v1054
    %v1059 = vadd.f32 %v1042, %v1054
    %v1060 = vadd.f32 %v1043, %v1054
    %v1061 = vadd.f32 %v1044, %v1054
    %v1062 = vadd.f32 %v1045, %v1054
    %v1063 = vadd.f32 %v1046, %v1054
    %v1064 = vadd.f32 %v1047, %v1054
    %v1065 = vadd.f32 %v1048, %v1054
    %v1066 = vadd.f32 %v1049, %v1054
    %v1067 = vadd.f32 %v1050, %v1054
    %v1068 = vadd.f32 %v1051, %v1054
    %v1069 = vadd.f32 %v1052, %v1054
    %v1070 = vadd.f32 %v1053, %v1054
    %v1071 = vstv %s1013
    %v1072 = vmul.f32 %v1071, %v127
    %v1073 = vmul.f32 %v1071, %v128
    %v1074 = vmul.f32 %v1071, %v129
    %v1075 = vmul.f32 %v1071, %v130
    %v1076 = vmul.f32 %v1071, %v131
    %v1077 = vmul.f32 %v1071, %v132
    %v1078 = vmul.f32 %v1071, %v133
    %v1079 = vmul.f32 %v1071, %v134
    %v1080 = vmul.f32 %v1071, %v135
    %v1081 = vmul.f32 %v1071, %v136
    %v1082 = vmul.f32 %v1071, %v137
    %v1083 = vmul.f32 %v1071, %v138
    %v1084 = vmul.f32 %v1071, %v139
    %v1085 = vmul.f32 %v1071, %v140
    %v1086 = vmul.f32 %v1071, %v141
    %v1087 = vmul.f32 %v1071, %v142
    %v1088 = vstv %s1014
    %v1089 = vmul.f32 %v1088, %v146
    %v1090 = vadd.f32 %v1072, %v1089
    %v1091 = vadd.f32 %v1073, %v1089
    %v1092 = vadd.f32 %v1074, %v1089
    %v1093 = vadd.f32 %v1075, %v1089
    %v1094 = vadd.f32 %v1076, %v1089
    %v1095 = vadd.f32 %v1077, %v1089
    %v1096 = vadd.f32 %v1078, %v1089
    %v1097 = vadd.f32 %v1079, %v1089
    %v1098 = vadd.f32 %v1080, %v1089
    %v1099 = vadd.f32 %v1081, %v1089
    %v1100 = vadd.f32 %v1082, %v1089
    %v1101 = vadd.f32 %v1083, %v1089
    %v1102 = vadd.f32 %v1084, %v1089
    %v1103 = vadd.f32 %v1085, %v1089
    %v1104 = vadd.f32 %v1086, %v1089
    %v1105 = vadd.f32 %v1087, %v1089
    %v1106 = vstv %s1015
    %v1107 = vadd.f32 %v1090, %v1106
    %v1108 = vadd.f32 %v1091, %v1106
    %v1109 = vadd.f32 %v1092, %v1106
    %v1110 = vadd.f32 %v1093, %v1106
    %v1111 = vadd.f32 %v1094, %v1106
    %v1112 = vadd.f32 %v1095, %v1106
    %v1113 = vadd.f32 %v1096, %v1106
    %v1114 = vadd.f32 %v1097, %v1106
    %v1115 = vadd.f32 %v1098, %v1106
    %v1116 = vadd.f32 %v1099, %v1106
    %v1117 = vadd.f32 %v1100, %v1106
    %v1118 = vadd.f32 %v1101, %v1106
    %v1119 = vadd.f32 %v1102, %v1106
    %v1120 = vadd.f32 %v1103, %v1106
    %v1121 = vadd.f32 %v1104, %v1106
    %v1122 = vadd.f32 %v1105, %v1106
    %v1123 = vstv %s1016
    %v1124 = vmul.f32 %v1123, %v127
    %v1125 = vmul.f32 %v1123, %v128
    %v1126 = vmul.f32 %v1123, %v129
    %v1127 = vmul.f32 %v1123, %v130
    %v1128 = vmul.f32 %v1123, %v131
    %v1129 = vmul.f32 %v1123, %v132
    %v1130 = vmul.f32 %v1123, %v133
    %v1131 = vmul.f32 %v1123, %v134
    %v1132 = vmul.f32 %v1123, %v135
    %v1133 = vmul.f32 %v1123, %v136
    %v1134 = vmul.f32 %v1123, %v137
    %v1135 = vmul.f32 %v1123, %v138
    %v1136 = vmul.f32 %v1123, %v139
    %v1137 = vmul.f32 %v1123, %v140
    %v1138 = vmul.f32 %v1123, %v141
    %v1139 = vmul.f32 %v1123, %v142
    %v1140 = vstv %s1017
    %v1141 = vmul.f32 %v1140, %v146
    %v1142 = vadd.f32 %v1124, %v1141
    %v1143 = vadd.f32 %v1125, %v1141
    %v1144 = vadd.f32 %v1126, %v1141
    %v1145 = vadd.f32 %v1127, %v1141
    %v1146 = vadd.f32 %v1128, %v1141
    %v1147 = vadd.f32 %v1129, %v1141
    %v1148 = vadd.f32 %v1130, %v1141
    %v1149 = vadd.f32 %v1131, %v1141
    %v1150 = vadd.f32 %v1132, %v1141
    %v1151 = vadd.f32 %v1133, %v1141
    %v1152 = vadd.f32 %v1134, %v1141
    %v1153 = vadd.f32 %v1135, %v1141
    %v1154 = vadd.f32 %v1136, %v1141
    %v1155 = vadd.f32 %v1137, %v1141
    %v1156 = vadd.f32 %v1138, %v1141
    %v1157 = vadd.f32 %v1139, %v1141
    %v1158 = vstv %s1018
    %v1159 = vadd.f32 %v1142, %v1158
    %v1160 = vadd.f32 %v1143, %v1158
    %v1161 = vadd.f32 %v1144, %v1158
    %v1162 = vadd.f32 %v1145, %v1158
    %v1163 = vadd.f32 %v1146, %v1158
    %v1164 = vadd.f32 %v1147, %v1158
    %v1165 = vadd.f32 %v1148, %v1158
    %v1166 = vadd.f32 %v1149, %v1158
    %v1167 = vadd.f32 %v1150, %v1158
    %v1168 = vadd.f32 %v1151, %v1158
    %v1169 = vadd.f32 %v1152, %v1158
    %v1170 = vadd.f32 %v1153, %v1158
    %v1171 = vadd.f32 %v1154, %v1158
    %v1172 = vadd.f32 %v1155, %v1158
    %v1173 = vadd.f32 %v1156, %v1158
    %v1174 = vadd.f32 %v1157, %v1158
    %v1175 = vmin.f32 %v1055, %v1107
    %v1176 = vmin.f32 %v1056, %v1108
    %v1177 = vmin.f32 %v1057, %v1109
    %v1178 = vmin.f32 %v1058, %v1110
    %v1179 = vmin.f32 %v1059, %v1111
    %v1180 = vmin.f32 %v1060, %v1112
    %v1181 = vmin.f32 %v1061, %v1113
    %v1182 = vmin.f32 %v1062, %v1114
    %v1183 = vmin.f32 %v1063, %v1115
    %v1184 = vmin.f32 %v1064, %v1116
    %v1185 = vmin.f32 %v1065, %v1117
    %v1186 = vmin.f32 %v1066, %v1118
    %v1187 = vmin.f32 %v1067, %v1119
    %v1188 = vmin.f32 %v1068, %v1120
    %v1189 = vmin.f32 %v1069, %v1121
    %v1190 = vmin.f32 %v1070, %v1122
    %v1191 = vmin.f32 %v1175, %v1159
    %v1192 = vmin.f32 %v1176, %v1160
    %v1193 = vmin.f32 %v1177, %v1161
    %v1194 = vmin.f32 %v1178, %v1162
    %v1195 = vmin.f32 %v1179, %v1163
    %v1196 = vmin.f32 %v1180, %v1164
    %v1197 = vmin.f32 %v1181, %v1165
    %v1198 = vmin.f32 %v1182, %v1166
    %v1199 = vmin.f32 %v1183, %v1167
    %v1200 = vmin.f32 %v1184, %v1168
    %v1201 = vmin.f32 %v1185, %v1169
    %v1202 = vmin.f32 %v1186, %v1170
    %v1203 = vmin.f32 %v1187, %v1171
    %v1204 = vmin.f32 %v1188, %v1172
    %v1205 = vmin.f32 %v1189, %v1173
    %v1206 = vmin.f32 %v1190, %v1174
    %v1207 = vmax.f32 %v1055, %v1107
    %v1208 = vmax.f32 %v1056, %v1108
    %v1209 = vmax.f32 %v1057, %v1109
    %v1210 = vmax.f32 %v1058, %v1110
    %v1211 = vmax.f32 %v1059, %v1111
    %v1212 = vmax.f32 %v1060, %v1112
    %v1213 = vmax.f32 %v1061, %v1113
    %v1214 = vmax.f32 %v1062, %v1114
    %v1215 = vmax.f32 %v1063, %v1115
    %v1216 = vmax.f32 %v1064, %v1116
    %v1217 = vmax.f32 %v1065, %v1117
    %v1218 = vmax.f32 %v1066, %v1118
    %v1219 = vmax.f32 %v1067, %v1119
    %v1220 = vmax.f32 %v1068, %v1120
    %v1221 = vmax.f32 %v1069, %v1121
    %v1222 = vmax.f32 %v1070, %v1122
    %v1223 = vmax.f32 %v1207, %v1159
    %v1224 = vmax.f32 %v1208, %v1160
    %v1225 = vmax.f32 %v1209, %v1161
    %v1226 = vmax.f32 %v1210, %v1162
    %v1227 = vmax.f32 %v1211, %v1163
    %v1228 = vmax.f32 %v1212, %v1164
    %v1229 = vmax.f32 %v1213, %v1165
    %v1230 = vmax.f32 %v1214, %v1166
    %v1231 = vmax.f32 %v1215, %v1167
    %v1232 = vmax.f32 %v1216, %v1168
    %v1233 = vmax.f32 %v1217, %v1169
    %v1234 = vmax.f32 %v1218, %v1170
    %v1235 = vmax.f32 %v1219, %v1171
    %v1236 = vmax.f32 %v1220, %v1172
    %v1237 = vmax.f32 %v1221, %v1173
    %v1238 = vmax.f32 %v1222, %v1174
    %vm1239 = vcmp.ge.f32.partialorder %v1191, 0.0
    %vm1240 = vcmp.ge.f32.partialorder %v1192, 0.0
    %vm1241 = vcmp.ge.f32.partialorder %v1193, 0.0
    %vm1242 = vcmp.ge.f32.partialorder %v1194, 0.0
    %vm1243 = vcmp.ge.f32.partialorder %v1195, 0.0
    %vm1244 = vcmp.ge.f32.partialorder %v1196, 0.0
    %vm1245 = vcmp.ge.f32.partialorder %v1197, 0.0
    %vm1246 = vcmp.ge.f32.partialorder %v1198, 0.0
    %vm1247 = vcmp.ge.f32.partialorder %v1199, 0.0
    %vm1248 = vcmp.ge.f32.partialorder %v1200, 0.0
    %vm1249 = vcmp.ge.f32.partialorder %v1201, 0.0
    %vm1250 = vcmp.ge.f32.partialorder %v1202, 0.0
    %vm1251 = vcmp.ge.f32.partialorder %v1203, 0.0
    %vm1252 = vcmp.ge.f32.partialorder %v1204, 0.0
    %vm1253 = vcmp.ge.f32.partialorder %v1205, 0.0
    %vm1254 = vcmp.ge.f32.partialorder %v1206, 0.0
    %vm1255 = vcmp.le.f32.partialorder %v1223, 0.0
    %vm1256 = vcmp.le.f32.partialorder %v1224, 0.0
    %vm1257 = vcmp.le.f32.partialorder %v1225, 0.0
    %vm1258 = vcmp.le.f32.partialorder %v1226, 0.0
    %vm1259 = vcmp.le.f32.partialorder %v1227, 0.0
    %vm1260 = vcmp.le.f32.partialorder %v1228, 0.0
    %vm1261 = vcmp.le.f32.partialorder %v1229, 0.0
    %vm1262 = vcmp.le.f32.partialorder %v1230, 0.0
    %vm1263 = vcmp.le.f32.partialorder %v1231, 0.0
    %vm1264 = vcmp.le.f32.partialorder %v1232, 0.0
    %vm1265 = vcmp.le.f32.partialorder %v1233, 0.0
    %vm1266 = vcmp.le.f32.partialorder %v1234, 0.0
    %vm1267 = vcmp.le.f32.partialorder %v1235, 0.0
    %vm1268 = vcmp.le.f32.partialorder %v1236, 0.0
    %vm1269 = vcmp.le.f32.partialorder %v1237, 0.0
    %vm1270 = vcmp.le.f32.partialorder %v1238, 0.0
    %vm1271 = vmor %vm1239, %vm1255
    %vm1272 = vmor %vm1240, %vm1256
    %vm1273 = vmor %vm1241, %vm1257
    %vm1274 = vmor %vm1242, %vm1258
    %vm1275 = vmor %vm1243, %vm1259
    %vm1276 = vmor %vm1244, %vm1260
    %vm1277 = vmor %vm1245, %vm1261
    %vm1278 = vmor %vm1246, %vm1262
    %vm1279 = vmor %vm1247, %vm1263
    %vm1280 = vmor %vm1248, %vm1264
    %vm1281 = vmor %vm1249, %vm1265
    %vm1282 = vmor %vm1250, %vm1266
    %vm1283 = vmor %vm1251, %vm1267
    %vm1284 = vmor %vm1252, %vm1268
    %vm1285 = vmor %vm1253, %vm1269
    %vm1286 = vmor %vm1254, %vm1270
    %vm1287 = vmor %vm994, %vm1271
    %vm1288 = vmor %vm995, %vm1272
    %vm1289 = vmor %vm996, %vm1273
    %vm1290 = vmor %vm997, %vm1274
    %vm1291 = vmor %vm998, %vm1275
    %vm1292 = vmor %vm999, %vm1276
    %vm1293 = vmor %vm1000, %vm1277
    %vm1294 = vmor %vm1001, %vm1278
    %vm1295 = vmor %vm1002, %vm1279
    %vm1296 = vmor %vm1003, %vm1280
    %vm1297 = vmor %vm1004, %vm1281
    %vm1298 = vmor %vm1005, %vm1282
    %vm1299 = vmor %vm1006, %vm1283
    %vm1300 = vmor %vm1007, %vm1284
    %vm1301 = vmor %vm1008, %vm1285
    %vm1302 = vmor %vm1009, %vm1286
    %s1303 = sld [smem:[#allocation2 + $0x200]]
    %s1304 = sld [smem:[#allocation2 + $0x201]]
    %s1305 = sld [smem:[#allocation2 + $0x202]]
    %s1306 = sld [smem:[#allocation2 + $0x203]]
    %s1307 = sld [smem:[#allocation2 + $0x204]]
    %s1308 = sld [smem:[#allocation2 + $0x205]]
    %s1309 = sld [smem:[#allocation2 + $0x206]]
    %s1310 = sld [smem:[#allocation2 + $0x207]]
    %s1311 = sld [smem:[#allocation2 + $0x208]]
    %v1312 = vstv %s1303
    %v1313 = vmul.f32 %v1312, %v127
    %v1314 = vmul.f32 %v1312, %v128
    %v1315 = vmul.f32 %v1312, %v129
    %v1316 = vmul.f32 %v1312, %v130
    %v1317 = vmul.f32 %v1312, %v131
    %v1318 = vmul.f32 %v1312, %v132
    %v1319 = vmul.f32 %v1312, %v133
    %v1320 = vmul.f32 %v1312, %v134
    %v1321 = vmul.f32 %v1312, %v135
    %v1322 = vmul.f32 %v1312, %v136
    %v1323 = vmul.f32 %v1312, %v137
    %v1324 = vmul.f32 %v1312, %v138
    %v1325 = vmul.f32 %v1312, %v139
    %v1326 = vmul.f32 %v1312, %v140
    %v1327 = vmul.f32 %v1312, %v141
    %v1328 = vmul.f32 %v1312, %v142
    %v1329 = vstv %s1304
    %v1330 = vmul.f32 %v1329, %v146
    %v1331 = vadd.f32 %v1313, %v1330
    %v1332 = vadd.f32 %v1314, %v1330
    %v1333 = vadd.f32 %v1315, %v1330
    %v1334 = vadd.f32 %v1316, %v1330
    %v1335 = vadd.f32 %v1317, %v1330
    %v1336 = vadd.f32 %v1318, %v1330
    %v1337 = vadd.f32 %v1319, %v1330
    %v1338 = vadd.f32 %v1320, %v1330
    %v1339 = vadd.f32 %v1321, %v1330
    %v1340 = vadd.f32 %v1322, %v1330
    %v1341 = vadd.f32 %v1323, %v1330
    %v1342 = vadd.f32 %v1324, %v1330
    %v1343 = vadd.f32 %v1325, %v1330
    %v1344 = vadd.f32 %v1326, %v1330
    %v1345 = vadd.f32 %v1327, %v1330
    %v1346 = vadd.f32 %v1328, %v1330
    %v1347 = vstv %s1305
    %v1348 = vadd.f32 %v1331, %v1347
    %v1349 = vadd.f32 %v1332, %v1347
    %v1350 = vadd.f32 %v1333, %v1347
    %v1351 = vadd.f32 %v1334, %v1347
    %v1352 = vadd.f32 %v1335, %v1347
    %v1353 = vadd.f32 %v1336, %v1347
    %v1354 = vadd.f32 %v1337, %v1347
    %v1355 = vadd.f32 %v1338, %v1347
    %v1356 = vadd.f32 %v1339, %v1347
    %v1357 = vadd.f32 %v1340, %v1347
    %v1358 = vadd.f32 %v1341, %v1347
    %v1359 = vadd.f32 %v1342, %v1347
    %v1360 = vadd.f32 %v1343, %v1347
    %v1361 = vadd.f32 %v1344, %v1347
    %v1362 = vadd.f32 %v1345, %v1347
    %v1363 = vadd.f32 %v1346, %v1347
    %v1364 = vstv %s1306
    %v1365 = vmul.f32 %v1364, %v127
    %v1366 = vmul.f32 %v1364, %v128
    %v1367 = vmul.f32 %v1364, %v129
    %v1368 = vmul.f32 %v1364, %v130
    %v1369 = vmul.f32 %v1364, %v131
    %v1370 = vmul.f32 %v1364, %v132
    %v1371 = vmul.f32 %v1364, %v133
    %v1372 = vmul.f32 %v1364, %v134
    %v1373 = vmul.f32 %v1364, %v135
    %v1374 = vmul.f32 %v1364, %v136
    %v1375 = vmul.f32 %v1364, %v137
    %v1376 = vmul.f32 %v1364, %v138
    %v1377 = vmul.f32 %v1364, %v139
    %v1378 = vmul.f32 %v1364, %v140
    %v1379 = vmul.f32 %v1364, %v141
    %v1380 = vmul.f32 %v1364, %v142
    %v1381 = vstv %s1307
    %v1382 = vmul.f32 %v1381, %v146
    %v1383 = vadd.f32 %v1365, %v1382
    %v1384 = vadd.f32 %v1366, %v1382
    %v1385 = vadd.f32 %v1367, %v1382
    %v1386 = vadd.f32 %v1368, %v1382
    %v1387 = vadd.f32 %v1369, %v1382
    %v1388 = vadd.f32 %v1370, %v1382
    %v1389 = vadd.f32 %v1371, %v1382
    %v1390 = vadd.f32 %v1372, %v1382
    %v1391 = vadd.f32 %v1373, %v1382
    %v1392 = vadd.f32 %v1374, %v1382
    %v1393 = vadd.f32 %v1375, %v1382
    %v1394 = vadd.f32 %v1376, %v1382
    %v1395 = vadd.f32 %v1377, %v1382
    %v1396 = vadd.f32 %v1378, %v1382
    %v1397 = vadd.f32 %v1379, %v1382
    %v1398 = vadd.f32 %v1380, %v1382
    %v1399 = vstv %s1308
    %v1400 = vadd.f32 %v1383, %v1399
    %v1401 = vadd.f32 %v1384, %v1399
    %v1402 = vadd.f32 %v1385, %v1399
    %v1403 = vadd.f32 %v1386, %v1399
    %v1404 = vadd.f32 %v1387, %v1399
    %v1405 = vadd.f32 %v1388, %v1399
    %v1406 = vadd.f32 %v1389, %v1399
    %v1407 = vadd.f32 %v1390, %v1399
    %v1408 = vadd.f32 %v1391, %v1399
    %v1409 = vadd.f32 %v1392, %v1399
    %v1410 = vadd.f32 %v1393, %v1399
    %v1411 = vadd.f32 %v1394, %v1399
    %v1412 = vadd.f32 %v1395, %v1399
    %v1413 = vadd.f32 %v1396, %v1399
    %v1414 = vadd.f32 %v1397, %v1399
    %v1415 = vadd.f32 %v1398, %v1399
    %v1416 = vstv %s1309
    %v1417 = vmul.f32 %v1416, %v127
    %v1418 = vmul.f32 %v1416, %v128
    %v1419 = vmul.f32 %v1416, %v129
    %v1420 = vmul.f32 %v1416, %v130
    %v1421 = vmul.f32 %v1416, %v131
    %v1422 = vmul.f32 %v1416, %v132
    %v1423 = vmul.f32 %v1416, %v133
    %v1424 = vmul.f32 %v1416, %v134
    %v1425 = vmul.f32 %v1416, %v135
    %v1426 = vmul.f32 %v1416, %v136
    %v1427 = vmul.f32 %v1416, %v137
    %v1428 = vmul.f32 %v1416, %v138
    %v1429 = vmul.f32 %v1416, %v139
    %v1430 = vmul.f32 %v1416, %v140
    %v1431 = vmul.f32 %v1416, %v141
    %v1432 = vmul.f32 %v1416, %v142
    %v1433 = vstv %s1310
    %v1434 = vmul.f32 %v1433, %v146
    %v1435 = vadd.f32 %v1417, %v1434
    %v1436 = vadd.f32 %v1418, %v1434
    %v1437 = vadd.f32 %v1419, %v1434
    %v1438 = vadd.f32 %v1420, %v1434
    %v1439 = vadd.f32 %v1421, %v1434
    %v1440 = vadd.f32 %v1422, %v1434
    %v1441 = vadd.f32 %v1423, %v1434
    %v1442 = vadd.f32 %v1424, %v1434
    %v1443 = vadd.f32 %v1425, %v1434
    %v1444 = vadd.f32 %v1426, %v1434
    %v1445 = vadd.f32 %v1427, %v1434
    %v1446 = vadd.f32 %v1428, %v1434
    %v1447 = vadd.f32 %v1429, %v1434
    %v1448 = vadd.f32 %v1430, %v1434
    %v1449 = vadd.f32 %v1431, %v1434
    %v1450 = vadd.f32 %v1432, %v1434
    %v1451 = vstv %s1311
    %v1452 = vadd.f32 %v1435, %v1451
    %v1453 = vadd.f32 %v1436, %v1451
    %v1454 = vadd.f32 %v1437, %v1451
    %v1455 = vadd.f32 %v1438, %v1451
    %v1456 = vadd.f32 %v1439, %v1451
    %v1457 = vadd.f32 %v1440, %v1451
    %v1458 = vadd.f32 %v1441, %v1451
    %v1459 = vadd.f32 %v1442, %v1451
    %v1460 = vadd.f32 %v1443, %v1451
    %v1461 = vadd.f32 %v1444, %v1451
    %v1462 = vadd.f32 %v1445, %v1451
    %v1463 = vadd.f32 %v1446, %v1451
    %v1464 = vadd.f32 %v1447, %v1451
    %v1465 = vadd.f32 %v1448, %v1451
    %v1466 = vadd.f32 %v1449, %v1451
    %v1467 = vadd.f32 %v1450, %v1451
    %v1468 = vmin.f32 %v1348, %v1400
    %v1469 = vmin.f32 %v1349, %v1401
    %v1470 = vmin.f32 %v1350, %v1402
    %v1471 = vmin.f32 %v1351, %v1403
    %v1472 = vmin.f32 %v1352, %v1404
    %v1473 = vmin.f32 %v1353, %v1405
    %v1474 = vmin.f32 %v1354, %v1406
    %v1475 = vmin.f32 %v1355, %v1407
    %v1476 = vmin.f32 %v1356, %v1408
    %v1477 = vmin.f32 %v1357, %v1409
    %v1478 = vmin.f32 %v1358, %v1410
    %v1479 = vmin.f32 %v1359, %v1411
    %v1480 = vmin.f32 %v1360, %v1412
    %v1481 = vmin.f32 %v1361, %v1413
    %v1482 = vmin.f32 %v1362, %v1414
    %v1483 = vmin.f32 %v1363, %v1415
    %v1484 = vmin.f32 %v1468, %v1452
    %v1485 = vmin.f32 %v1469, %v1453
    %v1486 = vmin.f32 %v1470, %v1454
    %v1487 = vmin.f32 %v1471, %v1455
    %v1488 = vmin.f32 %v1472, %v1456
    %v1489 = vmin.f32 %v1473, %v1457
    %v1490 = vmin.f32 %v1474, %v1458
    %v1491 = vmin.f32 %v1475, %v1459
    %v1492 = vmin.f32 %v1476, %v1460
    %v1493 = vmin.f32 %v1477, %v1461
    %v1494 = vmin.f32 %v1478, %v1462
    %v1495 = vmin.f32 %v1479, %v1463
    %v1496 = vmin.f32 %v1480, %v1464
    %v1497 = vmin.f32 %v1481, %v1465
    %v1498 = vmin.f32 %v1482, %v1466
    %v1499 = vmin.f32 %v1483, %v1467
    %v1500 = vmax.f32 %v1348, %v1400
    %v1501 = vmax.f32 %v1349, %v1401
    %v1502 = vmax.f32 %v1350, %v1402
    %v1503 = vmax.f32 %v1351, %v1403
    %v1504 = vmax.f32 %v1352, %v1404
    %v1505 = vmax.f32 %v1353, %v1405
    %v1506 = vmax.f32 %v1354, %v1406
    %v1507 = vmax.f32 %v1355, %v1407
    %v1508 = vmax.f32 %v1356, %v1408
    %v1509 = vmax.f32 %v1357, %v1409
    %v1510 = vmax.f32 %v1358, %v1410
    %v1511 = vmax.f32 %v1359, %v1411
    %v1512 = vmax.f32 %v1360, %v1412
    %v1513 = vmax.f32 %v1361, %v1413
    %v1514 = vmax.f32 %v1362, %v1414
    %v1515 = vmax.f32 %v1363, %v1415
    %v1516 = vmax.f32 %v1500, %v1452
    %v1517 = vmax.f32 %v1501, %v1453
    %v1518 = vmax.f32 %v1502, %v1454
    %v1519 = vmax.f32 %v1503, %v1455
    %v1520 = vmax.f32 %v1504, %v1456
    %v1521 = vmax.f32 %v1505, %v1457
    %v1522 = vmax.f32 %v1506, %v1458
    %v1523 = vmax.f32 %v1507, %v1459
    %v1524 = vmax.f32 %v1508, %v1460
    %v1525 = vmax.f32 %v1509, %v1461
    %v1526 = vmax.f32 %v1510, %v1462
    %v1527 = vmax.f32 %v1511, %v1463
    %v1528 = vmax.f32 %v1512, %v1464
    %v1529 = vmax.f32 %v1513, %v1465
    %v1530 = vmax.f32 %v1514, %v1466
    %v1531 = vmax.f32 %v1515, %v1467
    %vm1532 = vcmp.ge.f32.partialorder %v1484, 0.0
    %vm1533 = vcmp.ge.f32.partialorder %v1485, 0.0
    %vm1534 = vcmp.ge.f32.partialorder %v1486, 0.0
    %vm1535 = vcmp.ge.f32.partialorder %v1487, 0.0
    %vm1536 = vcmp.ge.f32.partialorder %v1488, 0.0
    %vm1537 = vcmp.ge.f32.partialorder %v1489, 0.0
    %vm1538 = vcmp.ge.f32.partialorder %v1490, 0.0
    %vm1539 = vcmp.ge.f32.partialorder %v1491, 0.0
    %vm1540 = vcmp.ge.f32.partialorder %v1492, 0.0
    %vm1541 = vcmp.ge.f32.partialorder %v1493, 0.0
    %vm1542 = vcmp.ge.f32.partialorder %v1494, 0.0
    %vm1543 = vcmp.ge.f32.partialorder %v1495, 0.0
    %vm1544 = vcmp.ge.f32.partialorder %v1496, 0.0
    %vm1545 = vcmp.ge.f32.partialorder %v1497, 0.0
    %vm1546 = vcmp.ge.f32.partialorder %v1498, 0.0
    %vm1547 = vcmp.ge.f32.partialorder %v1499, 0.0
    %vm1548 = vcmp.le.f32.partialorder %v1516, 0.0
    %vm1549 = vcmp.le.f32.partialorder %v1517, 0.0
    %vm1550 = vcmp.le.f32.partialorder %v1518, 0.0
    %vm1551 = vcmp.le.f32.partialorder %v1519, 0.0
    %vm1552 = vcmp.le.f32.partialorder %v1520, 0.0
    %vm1553 = vcmp.le.f32.partialorder %v1521, 0.0
    %vm1554 = vcmp.le.f32.partialorder %v1522, 0.0
    %vm1555 = vcmp.le.f32.partialorder %v1523, 0.0
    %vm1556 = vcmp.le.f32.partialorder %v1524, 0.0
    %vm1557 = vcmp.le.f32.partialorder %v1525, 0.0
    %vm1558 = vcmp.le.f32.partialorder %v1526, 0.0
    %vm1559 = vcmp.le.f32.partialorder %v1527, 0.0
    %vm1560 = vcmp.le.f32.partialorder %v1528, 0.0
    %vm1561 = vcmp.le.f32.partialorder %v1529, 0.0
    %vm1562 = vcmp.le.f32.partialorder %v1530, 0.0
    %vm1563 = vcmp.le.f32.partialorder %v1531, 0.0
    %vm1564 = vmor %vm1532, %vm1548
    %vm1565 = vmor %vm1533, %vm1549
    %vm1566 = vmor %vm1534, %vm1550
    %vm1567 = vmor %vm1535, %vm1551
    %vm1568 = vmor %vm1536, %vm1552
    %vm1569 = vmor %vm1537, %vm1553
    %vm1570 = vmor %vm1538, %vm1554
    %vm1571 = vmor %vm1539, %vm1555
    %vm1572 = vmor %vm1540, %vm1556
    %vm1573 = vmor %vm1541, %vm1557
    %vm1574 = vmor %vm1542, %vm1558
    %vm1575 = vmor %vm1543, %vm1559
    %vm1576 = vmor %vm1544, %vm1560
    %vm1577 = vmor %vm1545, %vm1561
    %vm1578 = vmor %vm1546, %vm1562
    %vm1579 = vmor %vm1547, %vm1563
    %vm1580 = vmor %vm1287, %vm1564
    %vm1581 = vmor %vm1288, %vm1565
    %vm1582 = vmor %vm1289, %vm1566
    %vm1583 = vmor %vm1290, %vm1567
    %vm1584 = vmor %vm1291, %vm1568
    %vm1585 = vmor %vm1292, %vm1569
    %vm1586 = vmor %vm1293, %vm1570
    %vm1587 = vmor %vm1294, %vm1571
    %vm1588 = vmor %vm1295, %vm1572
    %vm1589 = vmor %vm1296, %vm1573
    %vm1590 = vmor %vm1297, %vm1574
    %vm1591 = vmor %vm1298, %vm1575
    %vm1592 = vmor %vm1299, %vm1576
    %vm1593 = vmor %vm1300, %vm1577
    %vm1594 = vmor %vm1301, %vm1578
    %vm1595 = vmor %vm1302, %vm1579
    %s1596 = sld [smem:[#allocation2 + $0x280]]
    %s1597 = sld [smem:[#allocation2 + $0x281]]
    %s1598 = sld [smem:[#allocation2 + $0x282]]
    %s1599 = sld [smem:[#allocation2 + $0x283]]
    %s1600 = sld [smem:[#allocation2 + $0x284]]
    %s1601 = sld [smem:[#allocation2 + $0x285]]
    %s1602 = sld [smem:[#allocation2 + $0x286]]
    %s1603 = sld [smem:[#allocation2 + $0x287]]
    %s1604 = sld [smem:[#allocation2 + $0x288]]
    %v1605 = vstv %s1596
    %v1606 = vmul.f32 %v1605, %v127
    %v1607 = vmul.f32 %v1605, %v128
    %v1608 = vmul.f32 %v1605, %v129
    %v1609 = vmul.f32 %v1605, %v130
    %v1610 = vmul.f32 %v1605, %v131
    %v1611 = vmul.f32 %v1605, %v132
    %v1612 = vmul.f32 %v1605, %v133
    %v1613 = vmul.f32 %v1605, %v134
    %v1614 = vmul.f32 %v1605, %v135
    %v1615 = vmul.f32 %v1605, %v136
    %v1616 = vmul.f32 %v1605, %v137
    %v1617 = vmul.f32 %v1605, %v138
    %v1618 = vmul.f32 %v1605, %v139
    %v1619 = vmul.f32 %v1605, %v140
    %v1620 = vmul.f32 %v1605, %v141
    %v1621 = vmul.f32 %v1605, %v142
    %v1622 = vstv %s1597
    %v1623 = vmul.f32 %v1622, %v146
    %v1624 = vadd.f32 %v1606, %v1623
    %v1625 = vadd.f32 %v1607, %v1623
    %v1626 = vadd.f32 %v1608, %v1623
    %v1627 = vadd.f32 %v1609, %v1623
    %v1628 = vadd.f32 %v1610, %v1623
    %v1629 = vadd.f32 %v1611, %v1623
    %v1630 = vadd.f32 %v1612, %v1623
    %v1631 = vadd.f32 %v1613, %v1623
    %v1632 = vadd.f32 %v1614, %v1623
    %v1633 = vadd.f32 %v1615, %v1623
    %v1634 = vadd.f32 %v1616, %v1623
    %v1635 = vadd.f32 %v1617, %v1623
    %v1636 = vadd.f32 %v1618, %v1623
    %v1637 = vadd.f32 %v1619, %v1623
    %v1638 = vadd.f32 %v1620, %v1623
    %v1639 = vadd.f32 %v1621, %v1623
    %v1640 = vstv %s1598
    %v1641 = vadd.f32 %v1624, %v1640
    %v1642 = vadd.f32 %v1625, %v1640
    %v1643 = vadd.f32 %v1626, %v1640
    %v1644 = vadd.f32 %v1627, %v1640
    %v1645 = vadd.f32 %v1628, %v1640
    %v1646 = vadd.f32 %v1629, %v1640
    %v1647 = vadd.f32 %v1630, %v1640
    %v1648 = vadd.f32 %v1631, %v1640
    %v1649 = vadd.f32 %v1632, %v1640
    %v1650 = vadd.f32 %v1633, %v1640
    %v1651 = vadd.f32 %v1634, %v1640
    %v1652 = vadd.f32 %v1635, %v1640
    %v1653 = vadd.f32 %v1636, %v1640
    %v1654 = vadd.f32 %v1637, %v1640
    %v1655 = vadd.f32 %v1638, %v1640
    %v1656 = vadd.f32 %v1639, %v1640
    %v1657 = vstv %s1599
    %v1658 = vmul.f32 %v1657, %v127
    %v1659 = vmul.f32 %v1657, %v128
    %v1660 = vmul.f32 %v1657, %v129
    %v1661 = vmul.f32 %v1657, %v130
    %v1662 = vmul.f32 %v1657, %v131
    %v1663 = vmul.f32 %v1657, %v132
    %v1664 = vmul.f32 %v1657, %v133
    %v1665 = vmul.f32 %v1657, %v134
    %v1666 = vmul.f32 %v1657, %v135
    %v1667 = vmul.f32 %v1657, %v136
    %v1668 = vmul.f32 %v1657, %v137
    %v1669 = vmul.f32 %v1657, %v138
    %v1670 = vmul.f32 %v1657, %v139
    %v1671 = vmul.f32 %v1657, %v140
    %v1672 = vmul.f32 %v1657, %v141
    %v1673 = vmul.f32 %v1657, %v142
    %v1674 = vstv %s1600
    %v1675 = vmul.f32 %v1674, %v146
    %v1676 = vadd.f32 %v1658, %v1675
    %v1677 = vadd.f32 %v1659, %v1675
    %v1678 = vadd.f32 %v1660, %v1675
    %v1679 = vadd.f32 %v1661, %v1675
    %v1680 = vadd.f32 %v1662, %v1675
    %v1681 = vadd.f32 %v1663, %v1675
    %v1682 = vadd.f32 %v1664, %v1675
    %v1683 = vadd.f32 %v1665, %v1675
    %v1684 = vadd.f32 %v1666, %v1675
    %v1685 = vadd.f32 %v1667, %v1675
    %v1686 = vadd.f32 %v1668, %v1675
    %v1687 = vadd.f32 %v1669, %v1675
    %v1688 = vadd.f32 %v1670, %v1675
    %v1689 = vadd.f32 %v1671, %v1675
    %v1690 = vadd.f32 %v1672, %v1675
    %v1691 = vadd.f32 %v1673, %v1675
    %v1692 = vstv %s1601
    %v1693 = vadd.f32 %v1676, %v1692
    %v1694 = vadd.f32 %v1677, %v1692
    %v1695 = vadd.f32 %v1678, %v1692
    %v1696 = vadd.f32 %v1679, %v1692
    %v1697 = vadd.f32 %v1680, %v1692
    %v1698 = vadd.f32 %v1681, %v1692
    %v1699 = vadd.f32 %v1682, %v1692
    %v1700 = vadd.f32 %v1683, %v1692
    %v1701 = vadd.f32 %v1684, %v1692
    %v1702 = vadd.f32 %v1685, %v1692
    %v1703 = vadd.f32 %v1686, %v1692
    %v1704 = vadd.f32 %v1687, %v1692
    %v1705 = vadd.f32 %v1688, %v1692
    %v1706 = vadd.f32 %v1689, %v1692
    %v1707 = vadd.f32 %v1690, %v1692
    %v1708 = vadd.f32 %v1691, %v1692
    %v1709 = vstv %s1602
    %v1710 = vmul.f32 %v1709, %v127
    %v1711 = vmul.f32 %v1709, %v128
    %v1712 = vmul.f32 %v1709, %v129
    %v1713 = vmul.f32 %v1709, %v130
    %v1714 = vmul.f32 %v1709, %v131
    %v1715 = vmul.f32 %v1709, %v132
    %v1716 = vmul.f32 %v1709, %v133
    %v1717 = vmul.f32 %v1709, %v134
    %v1718 = vmul.f32 %v1709, %v135
    %v1719 = vmul.f32 %v1709, %v136
    %v1720 = vmul.f32 %v1709, %v137
    %v1721 = vmul.f32 %v1709, %v138
    %v1722 = vmul.f32 %v1709, %v139
    %v1723 = vmul.f32 %v1709, %v140
    %v1724 = vmul.f32 %v1709, %v141
    %v1725 = vmul.f32 %v1709, %v142
    %v1726 = vstv %s1603
    %v1727 = vmul.f32 %v1726, %v146
    %v1728 = vadd.f32 %v1710, %v1727
    %v1729 = vadd.f32 %v1711, %v1727
    %v1730 = vadd.f32 %v1712, %v1727
    %v1731 = vadd.f32 %v1713, %v1727
    %v1732 = vadd.f32 %v1714, %v1727
    %v1733 = vadd.f32 %v1715, %v1727
    %v1734 = vadd.f32 %v1716, %v1727
    %v1735 = vadd.f32 %v1717, %v1727
    %v1736 = vadd.f32 %v1718, %v1727
    %v1737 = vadd.f32 %v1719, %v1727
    %v1738 = vadd.f32 %v1720, %v1727
    %v1739 = vadd.f32 %v1721, %v1727
    %v1740 = vadd.f32 %v1722, %v1727
    %v1741 = vadd.f32 %v1723, %v1727
    %v1742 = vadd.f32 %v1724, %v1727
    %v1743 = vadd.f32 %v1725, %v1727
    %v1744 = vstv %s1604
    %v1745 = vadd.f32 %v1728, %v1744
    %v1746 = vadd.f32 %v1729, %v1744
    %v1747 = vadd.f32 %v1730, %v1744
    %v1748 = vadd.f32 %v1731, %v1744
    %v1749 = vadd.f32 %v1732, %v1744
    %v1750 = vadd.f32 %v1733, %v1744
    %v1751 = vadd.f32 %v1734, %v1744
    %v1752 = vadd.f32 %v1735, %v1744
    %v1753 = vadd.f32 %v1736, %v1744
    %v1754 = vadd.f32 %v1737, %v1744
    %v1755 = vadd.f32 %v1738, %v1744
    %v1756 = vadd.f32 %v1739, %v1744
    %v1757 = vadd.f32 %v1740, %v1744
    %v1758 = vadd.f32 %v1741, %v1744
    %v1759 = vadd.f32 %v1742, %v1744
    %v1760 = vadd.f32 %v1743, %v1744
    %v1761 = vmin.f32 %v1641, %v1693
    %v1762 = vmin.f32 %v1642, %v1694
    %v1763 = vmin.f32 %v1643, %v1695
    %v1764 = vmin.f32 %v1644, %v1696
    %v1765 = vmin.f32 %v1645, %v1697
    %v1766 = vmin.f32 %v1646, %v1698
    %v1767 = vmin.f32 %v1647, %v1699
    %v1768 = vmin.f32 %v1648, %v1700
    %v1769 = vmin.f32 %v1649, %v1701
    %v1770 = vmin.f32 %v1650, %v1702
    %v1771 = vmin.f32 %v1651, %v1703
    %v1772 = vmin.f32 %v1652, %v1704
    %v1773 = vmin.f32 %v1653, %v1705
    %v1774 = vmin.f32 %v1654, %v1706
    %v1775 = vmin.f32 %v1655, %v1707
    %v1776 = vmin.f32 %v1656, %v1708
    %v1777 = vmin.f32 %v1761, %v1745
    %v1778 = vmin.f32 %v1762, %v1746
    %v1779 = vmin.f32 %v1763, %v1747
    %v1780 = vmin.f32 %v1764, %v1748
    %v1781 = vmin.f32 %v1765, %v1749
    %v1782 = vmin.f32 %v1766, %v1750
    %v1783 = vmin.f32 %v1767, %v1751
    %v1784 = vmin.f32 %v1768, %v1752
    %v1785 = vmin.f32 %v1769, %v1753
    %v1786 = vmin.f32 %v1770, %v1754
    %v1787 = vmin.f32 %v1771, %v1755
    %v1788 = vmin.f32 %v1772, %v1756
    %v1789 = vmin.f32 %v1773, %v1757
    %v1790 = vmin.f32 %v1774, %v1758
    %v1791 = vmin.f32 %v1775, %v1759
    %v1792 = vmin.f32 %v1776, %v1760
    %v1793 = vmax.f32 %v1641, %v1693
    %v1794 = vmax.f32 %v1642, %v1694
    %v1795 = vmax.f32 %v1643, %v1695
    %v1796 = vmax.f32 %v1644, %v1696
    %v1797 = vmax.f32 %v1645, %v1697
    %v1798 = vmax.f32 %v1646, %v1698
    %v1799 = vmax.f32 %v1647, %v1699
    %v1800 = vmax.f32 %v1648, %v1700
    %v1801 = vmax.f32 %v1649, %v1701
    %v1802 = vmax.f32 %v1650, %v1702
    %v1803 = vmax.f32 %v1651, %v1703
    %v1804 = vmax.f32 %v1652, %v1704
    %v1805 = vmax.f32 %v1653, %v1705
    %v1806 = vmax.f32 %v1654, %v1706
    %v1807 = vmax.f32 %v1655, %v1707
    %v1808 = vmax.f32 %v1656, %v1708
    %v1809 = vmax.f32 %v1793, %v1745
    %v1810 = vmax.f32 %v1794, %v1746
    %v1811 = vmax.f32 %v1795, %v1747
    %v1812 = vmax.f32 %v1796, %v1748
    %v1813 = vmax.f32 %v1797, %v1749
    %v1814 = vmax.f32 %v1798, %v1750
    %v1815 = vmax.f32 %v1799, %v1751
    %v1816 = vmax.f32 %v1800, %v1752
    %v1817 = vmax.f32 %v1801, %v1753
    %v1818 = vmax.f32 %v1802, %v1754
    %v1819 = vmax.f32 %v1803, %v1755
    %v1820 = vmax.f32 %v1804, %v1756
    %v1821 = vmax.f32 %v1805, %v1757
    %v1822 = vmax.f32 %v1806, %v1758
    %v1823 = vmax.f32 %v1807, %v1759
    %v1824 = vmax.f32 %v1808, %v1760
    %vm1825 = vcmp.ge.f32.partialorder %v1777, 0.0
    %vm1826 = vcmp.ge.f32.partialorder %v1778, 0.0
    %vm1827 = vcmp.ge.f32.partialorder %v1779, 0.0
    %vm1828 = vcmp.ge.f32.partialorder %v1780, 0.0
    %vm1829 = vcmp.ge.f32.partialorder %v1781, 0.0
    %vm1830 = vcmp.ge.f32.partialorder %v1782, 0.0
    %vm1831 = vcmp.ge.f32.partialorder %v1783, 0.0
    %vm1832 = vcmp.ge.f32.partialorder %v1784, 0.0
    %vm1833 = vcmp.ge.f32.partialorder %v1785, 0.0
    %vm1834 = vcmp.ge.f32.partialorder %v1786, 0.0
    %vm1835 = vcmp.ge.f32.partialorder %v1787, 0.0
    %vm1836 = vcmp.ge.f32.partialorder %v1788, 0.0
    %vm1837 = vcmp.ge.f32.partialorder %v1789, 0.0
    %vm1838 = vcmp.ge.f32.partialorder %v1790, 0.0
    %vm1839 = vcmp.ge.f32.partialorder %v1791, 0.0
    %vm1840 = vcmp.ge.f32.partialorder %v1792, 0.0
    %vm1841 = vcmp.le.f32.partialorder %v1809, 0.0
    %vm1842 = vcmp.le.f32.partialorder %v1810, 0.0
    %vm1843 = vcmp.le.f32.partialorder %v1811, 0.0
    %vm1844 = vcmp.le.f32.partialorder %v1812, 0.0
    %vm1845 = vcmp.le.f32.partialorder %v1813, 0.0
    %vm1846 = vcmp.le.f32.partialorder %v1814, 0.0
    %vm1847 = vcmp.le.f32.partialorder %v1815, 0.0
    %vm1848 = vcmp.le.f32.partialorder %v1816, 0.0
    %vm1849 = vcmp.le.f32.partialorder %v1817, 0.0
    %vm1850 = vcmp.le.f32.partialorder %v1818, 0.0
    %vm1851 = vcmp.le.f32.partialorder %v1819, 0.0
    %vm1852 = vcmp.le.f32.partialorder %v1820, 0.0
    %vm1853 = vcmp.le.f32.partialorder %v1821, 0.0
    %vm1854 = vcmp.le.f32.partialorder %v1822, 0.0
    %vm1855 = vcmp.le.f32.partialorder %v1823, 0.0
    %vm1856 = vcmp.le.f32.partialorder %v1824, 0.0
    %vm1857 = vmor %vm1825, %vm1841
    %vm1858 = vmor %vm1826, %vm1842
    %vm1859 = vmor %vm1827, %vm1843
    %vm1860 = vmor %vm1828, %vm1844
    %vm1861 = vmor %vm1829, %vm1845
    %vm1862 = vmor %vm1830, %vm1846
    %vm1863 = vmor %vm1831, %vm1847
    %vm1864 = vmor %vm1832, %vm1848
    %vm1865 = vmor %vm1833, %vm1849
    %vm1866 = vmor %vm1834, %vm1850
    %vm1867 = vmor %vm1835, %vm1851
    %vm1868 = vmor %vm1836, %vm1852
    %vm1869 = vmor %vm1837, %vm1853
    %vm1870 = vmor %vm1838, %vm1854
    %vm1871 = vmor %vm1839, %vm1855
    %vm1872 = vmor %vm1840, %vm1856
    %vm1873 = vmor %vm1580, %vm1857
    %vm1874 = vmor %vm1581, %vm1858
    %vm1875 = vmor %vm1582, %vm1859
    %vm1876 = vmor %vm1583, %vm1860
    %vm1877 = vmor %vm1584, %vm1861
    %vm1878 = vmor %vm1585, %vm1862
    %vm1879 = vmor %vm1586, %vm1863
    %vm1880 = vmor %vm1587, %vm1864
    %vm1881 = vmor %vm1588, %vm1865
    %vm1882 = vmor %vm1589, %vm1866
    %vm1883 = vmor %vm1590, %vm1867
    %vm1884 = vmor %vm1591, %vm1868
    %vm1885 = vmor %vm1592, %vm1869
    %vm1886 = vmor %vm1593, %vm1870
    %vm1887 = vmor %vm1594, %vm1871
    %vm1888 = vmor %vm1595, %vm1872
    %s1889 = sld [smem:[#allocation2 + $0x300]]
    %s1890 = sld [smem:[#allocation2 + $0x301]]
    %s1891 = sld [smem:[#allocation2 + $0x302]]
    %s1892 = sld [smem:[#allocation2 + $0x303]]
    %s1893 = sld [smem:[#allocation2 + $0x304]]
    %s1894 = sld [smem:[#allocation2 + $0x305]]
    %s1895 = sld [smem:[#allocation2 + $0x306]]
    %s1896 = sld [smem:[#allocation2 + $0x307]]
    %s1897 = sld [smem:[#allocation2 + $0x308]]
    %v1898 = vstv %s1889
    %v1899 = vmul.f32 %v1898, %v127
    %v1900 = vmul.f32 %v1898, %v128
    %v1901 = vmul.f32 %v1898, %v129
    %v1902 = vmul.f32 %v1898, %v130
    %v1903 = vmul.f32 %v1898, %v131
    %v1904 = vmul.f32 %v1898, %v132
    %v1905 = vmul.f32 %v1898, %v133
    %v1906 = vmul.f32 %v1898, %v134
    %v1907 = vmul.f32 %v1898, %v135
    %v1908 = vmul.f32 %v1898, %v136
    %v1909 = vmul.f32 %v1898, %v137
    %v1910 = vmul.f32 %v1898, %v138
    %v1911 = vmul.f32 %v1898, %v139
    %v1912 = vmul.f32 %v1898, %v140
    %v1913 = vmul.f32 %v1898, %v141
    %v1914 = vmul.f32 %v1898, %v142
    %v1915 = vstv %s1890
    %v1916 = vmul.f32 %v1915, %v146
    %v1917 = vadd.f32 %v1899, %v1916
    %v1918 = vadd.f32 %v1900, %v1916
    %v1919 = vadd.f32 %v1901, %v1916
    %v1920 = vadd.f32 %v1902, %v1916
    %v1921 = vadd.f32 %v1903, %v1916
    %v1922 = vadd.f32 %v1904, %v1916
    %v1923 = vadd.f32 %v1905, %v1916
    %v1924 = vadd.f32 %v1906, %v1916
    %v1925 = vadd.f32 %v1907, %v1916
    %v1926 = vadd.f32 %v1908, %v1916
    %v1927 = vadd.f32 %v1909, %v1916
    %v1928 = vadd.f32 %v1910, %v1916
    %v1929 = vadd.f32 %v1911, %v1916
    %v1930 = vadd.f32 %v1912, %v1916
    %v1931 = vadd.f32 %v1913, %v1916
    %v1932 = vadd.f32 %v1914, %v1916
    %v1933 = vstv %s1891
    %v1934 = vadd.f32 %v1917, %v1933
    %v1935 = vadd.f32 %v1918, %v1933
    %v1936 = vadd.f32 %v1919, %v1933
    %v1937 = vadd.f32 %v1920, %v1933
    %v1938 = vadd.f32 %v1921, %v1933
    %v1939 = vadd.f32 %v1922, %v1933
    %v1940 = vadd.f32 %v1923, %v1933
    %v1941 = vadd.f32 %v1924, %v1933
    %v1942 = vadd.f32 %v1925, %v1933
    %v1943 = vadd.f32 %v1926, %v1933
    %v1944 = vadd.f32 %v1927, %v1933
    %v1945 = vadd.f32 %v1928, %v1933
    %v1946 = vadd.f32 %v1929, %v1933
    %v1947 = vadd.f32 %v1930, %v1933
    %v1948 = vadd.f32 %v1931, %v1933
    %v1949 = vadd.f32 %v1932, %v1933
    %v1950 = vstv %s1892
    %v1951 = vmul.f32 %v1950, %v127
    %v1952 = vmul.f32 %v1950, %v128
    %v1953 = vmul.f32 %v1950, %v129
    %v1954 = vmul.f32 %v1950, %v130
    %v1955 = vmul.f32 %v1950, %v131
    %v1956 = vmul.f32 %v1950, %v132
    %v1957 = vmul.f32 %v1950, %v133
    %v1958 = vmul.f32 %v1950, %v134
    %v1959 = vmul.f32 %v1950, %v135
    %v1960 = vmul.f32 %v1950, %v136
    %v1961 = vmul.f32 %v1950, %v137
    %v1962 = vmul.f32 %v1950, %v138
    %v1963 = vmul.f32 %v1950, %v139
    %v1964 = vmul.f32 %v1950, %v140
    %v1965 = vmul.f32 %v1950, %v141
    %v1966 = vmul.f32 %v1950, %v142
    %v1967 = vstv %s1893
    %v1968 = vmul.f32 %v1967, %v146
    %v1969 = vadd.f32 %v1951, %v1968
    %v1970 = vadd.f32 %v1952, %v1968
    %v1971 = vadd.f32 %v1953, %v1968
    %v1972 = vadd.f32 %v1954, %v1968
    %v1973 = vadd.f32 %v1955, %v1968
    %v1974 = vadd.f32 %v1956, %v1968
    %v1975 = vadd.f32 %v1957, %v1968
    %v1976 = vadd.f32 %v1958, %v1968
    %v1977 = vadd.f32 %v1959, %v1968
    %v1978 = vadd.f32 %v1960, %v1968
    %v1979 = vadd.f32 %v1961, %v1968
    %v1980 = vadd.f32 %v1962, %v1968
    %v1981 = vadd.f32 %v1963, %v1968
    %v1982 = vadd.f32 %v1964, %v1968
    %v1983 = vadd.f32 %v1965, %v1968
    %v1984 = vadd.f32 %v1966, %v1968
    %v1985 = vstv %s1894
    %v1986 = vadd.f32 %v1969, %v1985
    %v1987 = vadd.f32 %v1970, %v1985
    %v1988 = vadd.f32 %v1971, %v1985
    %v1989 = vadd.f32 %v1972, %v1985
    %v1990 = vadd.f32 %v1973, %v1985
    %v1991 = vadd.f32 %v1974, %v1985
    %v1992 = vadd.f32 %v1975, %v1985
    %v1993 = vadd.f32 %v1976, %v1985
    %v1994 = vadd.f32 %v1977, %v1985
    %v1995 = vadd.f32 %v1978, %v1985
    %v1996 = vadd.f32 %v1979, %v1985
    %v1997 = vadd.f32 %v1980, %v1985
    %v1998 = vadd.f32 %v1981, %v1985
    %v1999 = vadd.f32 %v1982, %v1985
    %v2000 = vadd.f32 %v1983, %v1985
    %v2001 = vadd.f32 %v1984, %v1985
    %v2002 = vstv %s1895
    %v2003 = vmul.f32 %v2002, %v127
    %v2004 = vmul.f32 %v2002, %v128
    %v2005 = vmul.f32 %v2002, %v129
    %v2006 = vmul.f32 %v2002, %v130
    %v2007 = vmul.f32 %v2002, %v131
    %v2008 = vmul.f32 %v2002, %v132
    %v2009 = vmul.f32 %v2002, %v133
    %v2010 = vmul.f32 %v2002, %v134
    %v2011 = vmul.f32 %v2002, %v135
    %v2012 = vmul.f32 %v2002, %v136
    %v2013 = vmul.f32 %v2002, %v137
    %v2014 = vmul.f32 %v2002, %v138
    %v2015 = vmul.f32 %v2002, %v139
    %v2016 = vmul.f32 %v2002, %v140
    %v2017 = vmul.f32 %v2002, %v141
    %v2018 = vmul.f32 %v2002, %v142
    %v2019 = vstv %s1896
    %v2020 = vmul.f32 %v2019, %v146
    %v2021 = vadd.f32 %v2003, %v2020
    %v2022 = vadd.f32 %v2004, %v2020
    %v2023 = vadd.f32 %v2005, %v2020
    %v2024 = vadd.f32 %v2006, %v2020
    %v2025 = vadd.f32 %v2007, %v2020
    %v2026 = vadd.f32 %v2008, %v2020
    %v2027 = vadd.f32 %v2009, %v2020
    %v2028 = vadd.f32 %v2010, %v2020
    %v2029 = vadd.f32 %v2011, %v2020
    %v2030 = vadd.f32 %v2012, %v2020
    %v2031 = vadd.f32 %v2013, %v2020
    %v2032 = vadd.f32 %v2014, %v2020
    %v2033 = vadd.f32 %v2015, %v2020
    %v2034 = vadd.f32 %v2016, %v2020
    %v2035 = vadd.f32 %v2017, %v2020
    %v2036 = vadd.f32 %v2018, %v2020
    %v2037 = vstv %s1897
    %v2038 = vadd.f32 %v2021, %v2037
    %v2039 = vadd.f32 %v2022, %v2037
    %v2040 = vadd.f32 %v2023, %v2037
    %v2041 = vadd.f32 %v2024, %v2037
    %v2042 = vadd.f32 %v2025, %v2037
    %v2043 = vadd.f32 %v2026, %v2037
    %v2044 = vadd.f32 %v2027, %v2037
    %v2045 = vadd.f32 %v2028, %v2037
    %v2046 = vadd.f32 %v2029, %v2037
    %v2047 = vadd.f32 %v2030, %v2037
    %v2048 = vadd.f32 %v2031, %v2037
    %v2049 = vadd.f32 %v2032, %v2037
    %v2050 = vadd.f32 %v2033, %v2037
    %v2051 = vadd.f32 %v2034, %v2037
    %v2052 = vadd.f32 %v2035, %v2037
    %v2053 = vadd.f32 %v2036, %v2037
    %v2054 = vmin.f32 %v1934, %v1986
    %v2055 = vmin.f32 %v1935, %v1987
    %v2056 = vmin.f32 %v1936, %v1988
    %v2057 = vmin.f32 %v1937, %v1989
    %v2058 = vmin.f32 %v1938, %v1990
    %v2059 = vmin.f32 %v1939, %v1991
    %v2060 = vmin.f32 %v1940, %v1992
    %v2061 = vmin.f32 %v1941, %v1993
    %v2062 = vmin.f32 %v1942, %v1994
    %v2063 = vmin.f32 %v1943, %v1995
    %v2064 = vmin.f32 %v1944, %v1996
    %v2065 = vmin.f32 %v1945, %v1997
    %v2066 = vmin.f32 %v1946, %v1998
    %v2067 = vmin.f32 %v1947, %v1999
    %v2068 = vmin.f32 %v1948, %v2000
    %v2069 = vmin.f32 %v1949, %v2001
    %v2070 = vmin.f32 %v2054, %v2038
    %v2071 = vmin.f32 %v2055, %v2039
    %v2072 = vmin.f32 %v2056, %v2040
    %v2073 = vmin.f32 %v2057, %v2041
    %v2074 = vmin.f32 %v2058, %v2042
    %v2075 = vmin.f32 %v2059, %v2043
    %v2076 = vmin.f32 %v2060, %v2044
    %v2077 = vmin.f32 %v2061, %v2045
    %v2078 = vmin.f32 %v2062, %v2046
    %v2079 = vmin.f32 %v2063, %v2047
    %v2080 = vmin.f32 %v2064, %v2048
    %v2081 = vmin.f32 %v2065, %v2049
    %v2082 = vmin.f32 %v2066, %v2050
    %v2083 = vmin.f32 %v2067, %v2051
    %v2084 = vmin.f32 %v2068, %v2052
    %v2085 = vmin.f32 %v2069, %v2053
    %v2086 = vmax.f32 %v1934, %v1986
    %v2087 = vmax.f32 %v1935, %v1987
    %v2088 = vmax.f32 %v1936, %v1988
    %v2089 = vmax.f32 %v1937, %v1989
    %v2090 = vmax.f32 %v1938, %v1990
    %v2091 = vmax.f32 %v1939, %v1991
    %v2092 = vmax.f32 %v1940, %v1992
    %v2093 = vmax.f32 %v1941, %v1993
    %v2094 = vmax.f32 %v1942, %v1994
    %v2095 = vmax.f32 %v1943, %v1995
    %v2096 = vmax.f32 %v1944, %v1996
    %v2097 = vmax.f32 %v1945, %v1997
    %v2098 = vmax.f32 %v1946, %v1998
    %v2099 = vmax.f32 %v1947, %v1999
    %v2100 = vmax.f32 %v1948, %v2000
    %v2101 = vmax.f32 %v1949, %v2001
    %v2102 = vmax.f32 %v2086, %v2038
    %v2103 = vmax.f32 %v2087, %v2039
    %v2104 = vmax.f32 %v2088, %v2040
    %v2105 = vmax.f32 %v2089, %v2041
    %v2106 = vmax.f32 %v2090, %v2042
    %v2107 = vmax.f32 %v2091, %v2043
    %v2108 = vmax.f32 %v2092, %v2044
    %v2109 = vmax.f32 %v2093, %v2045
    %v2110 = vmax.f32 %v2094, %v2046
    %v2111 = vmax.f32 %v2095, %v2047
    %v2112 = vmax.f32 %v2096, %v2048
    %v2113 = vmax.f32 %v2097, %v2049
    %v2114 = vmax.f32 %v2098, %v2050
    %v2115 = vmax.f32 %v2099, %v2051
    %v2116 = vmax.f32 %v2100, %v2052
    %v2117 = vmax.f32 %v2101, %v2053
    %vm2118 = vcmp.ge.f32.partialorder %v2070, 0.0
    %vm2119 = vcmp.ge.f32.partialorder %v2071, 0.0
    %vm2120 = vcmp.ge.f32.partialorder %v2072, 0.0
    %vm2121 = vcmp.ge.f32.partialorder %v2073, 0.0
    %vm2122 = vcmp.ge.f32.partialorder %v2074, 0.0
    %vm2123 = vcmp.ge.f32.partialorder %v2075, 0.0
    %vm2124 = vcmp.ge.f32.partialorder %v2076, 0.0
    %vm2125 = vcmp.ge.f32.partialorder %v2077, 0.0
    %vm2126 = vcmp.ge.f32.partialorder %v2078, 0.0
    %vm2127 = vcmp.ge.f32.partialorder %v2079, 0.0
    %vm2128 = vcmp.ge.f32.partialorder %v2080, 0.0
    %vm2129 = vcmp.ge.f32.partialorder %v2081, 0.0
    %vm2130 = vcmp.ge.f32.partialorder %v2082, 0.0
    %vm2131 = vcmp.ge.f32.partialorder %v2083, 0.0
    %vm2132 = vcmp.ge.f32.partialorder %v2084, 0.0
    %vm2133 = vcmp.ge.f32.partialorder %v2085, 0.0
    %vm2134 = vcmp.le.f32.partialorder %v2102, 0.0
    %vm2135 = vcmp.le.f32.partialorder %v2103, 0.0
    %vm2136 = vcmp.le.f32.partialorder %v2104, 0.0
    %vm2137 = vcmp.le.f32.partialorder %v2105, 0.0
    %vm2138 = vcmp.le.f32.partialorder %v2106, 0.0
    %vm2139 = vcmp.le.f32.partialorder %v2107, 0.0
    %vm2140 = vcmp.le.f32.partialorder %v2108, 0.0
    %vm2141 = vcmp.le.f32.partialorder %v2109, 0.0
    %vm2142 = vcmp.le.f32.partialorder %v2110, 0.0
    %vm2143 = vcmp.le.f32.partialorder %v2111, 0.0
    %vm2144 = vcmp.le.f32.partialorder %v2112, 0.0
    %vm2145 = vcmp.le.f32.partialorder %v2113, 0.0
    %vm2146 = vcmp.le.f32.partialorder %v2114, 0.0
    %vm2147 = vcmp.le.f32.partialorder %v2115, 0.0
    %vm2148 = vcmp.le.f32.partialorder %v2116, 0.0
    %vm2149 = vcmp.le.f32.partialorder %v2117, 0.0
    %vm2150 = vmor %vm2118, %vm2134
    %vm2151 = vmor %vm2119, %vm2135
    %vm2152 = vmor %vm2120, %vm2136
    %vm2153 = vmor %vm2121, %vm2137
    %vm2154 = vmor %vm2122, %vm2138
    %vm2155 = vmor %vm2123, %vm2139
    %vm2156 = vmor %vm2124, %vm2140
    %vm2157 = vmor %vm2125, %vm2141
    %vm2158 = vmor %vm2126, %vm2142
    %vm2159 = vmor %vm2127, %vm2143
    %vm2160 = vmor %vm2128, %vm2144
    %vm2161 = vmor %vm2129, %vm2145
    %vm2162 = vmor %vm2130, %vm2146
    %vm2163 = vmor %vm2131, %vm2147
    %vm2164 = vmor %vm2132, %vm2148
    %vm2165 = vmor %vm2133, %vm2149
    %vm2166 = vmor %vm1873, %vm2150
    %vm2167 = vmor %vm1874, %vm2151
    %vm2168 = vmor %vm1875, %vm2152
    %vm2169 = vmor %vm1876, %vm2153
    %vm2170 = vmor %vm1877, %vm2154
    %vm2171 = vmor %vm1878, %vm2155
    %vm2172 = vmor %vm1879, %vm2156
    %vm2173 = vmor %vm1880, %vm2157
    %vm2174 = vmor %vm1881, %vm2158
    %vm2175 = vmor %vm1882, %vm2159
    %vm2176 = vmor %vm1883, %vm2160
    %vm2177 = vmor %vm1884, %vm2161
    %vm2178 = vmor %vm1885, %vm2162
    %vm2179 = vmor %vm1886, %vm2163
    %vm2180 = vmor %vm1887, %vm2164
    %vm2181 = vmor %vm1888, %vm2165
    %s2182 = sld [smem:[#allocation2 + $0x380]]
    %s2183 = sld [smem:[#allocation2 + $0x381]]
    %s2184 = sld [smem:[#allocation2 + $0x382]]
    %s2185 = sld [smem:[#allocation2 + $0x383]]
    %s2186 = sld [smem:[#allocation2 + $0x384]]
    %s2187 = sld [smem:[#allocation2 + $0x385]]
    %s2188 = sld [smem:[#allocation2 + $0x386]]
    %s2189 = sld [smem:[#allocation2 + $0x387]]
    %s2190 = sld [smem:[#allocation2 + $0x388]]
    %v2191 = vstv %s2182
    %v2192 = vmul.f32 %v2191, %v127
    %v2193 = vmul.f32 %v2191, %v128
    %v2194 = vmul.f32 %v2191, %v129
    %v2195 = vmul.f32 %v2191, %v130
    %v2196 = vmul.f32 %v2191, %v131
    %v2197 = vmul.f32 %v2191, %v132
    %v2198 = vmul.f32 %v2191, %v133
    %v2199 = vmul.f32 %v2191, %v134
    %v2200 = vmul.f32 %v2191, %v135
    %v2201 = vmul.f32 %v2191, %v136
    %v2202 = vmul.f32 %v2191, %v137
    %v2203 = vmul.f32 %v2191, %v138
    %v2204 = vmul.f32 %v2191, %v139
    %v2205 = vmul.f32 %v2191, %v140
    %v2206 = vmul.f32 %v2191, %v141
    %v2207 = vmul.f32 %v2191, %v142
    %v2208 = vstv %s2183
    %v2209 = vmul.f32 %v2208, %v146
    %v2210 = vadd.f32 %v2192, %v2209
    %v2211 = vadd.f32 %v2193, %v2209
    %v2212 = vadd.f32 %v2194, %v2209
    %v2213 = vadd.f32 %v2195, %v2209
    %v2214 = vadd.f32 %v2196, %v2209
    %v2215 = vadd.f32 %v2197, %v2209
    %v2216 = vadd.f32 %v2198, %v2209
    %v2217 = vadd.f32 %v2199, %v2209
    %v2218 = vadd.f32 %v2200, %v2209
    %v2219 = vadd.f32 %v2201, %v2209
    %v2220 = vadd.f32 %v2202, %v2209
    %v2221 = vadd.f32 %v2203, %v2209
    %v2222 = vadd.f32 %v2204, %v2209
    %v2223 = vadd.f32 %v2205, %v2209
    %v2224 = vadd.f32 %v2206, %v2209
    %v2225 = vadd.f32 %v2207, %v2209
    %v2226 = vstv %s2184
    %v2227 = vadd.f32 %v2210, %v2226
    %v2228 = vadd.f32 %v2211, %v2226
    %v2229 = vadd.f32 %v2212, %v2226
    %v2230 = vadd.f32 %v2213, %v2226
    %v2231 = vadd.f32 %v2214, %v2226
    %v2232 = vadd.f32 %v2215, %v2226
    %v2233 = vadd.f32 %v2216, %v2226
    %v2234 = vadd.f32 %v2217, %v2226
    %v2235 = vadd.f32 %v2218, %v2226
    %v2236 = vadd.f32 %v2219, %v2226
    %v2237 = vadd.f32 %v2220, %v2226
    %v2238 = vadd.f32 %v2221, %v2226
    %v2239 = vadd.f32 %v2222, %v2226
    %v2240 = vadd.f32 %v2223, %v2226
    %v2241 = vadd.f32 %v2224, %v2226
    %v2242 = vadd.f32 %v2225, %v2226
    %v2243 = vstv %s2185
    %v2244 = vmul.f32 %v2243, %v127
    %v2245 = vmul.f32 %v2243, %v128
    %v2246 = vmul.f32 %v2243, %v129
    %v2247 = vmul.f32 %v2243, %v130
    %v2248 = vmul.f32 %v2243, %v131
    %v2249 = vmul.f32 %v2243, %v132
    %v2250 = vmul.f32 %v2243, %v133
    %v2251 = vmul.f32 %v2243, %v134
    %v2252 = vmul.f32 %v2243, %v135
    %v2253 = vmul.f32 %v2243, %v136
    %v2254 = vmul.f32 %v2243, %v137
    %v2255 = vmul.f32 %v2243, %v138
    %v2256 = vmul.f32 %v2243, %v139
    %v2257 = vmul.f32 %v2243, %v140
    %v2258 = vmul.f32 %v2243, %v141
    %v2259 = vmul.f32 %v2243, %v142
    %v2260 = vstv %s2186
    %v2261 = vmul.f32 %v2260, %v146
    %v2262 = vadd.f32 %v2244, %v2261
    %v2263 = vadd.f32 %v2245, %v2261
    %v2264 = vadd.f32 %v2246, %v2261
    %v2265 = vadd.f32 %v2247, %v2261
    %v2266 = vadd.f32 %v2248, %v2261
    %v2267 = vadd.f32 %v2249, %v2261
    %v2268 = vadd.f32 %v2250, %v2261
    %v2269 = vadd.f32 %v2251, %v2261
    %v2270 = vadd.f32 %v2252, %v2261
    %v2271 = vadd.f32 %v2253, %v2261
    %v2272 = vadd.f32 %v2254, %v2261
    %v2273 = vadd.f32 %v2255, %v2261
    %v2274 = vadd.f32 %v2256, %v2261
    %v2275 = vadd.f32 %v2257, %v2261
    %v2276 = vadd.f32 %v2258, %v2261
    %v2277 = vadd.f32 %v2259, %v2261
    %v2278 = vstv %s2187
    %v2279 = vadd.f32 %v2262, %v2278
    %v2280 = vadd.f32 %v2263, %v2278
    %v2281 = vadd.f32 %v2264, %v2278
    %v2282 = vadd.f32 %v2265, %v2278
    %v2283 = vadd.f32 %v2266, %v2278
    %v2284 = vadd.f32 %v2267, %v2278
    %v2285 = vadd.f32 %v2268, %v2278
    %v2286 = vadd.f32 %v2269, %v2278
    %v2287 = vadd.f32 %v2270, %v2278
    %v2288 = vadd.f32 %v2271, %v2278
    %v2289 = vadd.f32 %v2272, %v2278
    %v2290 = vadd.f32 %v2273, %v2278
    %v2291 = vadd.f32 %v2274, %v2278
    %v2292 = vadd.f32 %v2275, %v2278
    %v2293 = vadd.f32 %v2276, %v2278
    %v2294 = vadd.f32 %v2277, %v2278
    %v2295 = vstv %s2188
    %v2296 = vmul.f32 %v2295, %v127
    %v2297 = vmul.f32 %v2295, %v128
    %v2298 = vmul.f32 %v2295, %v129
    %v2299 = vmul.f32 %v2295, %v130
    %v2300 = vmul.f32 %v2295, %v131
    %v2301 = vmul.f32 %v2295, %v132
    %v2302 = vmul.f32 %v2295, %v133
    %v2303 = vmul.f32 %v2295, %v134
    %v2304 = vmul.f32 %v2295, %v135
    %v2305 = vmul.f32 %v2295, %v136
    %v2306 = vmul.f32 %v2295, %v137
    %v2307 = vmul.f32 %v2295, %v138
    %v2308 = vmul.f32 %v2295, %v139
    %v2309 = vmul.f32 %v2295, %v140
    %v2310 = vmul.f32 %v2295, %v141
    %v2311 = vmul.f32 %v2295, %v142
    %v2312 = vstv %s2189
    %v2313 = vmul.f32 %v2312, %v146
    %v2314 = vadd.f32 %v2296, %v2313
    %v2315 = vadd.f32 %v2297, %v2313
    %v2316 = vadd.f32 %v2298, %v2313
    %v2317 = vadd.f32 %v2299, %v2313
    %v2318 = vadd.f32 %v2300, %v2313
    %v2319 = vadd.f32 %v2301, %v2313
    %v2320 = vadd.f32 %v2302, %v2313
    %v2321 = vadd.f32 %v2303, %v2313
    %v2322 = vadd.f32 %v2304, %v2313
    %v2323 = vadd.f32 %v2305, %v2313
    %v2324 = vadd.f32 %v2306, %v2313
    %v2325 = vadd.f32 %v2307, %v2313
    %v2326 = vadd.f32 %v2308, %v2313
    %v2327 = vadd.f32 %v2309, %v2313
    %v2328 = vadd.f32 %v2310, %v2313
    %v2329 = vadd.f32 %v2311, %v2313
    %v2330 = vstv %s2190
    %v2331 = vadd.f32 %v2314, %v2330
    %v2332 = vadd.f32 %v2315, %v2330
    %v2333 = vadd.f32 %v2316, %v2330
    %v2334 = vadd.f32 %v2317, %v2330
    %v2335 = vadd.f32 %v2318, %v2330
    %v2336 = vadd.f32 %v2319, %v2330
    %v2337 = vadd.f32 %v2320, %v2330
    %v2338 = vadd.f32 %v2321, %v2330
    %v2339 = vadd.f32 %v2322, %v2330
    %v2340 = vadd.f32 %v2323, %v2330
    %v2341 = vadd.f32 %v2324, %v2330
    %v2342 = vadd.f32 %v2325, %v2330
    %v2343 = vadd.f32 %v2326, %v2330
    %v2344 = vadd.f32 %v2327, %v2330
    %v2345 = vadd.f32 %v2328, %v2330
    %v2346 = vadd.f32 %v2329, %v2330
    %v2347 = vmin.f32 %v2227, %v2279
    %v2348 = vmin.f32 %v2228, %v2280
    %v2349 = vmin.f32 %v2229, %v2281
    %v2350 = vmin.f32 %v2230, %v2282
    %v2351 = vmin.f32 %v2231, %v2283
    %v2352 = vmin.f32 %v2232, %v2284
    %v2353 = vmin.f32 %v2233, %v2285
    %v2354 = vmin.f32 %v2234, %v2286
    %v2355 = vmin.f32 %v2235, %v2287
    %v2356 = vmin.f32 %v2236, %v2288
    %v2357 = vmin.f32 %v2237, %v2289
    %v2358 = vmin.f32 %v2238, %v2290
    %v2359 = vmin.f32 %v2239, %v2291
    %v2360 = vmin.f32 %v2240, %v2292
    %v2361 = vmin.f32 %v2241, %v2293
    %v2362 = vmin.f32 %v2242, %v2294
    %v2363 = vmin.f32 %v2347, %v2331
    %v2364 = vmin.f32 %v2348, %v2332
    %v2365 = vmin.f32 %v2349, %v2333
    %v2366 = vmin.f32 %v2350, %v2334
    %v2367 = vmin.f32 %v2351, %v2335
    %v2368 = vmin.f32 %v2352, %v2336
    %v2369 = vmin.f32 %v2353, %v2337
    %v2370 = vmin.f32 %v2354, %v2338
    %v2371 = vmin.f32 %v2355, %v2339
    %v2372 = vmin.f32 %v2356, %v2340
    %v2373 = vmin.f32 %v2357, %v2341
    %v2374 = vmin.f32 %v2358, %v2342
    %v2375 = vmin.f32 %v2359, %v2343
    %v2376 = vmin.f32 %v2360, %v2344
    %v2377 = vmin.f32 %v2361, %v2345
    %v2378 = vmin.f32 %v2362, %v2346
    %v2379 = vmax.f32 %v2227, %v2279
    %v2380 = vmax.f32 %v2228, %v2280
    %v2381 = vmax.f32 %v2229, %v2281
    %v2382 = vmax.f32 %v2230, %v2282
    %v2383 = vmax.f32 %v2231, %v2283
    %v2384 = vmax.f32 %v2232, %v2284
    %v2385 = vmax.f32 %v2233, %v2285
    %v2386 = vmax.f32 %v2234, %v2286
    %v2387 = vmax.f32 %v2235, %v2287
    %v2388 = vmax.f32 %v2236, %v2288
    %v2389 = vmax.f32 %v2237, %v2289
    %v2390 = vmax.f32 %v2238, %v2290
    %v2391 = vmax.f32 %v2239, %v2291
    %v2392 = vmax.f32 %v2240, %v2292
    %v2393 = vmax.f32 %v2241, %v2293
    %v2394 = vmax.f32 %v2242, %v2294
    %v2395 = vmax.f32 %v2379, %v2331
    %v2396 = vmax.f32 %v2380, %v2332
    %v2397 = vmax.f32 %v2381, %v2333
    %v2398 = vmax.f32 %v2382, %v2334
    %v2399 = vmax.f32 %v2383, %v2335
    %v2400 = vmax.f32 %v2384, %v2336
    %v2401 = vmax.f32 %v2385, %v2337
    %v2402 = vmax.f32 %v2386, %v2338
    %v2403 = vmax.f32 %v2387, %v2339
    %v2404 = vmax.f32 %v2388, %v2340
    %v2405 = vmax.f32 %v2389, %v2341
    %v2406 = vmax.f32 %v2390, %v2342
    %v2407 = vmax.f32 %v2391, %v2343
    %v2408 = vmax.f32 %v2392, %v2344
    %v2409 = vmax.f32 %v2393, %v2345
    %v2410 = vmax.f32 %v2394, %v2346
    %vm2411 = vcmp.ge.f32.partialorder %v2363, 0.0
    %vm2412 = vcmp.ge.f32.partialorder %v2364, 0.0
    %vm2413 = vcmp.ge.f32.partialorder %v2365, 0.0
    %vm2414 = vcmp.ge.f32.partialorder %v2366, 0.0
    %vm2415 = vcmp.ge.f32.partialorder %v2367, 0.0
    %vm2416 = vcmp.ge.f32.partialorder %v2368, 0.0
    %vm2417 = vcmp.ge.f32.partialorder %v2369, 0.0
    %vm2418 = vcmp.ge.f32.partialorder %v2370, 0.0
    %vm2419 = vcmp.ge.f32.partialorder %v2371, 0.0
    %vm2420 = vcmp.ge.f32.partialorder %v2372, 0.0
    %vm2421 = vcmp.ge.f32.partialorder %v2373, 0.0
    %vm2422 = vcmp.ge.f32.partialorder %v2374, 0.0
    %vm2423 = vcmp.ge.f32.partialorder %v2375, 0.0
    %vm2424 = vcmp.ge.f32.partialorder %v2376, 0.0
    %vm2425 = vcmp.ge.f32.partialorder %v2377, 0.0
    %vm2426 = vcmp.ge.f32.partialorder %v2378, 0.0
    %vm2427 = vcmp.le.f32.partialorder %v2395, 0.0
    %vm2428 = vcmp.le.f32.partialorder %v2396, 0.0
    %vm2429 = vcmp.le.f32.partialorder %v2397, 0.0
    %vm2430 = vcmp.le.f32.partialorder %v2398, 0.0
    %vm2431 = vcmp.le.f32.partialorder %v2399, 0.0
    %vm2432 = vcmp.le.f32.partialorder %v2400, 0.0
    %vm2433 = vcmp.le.f32.partialorder %v2401, 0.0
    %vm2434 = vcmp.le.f32.partialorder %v2402, 0.0
    %vm2435 = vcmp.le.f32.partialorder %v2403, 0.0
    %vm2436 = vcmp.le.f32.partialorder %v2404, 0.0
    %vm2437 = vcmp.le.f32.partialorder %v2405, 0.0
    %vm2438 = vcmp.le.f32.partialorder %v2406, 0.0
    %vm2439 = vcmp.le.f32.partialorder %v2407, 0.0
    %vm2440 = vcmp.le.f32.partialorder %v2408, 0.0
    %vm2441 = vcmp.le.f32.partialorder %v2409, 0.0
    %vm2442 = vcmp.le.f32.partialorder %v2410, 0.0
    %vm2443 = vmor %vm2411, %vm2427
    %vm2444 = vmor %vm2412, %vm2428
    %vm2445 = vmor %vm2413, %vm2429
    %vm2446 = vmor %vm2414, %vm2430
    %vm2447 = vmor %vm2415, %vm2431
    %vm2448 = vmor %vm2416, %vm2432
    %vm2449 = vmor %vm2417, %vm2433
    %vm2450 = vmor %vm2418, %vm2434
    %vm2451 = vmor %vm2419, %vm2435
    %vm2452 = vmor %vm2420, %vm2436
    %vm2453 = vmor %vm2421, %vm2437
    %vm2454 = vmor %vm2422, %vm2438
    %vm2455 = vmor %vm2423, %vm2439
    %vm2456 = vmor %vm2424, %vm2440
    %vm2457 = vmor %vm2425, %vm2441
    %vm2458 = vmor %vm2426, %vm2442
    %vm2459 = vmor %vm2166, %vm2443
    %vm2460 = vmor %vm2167, %vm2444
    %vm2461 = vmor %vm2168, %vm2445
    %vm2462 = vmor %vm2169, %vm2446
    %vm2463 = vmor %vm2170, %vm2447
    %vm2464 = vmor %vm2171, %vm2448
    %vm2465 = vmor %vm2172, %vm2449
    %vm2466 = vmor %vm2173, %vm2450
    %vm2467 = vmor %vm2174, %vm2451
    %vm2468 = vmor %vm2175, %vm2452
    %vm2469 = vmor %vm2176, %vm2453
    %vm2470 = vmor %vm2177, %vm2454
    %vm2471 = vmor %vm2178, %vm2455
    %vm2472 = vmor %vm2179, %vm2456
    %vm2473 = vmor %vm2180, %vm2457
    %vm2474 = vmor %vm2181, %vm2458
    %s2475 = sld [smem:[#allocation2 + $0x400]]
    %s2476 = sld [smem:[#allocation2 + $0x401]]
    %s2477 = sld [smem:[#allocation2 + $0x402]]
    %s2478 = sld [smem:[#allocation2 + $0x403]]
    %s2479 = sld [smem:[#allocation2 + $0x404]]
    %s2480 = sld [smem:[#allocation2 + $0x405]]
    %s2481 = sld [smem:[#allocation2 + $0x406]]
    %s2482 = sld [smem:[#allocation2 + $0x407]]
    %s2483 = sld [smem:[#allocation2 + $0x408]]
    %v2484 = vstv %s2475
    %v2485 = vmul.f32 %v2484, %v127
    %v2486 = vmul.f32 %v2484, %v128
    %v2487 = vmul.f32 %v2484, %v129
    %v2488 = vmul.f32 %v2484, %v130
    %v2489 = vmul.f32 %v2484, %v131
    %v2490 = vmul.f32 %v2484, %v132
    %v2491 = vmul.f32 %v2484, %v133
    %v2492 = vmul.f32 %v2484, %v134
    %v2493 = vmul.f32 %v2484, %v135
    %v2494 = vmul.f32 %v2484, %v136
    %v2495 = vmul.f32 %v2484, %v137
    %v2496 = vmul.f32 %v2484, %v138
    %v2497 = vmul.f32 %v2484, %v139
    %v2498 = vmul.f32 %v2484, %v140
    %v2499 = vmul.f32 %v2484, %v141
    %v2500 = vmul.f32 %v2484, %v142
    %v2501 = vstv %s2476
    %v2502 = vmul.f32 %v2501, %v146
    %v2503 = vadd.f32 %v2485, %v2502
    %v2504 = vadd.f32 %v2486, %v2502
    %v2505 = vadd.f32 %v2487, %v2502
    %v2506 = vadd.f32 %v2488, %v2502
    %v2507 = vadd.f32 %v2489, %v2502
    %v2508 = vadd.f32 %v2490, %v2502
    %v2509 = vadd.f32 %v2491, %v2502
    %v2510 = vadd.f32 %v2492, %v2502
    %v2511 = vadd.f32 %v2493, %v2502
    %v2512 = vadd.f32 %v2494, %v2502
    %v2513 = vadd.f32 %v2495, %v2502
    %v2514 = vadd.f32 %v2496, %v2502
    %v2515 = vadd.f32 %v2497, %v2502
    %v2516 = vadd.f32 %v2498, %v2502
    %v2517 = vadd.f32 %v2499, %v2502
    %v2518 = vadd.f32 %v2500, %v2502
    %v2519 = vstv %s2477
    %v2520 = vadd.f32 %v2503, %v2519
    %v2521 = vadd.f32 %v2504, %v2519
    %v2522 = vadd.f32 %v2505, %v2519
    %v2523 = vadd.f32 %v2506, %v2519
    %v2524 = vadd.f32 %v2507, %v2519
    %v2525 = vadd.f32 %v2508, %v2519
    %v2526 = vadd.f32 %v2509, %v2519
    %v2527 = vadd.f32 %v2510, %v2519
    %v2528 = vadd.f32 %v2511, %v2519
    %v2529 = vadd.f32 %v2512, %v2519
    %v2530 = vadd.f32 %v2513, %v2519
    %v2531 = vadd.f32 %v2514, %v2519
    %v2532 = vadd.f32 %v2515, %v2519
    %v2533 = vadd.f32 %v2516, %v2519
    %v2534 = vadd.f32 %v2517, %v2519
    %v2535 = vadd.f32 %v2518, %v2519
    %v2536 = vstv %s2478
    %v2537 = vmul.f32 %v2536, %v127
    %v2538 = vmul.f32 %v2536, %v128
    %v2539 = vmul.f32 %v2536, %v129
    %v2540 = vmul.f32 %v2536, %v130
    %v2541 = vmul.f32 %v2536, %v131
    %v2542 = vmul.f32 %v2536, %v132
    %v2543 = vmul.f32 %v2536, %v133
    %v2544 = vmul.f32 %v2536, %v134
    %v2545 = vmul.f32 %v2536, %v135
    %v2546 = vmul.f32 %v2536, %v136
    %v2547 = vmul.f32 %v2536, %v137
    %v2548 = vmul.f32 %v2536, %v138
    %v2549 = vmul.f32 %v2536, %v139
    %v2550 = vmul.f32 %v2536, %v140
    %v2551 = vmul.f32 %v2536, %v141
    %v2552 = vmul.f32 %v2536, %v142
    %v2553 = vstv %s2479
    %v2554 = vmul.f32 %v2553, %v146
    %v2555 = vadd.f32 %v2537, %v2554
    %v2556 = vadd.f32 %v2538, %v2554
    %v2557 = vadd.f32 %v2539, %v2554
    %v2558 = vadd.f32 %v2540, %v2554
    %v2559 = vadd.f32 %v2541, %v2554
    %v2560 = vadd.f32 %v2542, %v2554
    %v2561 = vadd.f32 %v2543, %v2554
    %v2562 = vadd.f32 %v2544, %v2554
    %v2563 = vadd.f32 %v2545, %v2554
    %v2564 = vadd.f32 %v2546, %v2554
    %v2565 = vadd.f32 %v2547, %v2554
    %v2566 = vadd.f32 %v2548, %v2554
    %v2567 = vadd.f32 %v2549, %v2554
    %v2568 = vadd.f32 %v2550, %v2554
    %v2569 = vadd.f32 %v2551, %v2554
    %v2570 = vadd.f32 %v2552, %v2554
    %v2571 = vstv %s2480
    %v2572 = vadd.f32 %v2555, %v2571
    %v2573 = vadd.f32 %v2556, %v2571
    %v2574 = vadd.f32 %v2557, %v2571
    %v2575 = vadd.f32 %v2558, %v2571
    %v2576 = vadd.f32 %v2559, %v2571
    %v2577 = vadd.f32 %v2560, %v2571
    %v2578 = vadd.f32 %v2561, %v2571
    %v2579 = vadd.f32 %v2562, %v2571
    %v2580 = vadd.f32 %v2563, %v2571
    %v2581 = vadd.f32 %v2564, %v2571
    %v2582 = vadd.f32 %v2565, %v2571
    %v2583 = vadd.f32 %v2566, %v2571
    %v2584 = vadd.f32 %v2567, %v2571
    %v2585 = vadd.f32 %v2568, %v2571
    %v2586 = vadd.f32 %v2569, %v2571
    %v2587 = vadd.f32 %v2570, %v2571
    %v2588 = vstv %s2481
    %v2589 = vmul.f32 %v2588, %v127
    %v2590 = vmul.f32 %v2588, %v128
    %v2591 = vmul.f32 %v2588, %v129
    %v2592 = vmul.f32 %v2588, %v130
    %v2593 = vmul.f32 %v2588, %v131
    %v2594 = vmul.f32 %v2588, %v132
    %v2595 = vmul.f32 %v2588, %v133
    %v2596 = vmul.f32 %v2588, %v134
    %v2597 = vmul.f32 %v2588, %v135
    %v2598 = vmul.f32 %v2588, %v136
    %v2599 = vmul.f32 %v2588, %v137
    %v2600 = vmul.f32 %v2588, %v138
    %v2601 = vmul.f32 %v2588, %v139
    %v2602 = vmul.f32 %v2588, %v140
    %v2603 = vmul.f32 %v2588, %v141
    %v2604 = vmul.f32 %v2588, %v142
    %v2605 = vstv %s2482
    %v2606 = vmul.f32 %v2605, %v146
    %v2607 = vadd.f32 %v2589, %v2606
    %v2608 = vadd.f32 %v2590, %v2606
    %v2609 = vadd.f32 %v2591, %v2606
    %v2610 = vadd.f32 %v2592, %v2606
    %v2611 = vadd.f32 %v2593, %v2606
    %v2612 = vadd.f32 %v2594, %v2606
    %v2613 = vadd.f32 %v2595, %v2606
    %v2614 = vadd.f32 %v2596, %v2606
    %v2615 = vadd.f32 %v2597, %v2606
    %v2616 = vadd.f32 %v2598, %v2606
    %v2617 = vadd.f32 %v2599, %v2606
    %v2618 = vadd.f32 %v2600, %v2606
    %v2619 = vadd.f32 %v2601, %v2606
    %v2620 = vadd.f32 %v2602, %v2606
    %v2621 = vadd.f32 %v2603, %v2606
    %v2622 = vadd.f32 %v2604, %v2606
    %v2623 = vstv %s2483
    %v2624 = vadd.f32 %v2607, %v2623
    %v2625 = vadd.f32 %v2608, %v2623
    %v2626 = vadd.f32 %v2609, %v2623
    %v2627 = vadd.f32 %v2610, %v2623
    %v2628 = vadd.f32 %v2611, %v2623
    %v2629 = vadd.f32 %v2612, %v2623
    %v2630 = vadd.f32 %v2613, %v2623
    %v2631 = vadd.f32 %v2614, %v2623
    %v2632 = vadd.f32 %v2615, %v2623
    %v2633 = vadd.f32 %v2616, %v2623
    %v2634 = vadd.f32 %v2617, %v2623
    %v2635 = vadd.f32 %v2618, %v2623
    %v2636 = vadd.f32 %v2619, %v2623
    %v2637 = vadd.f32 %v2620, %v2623
    %v2638 = vadd.f32 %v2621, %v2623
    %v2639 = vadd.f32 %v2622, %v2623
    %v2640 = vmin.f32 %v2520, %v2572
    %v2641 = vmin.f32 %v2521, %v2573
    %v2642 = vmin.f32 %v2522, %v2574
    %v2643 = vmin.f32 %v2523, %v2575
    %v2644 = vmin.f32 %v2524, %v2576
    %v2645 = vmin.f32 %v2525, %v2577
    %v2646 = vmin.f32 %v2526, %v2578
    %v2647 = vmin.f32 %v2527, %v2579
    %v2648 = vmin.f32 %v2528, %v2580
    %v2649 = vmin.f32 %v2529, %v2581
    %v2650 = vmin.f32 %v2530, %v2582
    %v2651 = vmin.f32 %v2531, %v2583
    %v2652 = vmin.f32 %v2532, %v2584
    %v2653 = vmin.f32 %v2533, %v2585
    %v2654 = vmin.f32 %v2534, %v2586
    %v2655 = vmin.f32 %v2535, %v2587
    %v2656 = vmin.f32 %v2640, %v2624
    %v2657 = vmin.f32 %v2641, %v2625
    %v2658 = vmin.f32 %v2642, %v2626
    %v2659 = vmin.f32 %v2643, %v2627
    %v2660 = vmin.f32 %v2644, %v2628
    %v2661 = vmin.f32 %v2645, %v2629
    %v2662 = vmin.f32 %v2646, %v2630
    %v2663 = vmin.f32 %v2647, %v2631
    %v2664 = vmin.f32 %v2648, %v2632
    %v2665 = vmin.f32 %v2649, %v2633
    %v2666 = vmin.f32 %v2650, %v2634
    %v2667 = vmin.f32 %v2651, %v2635
    %v2668 = vmin.f32 %v2652, %v2636
    %v2669 = vmin.f32 %v2653, %v2637
    %v2670 = vmin.f32 %v2654, %v2638
    %v2671 = vmin.f32 %v2655, %v2639
    %v2672 = vmax.f32 %v2520, %v2572
    %v2673 = vmax.f32 %v2521, %v2573
    %v2674 = vmax.f32 %v2522, %v2574
    %v2675 = vmax.f32 %v2523, %v2575
    %v2676 = vmax.f32 %v2524, %v2576
    %v2677 = vmax.f32 %v2525, %v2577
    %v2678 = vmax.f32 %v2526, %v2578
    %v2679 = vmax.f32 %v2527, %v2579
    %v2680 = vmax.f32 %v2528, %v2580
    %v2681 = vmax.f32 %v2529, %v2581
    %v2682 = vmax.f32 %v2530, %v2582
    %v2683 = vmax.f32 %v2531, %v2583
    %v2684 = vmax.f32 %v2532, %v2584
    %v2685 = vmax.f32 %v2533, %v2585
    %v2686 = vmax.f32 %v2534, %v2586
    %v2687 = vmax.f32 %v2535, %v2587
    %v2688 = vmax.f32 %v2672, %v2624
    %v2689 = vmax.f32 %v2673, %v2625
    %v2690 = vmax.f32 %v2674, %v2626
    %v2691 = vmax.f32 %v2675, %v2627
    %v2692 = vmax.f32 %v2676, %v2628
    %v2693 = vmax.f32 %v2677, %v2629
    %v2694 = vmax.f32 %v2678, %v2630
    %v2695 = vmax.f32 %v2679, %v2631
    %v2696 = vmax.f32 %v2680, %v2632
    %v2697 = vmax.f32 %v2681, %v2633
    %v2698 = vmax.f32 %v2682, %v2634
    %v2699 = vmax.f32 %v2683, %v2635
    %v2700 = vmax.f32 %v2684, %v2636
    %v2701 = vmax.f32 %v2685, %v2637
    %v2702 = vmax.f32 %v2686, %v2638
    %v2703 = vmax.f32 %v2687, %v2639
    %vm2704 = vcmp.ge.f32.partialorder %v2656, 0.0
    %vm2705 = vcmp.ge.f32.partialorder %v2657, 0.0
    %vm2706 = vcmp.ge.f32.partialorder %v2658, 0.0
    %vm2707 = vcmp.ge.f32.partialorder %v2659, 0.0
    %vm2708 = vcmp.ge.f32.partialorder %v2660, 0.0
    %vm2709 = vcmp.ge.f32.partialorder %v2661, 0.0
    %vm2710 = vcmp.ge.f32.partialorder %v2662, 0.0
    %vm2711 = vcmp.ge.f32.partialorder %v2663, 0.0
    %vm2712 = vcmp.ge.f32.partialorder %v2664, 0.0
    %vm2713 = vcmp.ge.f32.partialorder %v2665, 0.0
    %vm2714 = vcmp.ge.f32.partialorder %v2666, 0.0
    %vm2715 = vcmp.ge.f32.partialorder %v2667, 0.0
    %vm2716 = vcmp.ge.f32.partialorder %v2668, 0.0
    %vm2717 = vcmp.ge.f32.partialorder %v2669, 0.0
    %vm2718 = vcmp.ge.f32.partialorder %v2670, 0.0
    %vm2719 = vcmp.ge.f32.partialorder %v2671, 0.0
    %vm2720 = vcmp.le.f32.partialorder %v2688, 0.0
    %vm2721 = vcmp.le.f32.partialorder %v2689, 0.0
    %vm2722 = vcmp.le.f32.partialorder %v2690, 0.0
    %vm2723 = vcmp.le.f32.partialorder %v2691, 0.0
    %vm2724 = vcmp.le.f32.partialorder %v2692, 0.0
    %vm2725 = vcmp.le.f32.partialorder %v2693, 0.0
    %vm2726 = vcmp.le.f32.partialorder %v2694, 0.0
    %vm2727 = vcmp.le.f32.partialorder %v2695, 0.0
    %vm2728 = vcmp.le.f32.partialorder %v2696, 0.0
    %vm2729 = vcmp.le.f32.partialorder %v2697, 0.0
    %vm2730 = vcmp.le.f32.partialorder %v2698, 0.0
    %vm2731 = vcmp.le.f32.partialorder %v2699, 0.0
    %vm2732 = vcmp.le.f32.partialorder %v2700, 0.0
    %vm2733 = vcmp.le.f32.partialorder %v2701, 0.0
    %vm2734 = vcmp.le.f32.partialorder %v2702, 0.0
    %vm2735 = vcmp.le.f32.partialorder %v2703, 0.0
    %vm2736 = vmor %vm2704, %vm2720
    %vm2737 = vmor %vm2705, %vm2721
    %vm2738 = vmor %vm2706, %vm2722
    %vm2739 = vmor %vm2707, %vm2723
    %vm2740 = vmor %vm2708, %vm2724
    %vm2741 = vmor %vm2709, %vm2725
    %vm2742 = vmor %vm2710, %vm2726
    %vm2743 = vmor %vm2711, %vm2727
    %vm2744 = vmor %vm2712, %vm2728
    %vm2745 = vmor %vm2713, %vm2729
    %vm2746 = vmor %vm2714, %vm2730
    %vm2747 = vmor %vm2715, %vm2731
    %vm2748 = vmor %vm2716, %vm2732
    %vm2749 = vmor %vm2717, %vm2733
    %vm2750 = vmor %vm2718, %vm2734
    %vm2751 = vmor %vm2719, %vm2735
    %vm2752 = vmor %vm2459, %vm2736
    %vm2753 = vmor %vm2460, %vm2737
    %vm2754 = vmor %vm2461, %vm2738
    %vm2755 = vmor %vm2462, %vm2739
    %vm2756 = vmor %vm2463, %vm2740
    %vm2757 = vmor %vm2464, %vm2741
    %vm2758 = vmor %vm2465, %vm2742
    %vm2759 = vmor %vm2466, %vm2743
    %vm2760 = vmor %vm2467, %vm2744
    %vm2761 = vmor %vm2468, %vm2745
    %vm2762 = vmor %vm2469, %vm2746
    %vm2763 = vmor %vm2470, %vm2747
    %vm2764 = vmor %vm2471, %vm2748
    %vm2765 = vmor %vm2472, %vm2749
    %vm2766 = vmor %vm2473, %vm2750
    %vm2767 = vmor %vm2474, %vm2751
    %s2768 = sld [smem:[#allocation2 + $0x480]]
    %s2769 = sld [smem:[#allocation2 + $0x481]]
    %s2770 = sld [smem:[#allocation2 + $0x482]]
    %s2771 = sld [smem:[#allocation2 + $0x483]]
    %s2772 = sld [smem:[#allocation2 + $0x484]]
    %s2773 = sld [smem:[#allocation2 + $0x485]]
    %s2774 = sld [smem:[#allocation2 + $0x486]]
    %s2775 = sld [smem:[#allocation2 + $0x487]]
    %s2776 = sld [smem:[#allocation2 + $0x488]]
    %v2777 = vstv %s2768
    %v2778 = vmul.f32 %v2777, %v127
    %v2779 = vmul.f32 %v2777, %v128
    %v2780 = vmul.f32 %v2777, %v129
    %v2781 = vmul.f32 %v2777, %v130
    %v2782 = vmul.f32 %v2777, %v131
    %v2783 = vmul.f32 %v2777, %v132
    %v2784 = vmul.f32 %v2777, %v133
    %v2785 = vmul.f32 %v2777, %v134
    %v2786 = vmul.f32 %v2777, %v135
    %v2787 = vmul.f32 %v2777, %v136
    %v2788 = vmul.f32 %v2777, %v137
    %v2789 = vmul.f32 %v2777, %v138
    %v2790 = vmul.f32 %v2777, %v139
    %v2791 = vmul.f32 %v2777, %v140
    %v2792 = vmul.f32 %v2777, %v141
    %v2793 = vmul.f32 %v2777, %v142
    %v2794 = vstv %s2769
    %v2795 = vmul.f32 %v2794, %v146
    %v2796 = vadd.f32 %v2778, %v2795
    %v2797 = vadd.f32 %v2779, %v2795
    %v2798 = vadd.f32 %v2780, %v2795
    %v2799 = vadd.f32 %v2781, %v2795
    %v2800 = vadd.f32 %v2782, %v2795
    %v2801 = vadd.f32 %v2783, %v2795
    %v2802 = vadd.f32 %v2784, %v2795
    %v2803 = vadd.f32 %v2785, %v2795
    %v2804 = vadd.f32 %v2786, %v2795
    %v2805 = vadd.f32 %v2787, %v2795
    %v2806 = vadd.f32 %v2788, %v2795
    %v2807 = vadd.f32 %v2789, %v2795
    %v2808 = vadd.f32 %v2790, %v2795
    %v2809 = vadd.f32 %v2791, %v2795
    %v2810 = vadd.f32 %v2792, %v2795
    %v2811 = vadd.f32 %v2793, %v2795
    %v2812 = vstv %s2770
    %v2813 = vadd.f32 %v2796, %v2812
    %v2814 = vadd.f32 %v2797, %v2812
    %v2815 = vadd.f32 %v2798, %v2812
    %v2816 = vadd.f32 %v2799, %v2812
    %v2817 = vadd.f32 %v2800, %v2812
    %v2818 = vadd.f32 %v2801, %v2812
    %v2819 = vadd.f32 %v2802, %v2812
    %v2820 = vadd.f32 %v2803, %v2812
    %v2821 = vadd.f32 %v2804, %v2812
    %v2822 = vadd.f32 %v2805, %v2812
    %v2823 = vadd.f32 %v2806, %v2812
    %v2824 = vadd.f32 %v2807, %v2812
    %v2825 = vadd.f32 %v2808, %v2812
    %v2826 = vadd.f32 %v2809, %v2812
    %v2827 = vadd.f32 %v2810, %v2812
    %v2828 = vadd.f32 %v2811, %v2812
    %v2829 = vstv %s2771
    %v2830 = vmul.f32 %v2829, %v127
    %v2831 = vmul.f32 %v2829, %v128
    %v2832 = vmul.f32 %v2829, %v129
    %v2833 = vmul.f32 %v2829, %v130
    %v2834 = vmul.f32 %v2829, %v131
    %v2835 = vmul.f32 %v2829, %v132
    %v2836 = vmul.f32 %v2829, %v133
    %v2837 = vmul.f32 %v2829, %v134
    %v2838 = vmul.f32 %v2829, %v135
    %v2839 = vmul.f32 %v2829, %v136
    %v2840 = vmul.f32 %v2829, %v137
    %v2841 = vmul.f32 %v2829, %v138
    %v2842 = vmul.f32 %v2829, %v139
    %v2843 = vmul.f32 %v2829, %v140
    %v2844 = vmul.f32 %v2829, %v141
    %v2845 = vmul.f32 %v2829, %v142
    %v2846 = vstv %s2772
    %v2847 = vmul.f32 %v2846, %v146
    %v2848 = vadd.f32 %v2830, %v2847
    %v2849 = vadd.f32 %v2831, %v2847
    %v2850 = vadd.f32 %v2832, %v2847
    %v2851 = vadd.f32 %v2833, %v2847
    %v2852 = vadd.f32 %v2834, %v2847
    %v2853 = vadd.f32 %v2835, %v2847
    %v2854 = vadd.f32 %v2836, %v2847
    %v2855 = vadd.f32 %v2837, %v2847
    %v2856 = vadd.f32 %v2838, %v2847
    %v2857 = vadd.f32 %v2839, %v2847
    %v2858 = vadd.f32 %v2840, %v2847
    %v2859 = vadd.f32 %v2841, %v2847
    %v2860 = vadd.f32 %v2842, %v2847
    %v2861 = vadd.f32 %v2843, %v2847
    %v2862 = vadd.f32 %v2844, %v2847
    %v2863 = vadd.f32 %v2845, %v2847
    %v2864 = vstv %s2773
    %v2865 = vadd.f32 %v2848, %v2864
    %v2866 = vadd.f32 %v2849, %v2864
    %v2867 = vadd.f32 %v2850, %v2864
    %v2868 = vadd.f32 %v2851, %v2864
    %v2869 = vadd.f32 %v2852, %v2864
    %v2870 = vadd.f32 %v2853, %v2864
    %v2871 = vadd.f32 %v2854, %v2864
    %v2872 = vadd.f32 %v2855, %v2864
    %v2873 = vadd.f32 %v2856, %v2864
    %v2874 = vadd.f32 %v2857, %v2864
    %v2875 = vadd.f32 %v2858, %v2864
    %v2876 = vadd.f32 %v2859, %v2864
    %v2877 = vadd.f32 %v2860, %v2864
    %v2878 = vadd.f32 %v2861, %v2864
    %v2879 = vadd.f32 %v2862, %v2864
    %v2880 = vadd.f32 %v2863, %v2864
    %v2881 = vstv %s2774
    %v2882 = vmul.f32 %v2881, %v127
    %v2883 = vmul.f32 %v2881, %v128
    %v2884 = vmul.f32 %v2881, %v129
    %v2885 = vmul.f32 %v2881, %v130
    %v2886 = vmul.f32 %v2881, %v131
    %v2887 = vmul.f32 %v2881, %v132
    %v2888 = vmul.f32 %v2881, %v133
    %v2889 = vmul.f32 %v2881, %v134
    %v2890 = vmul.f32 %v2881, %v135
    %v2891 = vmul.f32 %v2881, %v136
    %v2892 = vmul.f32 %v2881, %v137
    %v2893 = vmul.f32 %v2881, %v138
    %v2894 = vmul.f32 %v2881, %v139
    %v2895 = vmul.f32 %v2881, %v140
    %v2896 = vmul.f32 %v2881, %v141
    %v2897 = vmul.f32 %v2881, %v142
    %v2898 = vstv %s2775
    %v2899 = vmul.f32 %v2898, %v146
    %v2900 = vadd.f32 %v2882, %v2899
    %v2901 = vadd.f32 %v2883, %v2899
    %v2902 = vadd.f32 %v2884, %v2899
    %v2903 = vadd.f32 %v2885, %v2899
    %v2904 = vadd.f32 %v2886, %v2899
    %v2905 = vadd.f32 %v2887, %v2899
    %v2906 = vadd.f32 %v2888, %v2899
    %v2907 = vadd.f32 %v2889, %v2899
    %v2908 = vadd.f32 %v2890, %v2899
    %v2909 = vadd.f32 %v2891, %v2899
    %v2910 = vadd.f32 %v2892, %v2899
    %v2911 = vadd.f32 %v2893, %v2899
    %v2912 = vadd.f32 %v2894, %v2899
    %v2913 = vadd.f32 %v2895, %v2899
    %v2914 = vadd.f32 %v2896, %v2899
    %v2915 = vadd.f32 %v2897, %v2899
    %v2916 = vstv %s2776
    %v2917 = vadd.f32 %v2900, %v2916
    %v2918 = vadd.f32 %v2901, %v2916
    %v2919 = vadd.f32 %v2902, %v2916
    %v2920 = vadd.f32 %v2903, %v2916
    %v2921 = vadd.f32 %v2904, %v2916
    %v2922 = vadd.f32 %v2905, %v2916
    %v2923 = vadd.f32 %v2906, %v2916
    %v2924 = vadd.f32 %v2907, %v2916
    %v2925 = vadd.f32 %v2908, %v2916
    %v2926 = vadd.f32 %v2909, %v2916
    %v2927 = vadd.f32 %v2910, %v2916
    %v2928 = vadd.f32 %v2911, %v2916
    %v2929 = vadd.f32 %v2912, %v2916
    %v2930 = vadd.f32 %v2913, %v2916
    %v2931 = vadd.f32 %v2914, %v2916
    %v2932 = vadd.f32 %v2915, %v2916
    %v2933 = vmin.f32 %v2813, %v2865
    %v2934 = vmin.f32 %v2814, %v2866
    %v2935 = vmin.f32 %v2815, %v2867
    %v2936 = vmin.f32 %v2816, %v2868
    %v2937 = vmin.f32 %v2817, %v2869
    %v2938 = vmin.f32 %v2818, %v2870
    %v2939 = vmin.f32 %v2819, %v2871
    %v2940 = vmin.f32 %v2820, %v2872
    %v2941 = vmin.f32 %v2821, %v2873
    %v2942 = vmin.f32 %v2822, %v2874
    %v2943 = vmin.f32 %v2823, %v2875
    %v2944 = vmin.f32 %v2824, %v2876
    %v2945 = vmin.f32 %v2825, %v2877
    %v2946 = vmin.f32 %v2826, %v2878
    %v2947 = vmin.f32 %v2827, %v2879
    %v2948 = vmin.f32 %v2828, %v2880
    %v2949 = vmin.f32 %v2933, %v2917
    %v2950 = vmin.f32 %v2934, %v2918
    %v2951 = vmin.f32 %v2935, %v2919
    %v2952 = vmin.f32 %v2936, %v2920
    %v2953 = vmin.f32 %v2937, %v2921
    %v2954 = vmin.f32 %v2938, %v2922
    %v2955 = vmin.f32 %v2939, %v2923
    %v2956 = vmin.f32 %v2940, %v2924
    %v2957 = vmin.f32 %v2941, %v2925
    %v2958 = vmin.f32 %v2942, %v2926
    %v2959 = vmin.f32 %v2943, %v2927
    %v2960 = vmin.f32 %v2944, %v2928
    %v2961 = vmin.f32 %v2945, %v2929
    %v2962 = vmin.f32 %v2946, %v2930
    %v2963 = vmin.f32 %v2947, %v2931
    %v2964 = vmin.f32 %v2948, %v2932
    %v2965 = vmax.f32 %v2813, %v2865
    %v2966 = vmax.f32 %v2814, %v2866
    %v2967 = vmax.f32 %v2815, %v2867
    %v2968 = vmax.f32 %v2816, %v2868
    %v2969 = vmax.f32 %v2817, %v2869
    %v2970 = vmax.f32 %v2818, %v2870
    %v2971 = vmax.f32 %v2819, %v2871
    %v2972 = vmax.f32 %v2820, %v2872
    %v2973 = vmax.f32 %v2821, %v2873
    %v2974 = vmax.f32 %v2822, %v2874
    %v2975 = vmax.f32 %v2823, %v2875
    %v2976 = vmax.f32 %v2824, %v2876
    %v2977 = vmax.f32 %v2825, %v2877
    %v2978 = vmax.f32 %v2826, %v2878
    %v2979 = vmax.f32 %v2827, %v2879
    %v2980 = vmax.f32 %v2828, %v2880
    %v2981 = vmax.f32 %v2965, %v2917
    %v2982 = vmax.f32 %v2966, %v2918
    %v2983 = vmax.f32 %v2967, %v2919
    %v2984 = vmax.f32 %v2968, %v2920
    %v2985 = vmax.f32 %v2969, %v2921
    %v2986 = vmax.f32 %v2970, %v2922
    %v2987 = vmax.f32 %v2971, %v2923
    %v2988 = vmax.f32 %v2972, %v2924
    %v2989 = vmax.f32 %v2973, %v2925
    %v2990 = vmax.f32 %v2974, %v2926
    %v2991 = vmax.f32 %v2975, %v2927
    %v2992 = vmax.f32 %v2976, %v2928
    %v2993 = vmax.f32 %v2977, %v2929
    %v2994 = vmax.f32 %v2978, %v2930
    %v2995 = vmax.f32 %v2979, %v2931
    %v2996 = vmax.f32 %v2980, %v2932
    %vm2997 = vcmp.ge.f32.partialorder %v2949, 0.0
    %vm2998 = vcmp.ge.f32.partialorder %v2950, 0.0
    %vm2999 = vcmp.ge.f32.partialorder %v2951, 0.0
    %vm3000 = vcmp.ge.f32.partialorder %v2952, 0.0
    %vm3001 = vcmp.ge.f32.partialorder %v2953, 0.0
    %vm3002 = vcmp.ge.f32.partialorder %v2954, 0.0
    %vm3003 = vcmp.ge.f32.partialorder %v2955, 0.0
    %vm3004 = vcmp.ge.f32.partialorder %v2956, 0.0
    %vm3005 = vcmp.ge.f32.partialorder %v2957, 0.0
    %vm3006 = vcmp.ge.f32.partialorder %v2958, 0.0
    %vm3007 = vcmp.ge.f32.partialorder %v2959, 0.0
    %vm3008 = vcmp.ge.f32.partialorder %v2960, 0.0
    %vm3009 = vcmp.ge.f32.partialorder %v2961, 0.0
    %vm3010 = vcmp.ge.f32.partialorder %v2962, 0.0
    %vm3011 = vcmp.ge.f32.partialorder %v2963, 0.0
    %vm3012 = vcmp.ge.f32.partialorder %v2964, 0.0
    %vm3013 = vcmp.le.f32.partialorder %v2981, 0.0
    %vm3014 = vcmp.le.f32.partialorder %v2982, 0.0
    %vm3015 = vcmp.le.f32.partialorder %v2983, 0.0
    %vm3016 = vcmp.le.f32.partialorder %v2984, 0.0
    %vm3017 = vcmp.le.f32.partialorder %v2985, 0.0
    %vm3018 = vcmp.le.f32.partialorder %v2986, 0.0
    %vm3019 = vcmp.le.f32.partialorder %v2987, 0.0
    %vm3020 = vcmp.le.f32.partialorder %v2988, 0.0
    %vm3021 = vcmp.le.f32.partialorder %v2989, 0.0
    %vm3022 = vcmp.le.f32.partialorder %v2990, 0.0
    %vm3023 = vcmp.le.f32.partialorder %v2991, 0.0
    %vm3024 = vcmp.le.f32.partialorder %v2992, 0.0
    %vm3025 = vcmp.le.f32.partialorder %v2993, 0.0
    %vm3026 = vcmp.le.f32.partialorder %v2994, 0.0
    %vm3027 = vcmp.le.f32.partialorder %v2995, 0.0
    %vm3028 = vcmp.le.f32.partialorder %v2996, 0.0
    %vm3029 = vmor %vm2997, %vm3013
    %vm3030 = vmor %vm2998, %vm3014
    %vm3031 = vmor %vm2999, %vm3015
    %vm3032 = vmor %vm3000, %vm3016
    %vm3033 = vmor %vm3001, %vm3017
    %vm3034 = vmor %vm3002, %vm3018
    %vm3035 = vmor %vm3003, %vm3019
    %vm3036 = vmor %vm3004, %vm3020
    %vm3037 = vmor %vm3005, %vm3021
    %vm3038 = vmor %vm3006, %vm3022
    %vm3039 = vmor %vm3007, %vm3023
    %vm3040 = vmor %vm3008, %vm3024
    %vm3041 = vmor %vm3009, %vm3025
    %vm3042 = vmor %vm3010, %vm3026
    %vm3043 = vmor %vm3011, %vm3027
    %vm3044 = vmor %vm3012, %vm3028
    %vm3045 = vmor %vm2752, %vm3029
    %vm3046 = vmor %vm2753, %vm3030
    %vm3047 = vmor %vm2754, %vm3031
    %vm3048 = vmor %vm2755, %vm3032
    %vm3049 = vmor %vm2756, %vm3033
    %vm3050 = vmor %vm2757, %vm3034
    %vm3051 = vmor %vm2758, %vm3035
    %vm3052 = vmor %vm2759, %vm3036
    %vm3053 = vmor %vm2760, %vm3037
    %vm3054 = vmor %vm2761, %vm3038
    %vm3055 = vmor %vm2762, %vm3039
    %vm3056 = vmor %vm2763, %vm3040
    %vm3057 = vmor %vm2764, %vm3041
    %vm3058 = vmor %vm2765, %vm3042
    %vm3059 = vmor %vm2766, %vm3043
    %vm3060 = vmor %vm2767, %vm3044
    %s3061 = sld [smem:[#allocation2 + $0x500]]
    %s3062 = sld [smem:[#allocation2 + $0x501]]
    %s3063 = sld [smem:[#allocation2 + $0x502]]
    %s3064 = sld [smem:[#allocation2 + $0x503]]
    %s3065 = sld [smem:[#allocation2 + $0x504]]
    %s3066 = sld [smem:[#allocation2 + $0x505]]
    %s3067 = sld [smem:[#allocation2 + $0x506]]
    %s3068 = sld [smem:[#allocation2 + $0x507]]
    %s3069 = sld [smem:[#allocation2 + $0x508]]
    %v3070 = vstv %s3061
    %v3071 = vmul.f32 %v3070, %v127
    %v3072 = vmul.f32 %v3070, %v128
    %v3073 = vmul.f32 %v3070, %v129
    %v3074 = vmul.f32 %v3070, %v130
    %v3075 = vmul.f32 %v3070, %v131
    %v3076 = vmul.f32 %v3070, %v132
    %v3077 = vmul.f32 %v3070, %v133
    %v3078 = vmul.f32 %v3070, %v134
    %v3079 = vmul.f32 %v3070, %v135
    %v3080 = vmul.f32 %v3070, %v136
    %v3081 = vmul.f32 %v3070, %v137
    %v3082 = vmul.f32 %v3070, %v138
    %v3083 = vmul.f32 %v3070, %v139
    %v3084 = vmul.f32 %v3070, %v140
    %v3085 = vmul.f32 %v3070, %v141
    %v3086 = vmul.f32 %v3070, %v142
    %v3087 = vstv %s3062
    %v3088 = vmul.f32 %v3087, %v146
    %v3089 = vadd.f32 %v3071, %v3088
    %v3090 = vadd.f32 %v3072, %v3088
    %v3091 = vadd.f32 %v3073, %v3088
    %v3092 = vadd.f32 %v3074, %v3088
    %v3093 = vadd.f32 %v3075, %v3088
    %v3094 = vadd.f32 %v3076, %v3088
    %v3095 = vadd.f32 %v3077, %v3088
    %v3096 = vadd.f32 %v3078, %v3088
    %v3097 = vadd.f32 %v3079, %v3088
    %v3098 = vadd.f32 %v3080, %v3088
    %v3099 = vadd.f32 %v3081, %v3088
    %v3100 = vadd.f32 %v3082, %v3088
    %v3101 = vadd.f32 %v3083, %v3088
    %v3102 = vadd.f32 %v3084, %v3088
    %v3103 = vadd.f32 %v3085, %v3088
    %v3104 = vadd.f32 %v3086, %v3088
    %v3105 = vstv %s3063
    %v3106 = vadd.f32 %v3089, %v3105
    %v3107 = vadd.f32 %v3090, %v3105
    %v3108 = vadd.f32 %v3091, %v3105
    %v3109 = vadd.f32 %v3092, %v3105
    %v3110 = vadd.f32 %v3093, %v3105
    %v3111 = vadd.f32 %v3094, %v3105
    %v3112 = vadd.f32 %v3095, %v3105
    %v3113 = vadd.f32 %v3096, %v3105
    %v3114 = vadd.f32 %v3097, %v3105
    %v3115 = vadd.f32 %v3098, %v3105
    %v3116 = vadd.f32 %v3099, %v3105
    %v3117 = vadd.f32 %v3100, %v3105
    %v3118 = vadd.f32 %v3101, %v3105
    %v3119 = vadd.f32 %v3102, %v3105
    %v3120 = vadd.f32 %v3103, %v3105
    %v3121 = vadd.f32 %v3104, %v3105
    %v3122 = vstv %s3064
    %v3123 = vmul.f32 %v3122, %v127
    %v3124 = vmul.f32 %v3122, %v128
    %v3125 = vmul.f32 %v3122, %v129
    %v3126 = vmul.f32 %v3122, %v130
    %v3127 = vmul.f32 %v3122, %v131
    %v3128 = vmul.f32 %v3122, %v132
    %v3129 = vmul.f32 %v3122, %v133
    %v3130 = vmul.f32 %v3122, %v134
    %v3131 = vmul.f32 %v3122, %v135
    %v3132 = vmul.f32 %v3122, %v136
    %v3133 = vmul.f32 %v3122, %v137
    %v3134 = vmul.f32 %v3122, %v138
    %v3135 = vmul.f32 %v3122, %v139
    %v3136 = vmul.f32 %v3122, %v140
    %v3137 = vmul.f32 %v3122, %v141
    %v3138 = vmul.f32 %v3122, %v142
    %v3139 = vstv %s3065
    %v3140 = vmul.f32 %v3139, %v146
    %v3141 = vadd.f32 %v3123, %v3140
    %v3142 = vadd.f32 %v3124, %v3140
    %v3143 = vadd.f32 %v3125, %v3140
    %v3144 = vadd.f32 %v3126, %v3140
    %v3145 = vadd.f32 %v3127, %v3140
    %v3146 = vadd.f32 %v3128, %v3140
    %v3147 = vadd.f32 %v3129, %v3140
    %v3148 = vadd.f32 %v3130, %v3140
    %v3149 = vadd.f32 %v3131, %v3140
    %v3150 = vadd.f32 %v3132, %v3140
    %v3151 = vadd.f32 %v3133, %v3140
    %v3152 = vadd.f32 %v3134, %v3140
    %v3153 = vadd.f32 %v3135, %v3140
    %v3154 = vadd.f32 %v3136, %v3140
    %v3155 = vadd.f32 %v3137, %v3140
    %v3156 = vadd.f32 %v3138, %v3140
    %v3157 = vstv %s3066
    %v3158 = vadd.f32 %v3141, %v3157
    %v3159 = vadd.f32 %v3142, %v3157
    %v3160 = vadd.f32 %v3143, %v3157
    %v3161 = vadd.f32 %v3144, %v3157
    %v3162 = vadd.f32 %v3145, %v3157
    %v3163 = vadd.f32 %v3146, %v3157
    %v3164 = vadd.f32 %v3147, %v3157
    %v3165 = vadd.f32 %v3148, %v3157
    %v3166 = vadd.f32 %v3149, %v3157
    %v3167 = vadd.f32 %v3150, %v3157
    %v3168 = vadd.f32 %v3151, %v3157
    %v3169 = vadd.f32 %v3152, %v3157
    %v3170 = vadd.f32 %v3153, %v3157
    %v3171 = vadd.f32 %v3154, %v3157
    %v3172 = vadd.f32 %v3155, %v3157
    %v3173 = vadd.f32 %v3156, %v3157
    %v3174 = vstv %s3067
    %v3175 = vmul.f32 %v3174, %v127
    %v3176 = vmul.f32 %v3174, %v128
    %v3177 = vmul.f32 %v3174, %v129
    %v3178 = vmul.f32 %v3174, %v130
    %v3179 = vmul.f32 %v3174, %v131
    %v3180 = vmul.f32 %v3174, %v132
    %v3181 = vmul.f32 %v3174, %v133
    %v3182 = vmul.f32 %v3174, %v134
    %v3183 = vmul.f32 %v3174, %v135
    %v3184 = vmul.f32 %v3174, %v136
    %v3185 = vmul.f32 %v3174, %v137
    %v3186 = vmul.f32 %v3174, %v138
    %v3187 = vmul.f32 %v3174, %v139
    %v3188 = vmul.f32 %v3174, %v140
    %v3189 = vmul.f32 %v3174, %v141
    %v3190 = vmul.f32 %v3174, %v142
    %v3191 = vstv %s3068
    %v3192 = vmul.f32 %v3191, %v146
    %v3193 = vadd.f32 %v3175, %v3192
    %v3194 = vadd.f32 %v3176, %v3192
    %v3195 = vadd.f32 %v3177, %v3192
    %v3196 = vadd.f32 %v3178, %v3192
    %v3197 = vadd.f32 %v3179, %v3192
    %v3198 = vadd.f32 %v3180, %v3192
    %v3199 = vadd.f32 %v3181, %v3192
    %v3200 = vadd.f32 %v3182, %v3192
    %v3201 = vadd.f32 %v3183, %v3192
    %v3202 = vadd.f32 %v3184, %v3192
    %v3203 = vadd.f32 %v3185, %v3192
    %v3204 = vadd.f32 %v3186, %v3192
    %v3205 = vadd.f32 %v3187, %v3192
    %v3206 = vadd.f32 %v3188, %v3192
    %v3207 = vadd.f32 %v3189, %v3192
    %v3208 = vadd.f32 %v3190, %v3192
    %v3209 = vstv %s3069
    %v3210 = vadd.f32 %v3193, %v3209
    %v3211 = vadd.f32 %v3194, %v3209
    %v3212 = vadd.f32 %v3195, %v3209
    %v3213 = vadd.f32 %v3196, %v3209
    %v3214 = vadd.f32 %v3197, %v3209
    %v3215 = vadd.f32 %v3198, %v3209
    %v3216 = vadd.f32 %v3199, %v3209
    %v3217 = vadd.f32 %v3200, %v3209
    %v3218 = vadd.f32 %v3201, %v3209
    %v3219 = vadd.f32 %v3202, %v3209
    %v3220 = vadd.f32 %v3203, %v3209
    %v3221 = vadd.f32 %v3204, %v3209
    %v3222 = vadd.f32 %v3205, %v3209
    %v3223 = vadd.f32 %v3206, %v3209
    %v3224 = vadd.f32 %v3207, %v3209
    %v3225 = vadd.f32 %v3208, %v3209
    %v3226 = vmin.f32 %v3106, %v3158
    %v3227 = vmin.f32 %v3107, %v3159
    %v3228 = vmin.f32 %v3108, %v3160
    %v3229 = vmin.f32 %v3109, %v3161
    %v3230 = vmin.f32 %v3110, %v3162
    %v3231 = vmin.f32 %v3111, %v3163
    %v3232 = vmin.f32 %v3112, %v3164
    %v3233 = vmin.f32 %v3113, %v3165
    %v3234 = vmin.f32 %v3114, %v3166
    %v3235 = vmin.f32 %v3115, %v3167
    %v3236 = vmin.f32 %v3116, %v3168
    %v3237 = vmin.f32 %v3117, %v3169
    %v3238 = vmin.f32 %v3118, %v3170
    %v3239 = vmin.f32 %v3119, %v3171
    %v3240 = vmin.f32 %v3120, %v3172
    %v3241 = vmin.f32 %v3121, %v3173
    %v3242 = vmin.f32 %v3226, %v3210
    %v3243 = vmin.f32 %v3227, %v3211
    %v3244 = vmin.f32 %v3228, %v3212
    %v3245 = vmin.f32 %v3229, %v3213
    %v3246 = vmin.f32 %v3230, %v3214
    %v3247 = vmin.f32 %v3231, %v3215
    %v3248 = vmin.f32 %v3232, %v3216
    %v3249 = vmin.f32 %v3233, %v3217
    %v3250 = vmin.f32 %v3234, %v3218
    %v3251 = vmin.f32 %v3235, %v3219
    %v3252 = vmin.f32 %v3236, %v3220
    %v3253 = vmin.f32 %v3237, %v3221
    %v3254 = vmin.f32 %v3238, %v3222
    %v3255 = vmin.f32 %v3239, %v3223
    %v3256 = vmin.f32 %v3240, %v3224
    %v3257 = vmin.f32 %v3241, %v3225
    %v3258 = vmax.f32 %v3106, %v3158
    %v3259 = vmax.f32 %v3107, %v3159
    %v3260 = vmax.f32 %v3108, %v3160
    %v3261 = vmax.f32 %v3109, %v3161
    %v3262 = vmax.f32 %v3110, %v3162
    %v3263 = vmax.f32 %v3111, %v3163
    %v3264 = vmax.f32 %v3112, %v3164
    %v3265 = vmax.f32 %v3113, %v3165
    %v3266 = vmax.f32 %v3114, %v3166
    %v3267 = vmax.f32 %v3115, %v3167
    %v3268 = vmax.f32 %v3116, %v3168
    %v3269 = vmax.f32 %v3117, %v3169
    %v3270 = vmax.f32 %v3118, %v3170
    %v3271 = vmax.f32 %v3119, %v3171
    %v3272 = vmax.f32 %v3120, %v3172
    %v3273 = vmax.f32 %v3121, %v3173
    %v3274 = vmax.f32 %v3258, %v3210
    %v3275 = vmax.f32 %v3259, %v3211
    %v3276 = vmax.f32 %v3260, %v3212
    %v3277 = vmax.f32 %v3261, %v3213
    %v3278 = vmax.f32 %v3262, %v3214
    %v3279 = vmax.f32 %v3263, %v3215
    %v3280 = vmax.f32 %v3264, %v3216
    %v3281 = vmax.f32 %v3265, %v3217
    %v3282 = vmax.f32 %v3266, %v3218
    %v3283 = vmax.f32 %v3267, %v3219
    %v3284 = vmax.f32 %v3268, %v3220
    %v3285 = vmax.f32 %v3269, %v3221
    %v3286 = vmax.f32 %v3270, %v3222
    %v3287 = vmax.f32 %v3271, %v3223
    %v3288 = vmax.f32 %v3272, %v3224
    %v3289 = vmax.f32 %v3273, %v3225
    %vm3290 = vcmp.ge.f32.partialorder %v3242, 0.0
    %vm3291 = vcmp.ge.f32.partialorder %v3243, 0.0
    %vm3292 = vcmp.ge.f32.partialorder %v3244, 0.0
    %vm3293 = vcmp.ge.f32.partialorder %v3245, 0.0
    %vm3294 = vcmp.ge.f32.partialorder %v3246, 0.0
    %vm3295 = vcmp.ge.f32.partialorder %v3247, 0.0
    %vm3296 = vcmp.ge.f32.partialorder %v3248, 0.0
    %vm3297 = vcmp.ge.f32.partialorder %v3249, 0.0
    %vm3298 = vcmp.ge.f32.partialorder %v3250, 0.0
    %vm3299 = vcmp.ge.f32.partialorder %v3251, 0.0
    %vm3300 = vcmp.ge.f32.partialorder %v3252, 0.0
    %vm3301 = vcmp.ge.f32.partialorder %v3253, 0.0
    %vm3302 = vcmp.ge.f32.partialorder %v3254, 0.0
    %vm3303 = vcmp.ge.f32.partialorder %v3255, 0.0
    %vm3304 = vcmp.ge.f32.partialorder %v3256, 0.0
    %vm3305 = vcmp.ge.f32.partialorder %v3257, 0.0
    %vm3306 = vcmp.le.f32.partialorder %v3274, 0.0
    %vm3307 = vcmp.le.f32.partialorder %v3275, 0.0
    %vm3308 = vcmp.le.f32.partialorder %v3276, 0.0
    %vm3309 = vcmp.le.f32.partialorder %v3277, 0.0
    %vm3310 = vcmp.le.f32.partialorder %v3278, 0.0
    %vm3311 = vcmp.le.f32.partialorder %v3279, 0.0
    %vm3312 = vcmp.le.f32.partialorder %v3280, 0.0
    %vm3313 = vcmp.le.f32.partialorder %v3281, 0.0
    %vm3314 = vcmp.le.f32.partialorder %v3282, 0.0
    %vm3315 = vcmp.le.f32.partialorder %v3283, 0.0
    %vm3316 = vcmp.le.f32.partialorder %v3284, 0.0
    %vm3317 = vcmp.le.f32.partialorder %v3285, 0.0
    %vm3318 = vcmp.le.f32.partialorder %v3286, 0.0
    %vm3319 = vcmp.le.f32.partialorder %v3287, 0.0
    %vm3320 = vcmp.le.f32.partialorder %v3288, 0.0
    %vm3321 = vcmp.le.f32.partialorder %v3289, 0.0
    %vm3322 = vmor %vm3290, %vm3306
    %vm3323 = vmor %vm3291, %vm3307
    %vm3324 = vmor %vm3292, %vm3308
    %vm3325 = vmor %vm3293, %vm3309
    %vm3326 = vmor %vm3294, %vm3310
    %vm3327 = vmor %vm3295, %vm3311
    %vm3328 = vmor %vm3296, %vm3312
    %vm3329 = vmor %vm3297, %vm3313
    %vm3330 = vmor %vm3298, %vm3314
    %vm3331 = vmor %vm3299, %vm3315
    %vm3332 = vmor %vm3300, %vm3316
    %vm3333 = vmor %vm3301, %vm3317
    %vm3334 = vmor %vm3302, %vm3318
    %vm3335 = vmor %vm3303, %vm3319
    %vm3336 = vmor %vm3304, %vm3320
    %vm3337 = vmor %vm3305, %vm3321
    %vm3338 = vmor %vm3045, %vm3322
    %vm3339 = vmor %vm3046, %vm3323
    %vm3340 = vmor %vm3047, %vm3324
    %vm3341 = vmor %vm3048, %vm3325
    %vm3342 = vmor %vm3049, %vm3326
    %vm3343 = vmor %vm3050, %vm3327
    %vm3344 = vmor %vm3051, %vm3328
    %vm3345 = vmor %vm3052, %vm3329
    %vm3346 = vmor %vm3053, %vm3330
    %vm3347 = vmor %vm3054, %vm3331
    %vm3348 = vmor %vm3055, %vm3332
    %vm3349 = vmor %vm3056, %vm3333
    %vm3350 = vmor %vm3057, %vm3334
    %vm3351 = vmor %vm3058, %vm3335
    %vm3352 = vmor %vm3059, %vm3336
    %vm3353 = vmor %vm3060, %vm3337
    %s3354 = sld [smem:[#allocation2 + $0x580]]
    %s3355 = sld [smem:[#allocation2 + $0x581]]
    %s3356 = sld [smem:[#allocation2 + $0x582]]
    %s3357 = sld [smem:[#allocation2 + $0x583]]
    %s3358 = sld [smem:[#allocation2 + $0x584]]
    %s3359 = sld [smem:[#allocation2 + $0x585]]
    %s3360 = sld [smem:[#allocation2 + $0x586]]
    %s3361 = sld [smem:[#allocation2 + $0x587]]
    %s3362 = sld [smem:[#allocation2 + $0x588]]
    %v3363 = vstv %s3354
    %v3364 = vmul.f32 %v3363, %v127
    %v3365 = vmul.f32 %v3363, %v128
    %v3366 = vmul.f32 %v3363, %v129
    %v3367 = vmul.f32 %v3363, %v130
    %v3368 = vmul.f32 %v3363, %v131
    %v3369 = vmul.f32 %v3363, %v132
    %v3370 = vmul.f32 %v3363, %v133
    %v3371 = vmul.f32 %v3363, %v134
    %v3372 = vmul.f32 %v3363, %v135
    %v3373 = vmul.f32 %v3363, %v136
    %v3374 = vmul.f32 %v3363, %v137
    %v3375 = vmul.f32 %v3363, %v138
    %v3376 = vmul.f32 %v3363, %v139
    %v3377 = vmul.f32 %v3363, %v140
    %v3378 = vmul.f32 %v3363, %v141
    %v3379 = vmul.f32 %v3363, %v142
    %v3380 = vstv %s3355
    %v3381 = vmul.f32 %v3380, %v146
    %v3382 = vadd.f32 %v3364, %v3381
    %v3383 = vadd.f32 %v3365, %v3381
    %v3384 = vadd.f32 %v3366, %v3381
    %v3385 = vadd.f32 %v3367, %v3381
    %v3386 = vadd.f32 %v3368, %v3381
    %v3387 = vadd.f32 %v3369, %v3381
    %v3388 = vadd.f32 %v3370, %v3381
    %v3389 = vadd.f32 %v3371, %v3381
    %v3390 = vadd.f32 %v3372, %v3381
    %v3391 = vadd.f32 %v3373, %v3381
    %v3392 = vadd.f32 %v3374, %v3381
    %v3393 = vadd.f32 %v3375, %v3381
    %v3394 = vadd.f32 %v3376, %v3381
    %v3395 = vadd.f32 %v3377, %v3381
    %v3396 = vadd.f32 %v3378, %v3381
    %v3397 = vadd.f32 %v3379, %v3381
    %v3398 = vstv %s3356
    %v3399 = vadd.f32 %v3382, %v3398
    %v3400 = vadd.f32 %v3383, %v3398
    %v3401 = vadd.f32 %v3384, %v3398
    %v3402 = vadd.f32 %v3385, %v3398
    %v3403 = vadd.f32 %v3386, %v3398
    %v3404 = vadd.f32 %v3387, %v3398
    %v3405 = vadd.f32 %v3388, %v3398
    %v3406 = vadd.f32 %v3389, %v3398
    %v3407 = vadd.f32 %v3390, %v3398
    %v3408 = vadd.f32 %v3391, %v3398
    %v3409 = vadd.f32 %v3392, %v3398
    %v3410 = vadd.f32 %v3393, %v3398
    %v3411 = vadd.f32 %v3394, %v3398
    %v3412 = vadd.f32 %v3395, %v3398
    %v3413 = vadd.f32 %v3396, %v3398
    %v3414 = vadd.f32 %v3397, %v3398
    %v3415 = vstv %s3357
    %v3416 = vmul.f32 %v3415, %v127
    %v3417 = vmul.f32 %v3415, %v128
    %v3418 = vmul.f32 %v3415, %v129
    %v3419 = vmul.f32 %v3415, %v130
    %v3420 = vmul.f32 %v3415, %v131
    %v3421 = vmul.f32 %v3415, %v132
    %v3422 = vmul.f32 %v3415, %v133
    %v3423 = vmul.f32 %v3415, %v134
    %v3424 = vmul.f32 %v3415, %v135
    %v3425 = vmul.f32 %v3415, %v136
    %v3426 = vmul.f32 %v3415, %v137
    %v3427 = vmul.f32 %v3415, %v138
    %v3428 = vmul.f32 %v3415, %v139
    %v3429 = vmul.f32 %v3415, %v140
    %v3430 = vmul.f32 %v3415, %v141
    %v3431 = vmul.f32 %v3415, %v142
    %v3432 = vstv %s3358
    %v3433 = vmul.f32 %v3432, %v146
    %v3434 = vadd.f32 %v3416, %v3433
    %v3435 = vadd.f32 %v3417, %v3433
    %v3436 = vadd.f32 %v3418, %v3433
    %v3437 = vadd.f32 %v3419, %v3433
    %v3438 = vadd.f32 %v3420, %v3433
    %v3439 = vadd.f32 %v3421, %v3433
    %v3440 = vadd.f32 %v3422, %v3433
    %v3441 = vadd.f32 %v3423, %v3433
    %v3442 = vadd.f32 %v3424, %v3433
    %v3443 = vadd.f32 %v3425, %v3433
    %v3444 = vadd.f32 %v3426, %v3433
    %v3445 = vadd.f32 %v3427, %v3433
    %v3446 = vadd.f32 %v3428, %v3433
    %v3447 = vadd.f32 %v3429, %v3433
    %v3448 = vadd.f32 %v3430, %v3433
    %v3449 = vadd.f32 %v3431, %v3433
    %v3450 = vstv %s3359
    %v3451 = vadd.f32 %v3434, %v3450
    %v3452 = vadd.f32 %v3435, %v3450
    %v3453 = vadd.f32 %v3436, %v3450
    %v3454 = vadd.f32 %v3437, %v3450
    %v3455 = vadd.f32 %v3438, %v3450
    %v3456 = vadd.f32 %v3439, %v3450
    %v3457 = vadd.f32 %v3440, %v3450
    %v3458 = vadd.f32 %v3441, %v3450
    %v3459 = vadd.f32 %v3442, %v3450
    %v3460 = vadd.f32 %v3443, %v3450
    %v3461 = vadd.f32 %v3444, %v3450
    %v3462 = vadd.f32 %v3445, %v3450
    %v3463 = vadd.f32 %v3446, %v3450
    %v3464 = vadd.f32 %v3447, %v3450
    %v3465 = vadd.f32 %v3448, %v3450
    %v3466 = vadd.f32 %v3449, %v3450
    %v3467 = vstv %s3360
    %v3468 = vmul.f32 %v3467, %v127
    %v3469 = vmul.f32 %v3467, %v128
    %v3470 = vmul.f32 %v3467, %v129
    %v3471 = vmul.f32 %v3467, %v130
    %v3472 = vmul.f32 %v3467, %v131
    %v3473 = vmul.f32 %v3467, %v132
    %v3474 = vmul.f32 %v3467, %v133
    %v3475 = vmul.f32 %v3467, %v134
    %v3476 = vmul.f32 %v3467, %v135
    %v3477 = vmul.f32 %v3467, %v136
    %v3478 = vmul.f32 %v3467, %v137
    %v3479 = vmul.f32 %v3467, %v138
    %v3480 = vmul.f32 %v3467, %v139
    %v3481 = vmul.f32 %v3467, %v140
    %v3482 = vmul.f32 %v3467, %v141
    %v3483 = vmul.f32 %v3467, %v142
    %v3484 = vstv %s3361
    %v3485 = vmul.f32 %v3484, %v146
    %v3486 = vadd.f32 %v3468, %v3485
    %v3487 = vadd.f32 %v3469, %v3485
    %v3488 = vadd.f32 %v3470, %v3485
    %v3489 = vadd.f32 %v3471, %v3485
    %v3490 = vadd.f32 %v3472, %v3485
    %v3491 = vadd.f32 %v3473, %v3485
    %v3492 = vadd.f32 %v3474, %v3485
    %v3493 = vadd.f32 %v3475, %v3485
    %v3494 = vadd.f32 %v3476, %v3485
    %v3495 = vadd.f32 %v3477, %v3485
    %v3496 = vadd.f32 %v3478, %v3485
    %v3497 = vadd.f32 %v3479, %v3485
    %v3498 = vadd.f32 %v3480, %v3485
    %v3499 = vadd.f32 %v3481, %v3485
    %v3500 = vadd.f32 %v3482, %v3485
    %v3501 = vadd.f32 %v3483, %v3485
    %v3502 = vstv %s3362
    %v3503 = vadd.f32 %v3486, %v3502
    %v3504 = vadd.f32 %v3487, %v3502
    %v3505 = vadd.f32 %v3488, %v3502
    %v3506 = vadd.f32 %v3489, %v3502
    %v3507 = vadd.f32 %v3490, %v3502
    %v3508 = vadd.f32 %v3491, %v3502
    %v3509 = vadd.f32 %v3492, %v3502
    %v3510 = vadd.f32 %v3493, %v3502
    %v3511 = vadd.f32 %v3494, %v3502
    %v3512 = vadd.f32 %v3495, %v3502
    %v3513 = vadd.f32 %v3496, %v3502
    %v3514 = vadd.f32 %v3497, %v3502
    %v3515 = vadd.f32 %v3498, %v3502
    %v3516 = vadd.f32 %v3499, %v3502
    %v3517 = vadd.f32 %v3500, %v3502
    %v3518 = vadd.f32 %v3501, %v3502
    %v3519 = vmin.f32 %v3399, %v3451
    %v3520 = vmin.f32 %v3400, %v3452
    %v3521 = vmin.f32 %v3401, %v3453
    %v3522 = vmin.f32 %v3402, %v3454
    %v3523 = vmin.f32 %v3403, %v3455
    %v3524 = vmin.f32 %v3404, %v3456
    %v3525 = vmin.f32 %v3405, %v3457
    %v3526 = vmin.f32 %v3406, %v3458
    %v3527 = vmin.f32 %v3407, %v3459
    %v3528 = vmin.f32 %v3408, %v3460
    %v3529 = vmin.f32 %v3409, %v3461
    %v3530 = vmin.f32 %v3410, %v3462
    %v3531 = vmin.f32 %v3411, %v3463
    %v3532 = vmin.f32 %v3412, %v3464
    %v3533 = vmin.f32 %v3413, %v3465
    %v3534 = vmin.f32 %v3414, %v3466
    %v3535 = vmin.f32 %v3519, %v3503
    %v3536 = vmin.f32 %v3520, %v3504
    %v3537 = vmin.f32 %v3521, %v3505
    %v3538 = vmin.f32 %v3522, %v3506
    %v3539 = vmin.f32 %v3523, %v3507
    %v3540 = vmin.f32 %v3524, %v3508
    %v3541 = vmin.f32 %v3525, %v3509
    %v3542 = vmin.f32 %v3526, %v3510
    %v3543 = vmin.f32 %v3527, %v3511
    %v3544 = vmin.f32 %v3528, %v3512
    %v3545 = vmin.f32 %v3529, %v3513
    %v3546 = vmin.f32 %v3530, %v3514
    %v3547 = vmin.f32 %v3531, %v3515
    %v3548 = vmin.f32 %v3532, %v3516
    %v3549 = vmin.f32 %v3533, %v3517
    %v3550 = vmin.f32 %v3534, %v3518
    %v3551 = vmax.f32 %v3399, %v3451
    %v3552 = vmax.f32 %v3400, %v3452
    %v3553 = vmax.f32 %v3401, %v3453
    %v3554 = vmax.f32 %v3402, %v3454
    %v3555 = vmax.f32 %v3403, %v3455
    %v3556 = vmax.f32 %v3404, %v3456
    %v3557 = vmax.f32 %v3405, %v3457
    %v3558 = vmax.f32 %v3406, %v3458
    %v3559 = vmax.f32 %v3407, %v3459
    %v3560 = vmax.f32 %v3408, %v3460
    %v3561 = vmax.f32 %v3409, %v3461
    %v3562 = vmax.f32 %v3410, %v3462
    %v3563 = vmax.f32 %v3411, %v3463
    %v3564 = vmax.f32 %v3412, %v3464
    %v3565 = vmax.f32 %v3413, %v3465
    %v3566 = vmax.f32 %v3414, %v3466
    %v3567 = vmax.f32 %v3551, %v3503
    %v3568 = vmax.f32 %v3552, %v3504
    %v3569 = vmax.f32 %v3553, %v3505
    %v3570 = vmax.f32 %v3554, %v3506
    %v3571 = vmax.f32 %v3555, %v3507
    %v3572 = vmax.f32 %v3556, %v3508
    %v3573 = vmax.f32 %v3557, %v3509
    %v3574 = vmax.f32 %v3558, %v3510
    %v3575 = vmax.f32 %v3559, %v3511
    %v3576 = vmax.f32 %v3560, %v3512
    %v3577 = vmax.f32 %v3561, %v3513
    %v3578 = vmax.f32 %v3562, %v3514
    %v3579 = vmax.f32 %v3563, %v3515
    %v3580 = vmax.f32 %v3564, %v3516
    %v3581 = vmax.f32 %v3565, %v3517
    %v3582 = vmax.f32 %v3566, %v3518
    %vm3583 = vcmp.ge.f32.partialorder %v3535, 0.0
    %vm3584 = vcmp.ge.f32.partialorder %v3536, 0.0
    %vm3585 = vcmp.ge.f32.partialorder %v3537, 0.0
    %vm3586 = vcmp.ge.f32.partialorder %v3538, 0.0
    %vm3587 = vcmp.ge.f32.partialorder %v3539, 0.0
    %vm3588 = vcmp.ge.f32.partialorder %v3540, 0.0
    %vm3589 = vcmp.ge.f32.partialorder %v3541, 0.0
    %vm3590 = vcmp.ge.f32.partialorder %v3542, 0.0
    %vm3591 = vcmp.ge.f32.partialorder %v3543, 0.0
    %vm3592 = vcmp.ge.f32.partialorder %v3544, 0.0
    %vm3593 = vcmp.ge.f32.partialorder %v3545, 0.0
    %vm3594 = vcmp.ge.f32.partialorder %v3546, 0.0
    %vm3595 = vcmp.ge.f32.partialorder %v3547, 0.0
    %vm3596 = vcmp.ge.f32.partialorder %v3548, 0.0
    %vm3597 = vcmp.ge.f32.partialorder %v3549, 0.0
    %vm3598 = vcmp.ge.f32.partialorder %v3550, 0.0
    %vm3599 = vcmp.le.f32.partialorder %v3567, 0.0
    %vm3600 = vcmp.le.f32.partialorder %v3568, 0.0
    %vm3601 = vcmp.le.f32.partialorder %v3569, 0.0
    %vm3602 = vcmp.le.f32.partialorder %v3570, 0.0
    %vm3603 = vcmp.le.f32.partialorder %v3571, 0.0
    %vm3604 = vcmp.le.f32.partialorder %v3572, 0.0
    %vm3605 = vcmp.le.f32.partialorder %v3573, 0.0
    %vm3606 = vcmp.le.f32.partialorder %v3574, 0.0
    %vm3607 = vcmp.le.f32.partialorder %v3575, 0.0
    %vm3608 = vcmp.le.f32.partialorder %v3576, 0.0
    %vm3609 = vcmp.le.f32.partialorder %v3577, 0.0
    %vm3610 = vcmp.le.f32.partialorder %v3578, 0.0
    %vm3611 = vcmp.le.f32.partialorder %v3579, 0.0
    %vm3612 = vcmp.le.f32.partialorder %v3580, 0.0
    %vm3613 = vcmp.le.f32.partialorder %v3581, 0.0
    %vm3614 = vcmp.le.f32.partialorder %v3582, 0.0
    %vm3615 = vmor %vm3583, %vm3599
    %vm3616 = vmor %vm3584, %vm3600
    %vm3617 = vmor %vm3585, %vm3601
    %vm3618 = vmor %vm3586, %vm3602
    %vm3619 = vmor %vm3587, %vm3603
    %vm3620 = vmor %vm3588, %vm3604
    %vm3621 = vmor %vm3589, %vm3605
    %vm3622 = vmor %vm3590, %vm3606
    %vm3623 = vmor %vm3591, %vm3607
    %vm3624 = vmor %vm3592, %vm3608
    %vm3625 = vmor %vm3593, %vm3609
    %vm3626 = vmor %vm3594, %vm3610
    %vm3627 = vmor %vm3595, %vm3611
    %vm3628 = vmor %vm3596, %vm3612
    %vm3629 = vmor %vm3597, %vm3613
    %vm3630 = vmor %vm3598, %vm3614
    %vm3631 = vmor %vm3338, %vm3615
    %vm3632 = vmor %vm3339, %vm3616
    %vm3633 = vmor %vm3340, %vm3617
    %vm3634 = vmor %vm3341, %vm3618
    %vm3635 = vmor %vm3342, %vm3619
    %vm3636 = vmor %vm3343, %vm3620
    %vm3637 = vmor %vm3344, %vm3621
    %vm3638 = vmor %vm3345, %vm3622
    %vm3639 = vmor %vm3346, %vm3623
    %vm3640 = vmor %vm3347, %vm3624
    %vm3641 = vmor %vm3348, %vm3625
    %vm3642 = vmor %vm3349, %vm3626
    %vm3643 = vmor %vm3350, %vm3627
    %vm3644 = vmor %vm3351, %vm3628
    %vm3645 = vmor %vm3352, %vm3629
    %vm3646 = vmor %vm3353, %vm3630
    %v3647 = vsel %vm3631, 1, 0
    %v3648 = vsel %vm3632, 1, 0
    %v3649 = vsel %vm3633, 1, 0
    %v3650 = vsel %vm3634, 1, 0
    %v3651 = vsel %vm3635, 1, 0
    %v3652 = vsel %vm3636, 1, 0
    %v3653 = vsel %vm3637, 1, 0
    %v3654 = vsel %vm3638, 1, 0
    %v3655 = vsel %vm3639, 1, 0
    %v3656 = vsel %vm3640, 1, 0
    %v3657 = vsel %vm3641, 1, 0
    %v3658 = vsel %vm3642, 1, 0
    %v3659 = vsel %vm3643, 1, 0
    %v3660 = vsel %vm3644, 1, 0
    %v3661 = vsel %vm3645, 1, 0
    %v3662 = vsel %vm3646, 1, 0
    %v3663 = vcvt.s32.f32 %v3647
    %v3664 = vcvt.s32.f32 %v3648
    %v3665 = vcvt.s32.f32 %v3649
    %v3666 = vcvt.s32.f32 %v3650
    %v3667 = vcvt.s32.f32 %v3651
    %v3668 = vcvt.s32.f32 %v3652
    %v3669 = vcvt.s32.f32 %v3653
    %v3670 = vcvt.s32.f32 %v3654
    %v3671 = vcvt.s32.f32 %v3655
    %v3672 = vcvt.s32.f32 %v3656
    %v3673 = vcvt.s32.f32 %v3657
    %v3674 = vcvt.s32.f32 %v3658
    %v3675 = vcvt.s32.f32 %v3659
    %v3676 = vcvt.s32.f32 %v3660
    %v3677 = vcvt.s32.f32 %v3661
    %v3678 = vcvt.s32.f32 %v3662
    %3679 = vst [vmem:[#allocation13] sm:$0xff] %v3663
    %3680 = vst [vmem:[#allocation13 + $0x8] sm:$0xff] %v3664
    %3681 = vst [vmem:[#allocation13 + $0x10] sm:$0xff] %v3665
    %3682 = vst [vmem:[#allocation13 + $0x18] sm:$0xff] %v3666
    %3683 = vst [vmem:[#allocation13 + $0x20] sm:$0xff] %v3667
    %3684 = vst [vmem:[#allocation13 + $0x28] sm:$0xff] %v3668
    %3685 = vst [vmem:[#allocation13 + $0x30] sm:$0xff] %v3669
    %3686 = vst [vmem:[#allocation13 + $0x38] sm:$0xff] %v3670
    %3687 = vst [vmem:[#allocation13 + $0x40] sm:$0xff] %v3671
    %3688 = vst [vmem:[#allocation13 + $0x48] sm:$0xff] %v3672
    %3689 = vst [vmem:[#allocation13 + $0x50] sm:$0xff] %v3673
    %3690 = vst [vmem:[#allocation13 + $0x58] sm:$0xff] %v3674
    %3691 = vst [vmem:[#allocation13 + $0x60] sm:$0xff] %v3675
    %3692 = vst [vmem:[#allocation13 + $0x68] sm:$0xff] %v3676
    %3693 = vst [vmem:[#allocation13 + $0x70] sm:$0xff] %v3677
    %3694 = vst [vmem:[#allocation13 + $0x78] sm:$0xff] %v3678
    %v3695 = vld [vmem:[#allocation7] sm:$0xff]
    %v3696 = vld [vmem:[#allocation7 + $0x8] sm:$0xff]
    %v3697 = vld [vmem:[#allocation7 + $0x10] sm:$0xff]
    %v3698 = vld [vmem:[#allocation7 + $0x18] sm:$0xff]
    %v3699 = vld [vmem:[#allocation7 + $0x20] sm:$0xff]
    %v3700 = vld [vmem:[#allocation7 + $0x28] sm:$0xff]
    %v3701 = vld [vmem:[#allocation7 + $0x30] sm:$0xff]
    %v3702 = vld [vmem:[#allocation7 + $0x38] sm:$0xff]
    %v3703 = vld [vmem:[#allocation7 + $0x40] sm:$0xff]
    %v3704 = vld [vmem:[#allocation7 + $0x48] sm:$0xff]
    %v3705 = vld [vmem:[#allocation7 + $0x50] sm:$0xff]
    %v3706 = vld [vmem:[#allocation7 + $0x58] sm:$0xff]
    %v3707 = vld [vmem:[#allocation7 + $0x60] sm:$0xff]
    %v3708 = vld [vmem:[#allocation7 + $0x68] sm:$0xff]
    %v3709 = vld [vmem:[#allocation7 + $0x70] sm:$0xff]
    %v3710 = vld [vmem:[#allocation7 + $0x78] sm:$0xff]
    %v3711 = vld [vmem:[#allocation8] sm:$0xff]
    %v3712 = vld [vmem:[#allocation8 + $0x8] sm:$0xff]
    %v3713 = vld [vmem:[#allocation8 + $0x10] sm:$0xff]
    %v3714 = vld [vmem:[#allocation8 + $0x18] sm:$0xff]
    %v3715 = vld [vmem:[#allocation8 + $0x20] sm:$0xff]
    %v3716 = vld [vmem:[#allocation8 + $0x28] sm:$0xff]
    %v3717 = vld [vmem:[#allocation8 + $0x30] sm:$0xff]
    %v3718 = vld [vmem:[#allocation8 + $0x38] sm:$0xff]
    %v3719 = vld [vmem:[#allocation8 + $0x40] sm:$0xff]
    %v3720 = vld [vmem:[#allocation8 + $0x48] sm:$0xff]
    %v3721 = vld [vmem:[#allocation8 + $0x50] sm:$0xff]
    %v3722 = vld [vmem:[#allocation8 + $0x58] sm:$0xff]
    %v3723 = vld [vmem:[#allocation8 + $0x60] sm:$0xff]
    %v3724 = vld [vmem:[#allocation8 + $0x68] sm:$0xff]
    %v3725 = vld [vmem:[#allocation8 + $0x70] sm:$0xff]
    %v3726 = vld [vmem:[#allocation8 + $0x78] sm:$0xff]
    %v3727 = vld [vmem:[#allocation10] sm:$0xff]
    %v3728 = vld [vmem:[#allocation10 + $0x8] sm:$0xff]
    %v3729 = vld [vmem:[#allocation10 + $0x10] sm:$0xff]
    %v3730 = vld [vmem:[#allocation10 + $0x18] sm:$0xff]
    %v3731 = vld [vmem:[#allocation10 + $0x20] sm:$0xff]
    %v3732 = vld [vmem:[#allocation10 + $0x28] sm:$0xff]
    %v3733 = vld [vmem:[#allocation10 + $0x30] sm:$0xff]
    %v3734 = vld [vmem:[#allocation10 + $0x38] sm:$0xff]
    %v3735 = vld [vmem:[#allocation10 + $0x40] sm:$0xff]
    %v3736 = vld [vmem:[#allocation10 + $0x48] sm:$0xff]
    %v3737 = vld [vmem:[#allocation10 + $0x50] sm:$0xff]
    %v3738 = vld [vmem:[#allocation10 + $0x58] sm:$0xff]
    %v3739 = vld [vmem:[#allocation10 + $0x60] sm:$0xff]
    %v3740 = vld [vmem:[#allocation10 + $0x68] sm:$0xff]
    %v3741 = vld [vmem:[#allocation10 + $0x70] sm:$0xff]
    %v3742 = vld [vmem:[#allocation10 + $0x78] sm:$0xff]
    %v3743 = vld [vmem:[#allocation11] sm:$0xff]
    %v3744 = vld [vmem:[#allocation11 + $0x8] sm:$0xff]
    %v3745 = vld [vmem:[#allocation11 + $0x10] sm:$0xff]
    %v3746 = vld [vmem:[#allocation11 + $0x18] sm:$0xff]
    %v3747 = vld [vmem:[#allocation11 + $0x20] sm:$0xff]
    %v3748 = vld [vmem:[#allocation11 + $0x28] sm:$0xff]
    %v3749 = vld [vmem:[#allocation11 + $0x30] sm:$0xff]
    %v3750 = vld [vmem:[#allocation11 + $0x38] sm:$0xff]
    %v3751 = vld [vmem:[#allocation11 + $0x40] sm:$0xff]
    %v3752 = vld [vmem:[#allocation11 + $0x48] sm:$0xff]
    %v3753 = vld [vmem:[#allocation11 + $0x50] sm:$0xff]
    %v3754 = vld [vmem:[#allocation11 + $0x58] sm:$0xff]
    %v3755 = vld [vmem:[#allocation11 + $0x60] sm:$0xff]
    %v3756 = vld [vmem:[#allocation11 + $0x68] sm:$0xff]
    %v3757 = vld [vmem:[#allocation11 + $0x70] sm:$0xff]
    %v3758 = vld [vmem:[#allocation11 + $0x78] sm:$0xff]
    %3759 = vmatprep.subr.mxu0 0.0
    %3760 = vmatpush1.msra.mxu0 %v3678
    %3761 = vmatprep.subr.mxu0 0.0
    %3762 = vmatpush1.msra.mxu0 %v3677
    %3763 = vmatprep.subr.mxu0 0.0
    %3764 = vmatpush1.msra.mxu0 %v3676
    %3765 = vmatprep.subr.mxu0 0.0
    %3766 = vmatpush1.msra.mxu0 %v3675
    %3767 = vmatprep.subr.mxu0 0.0
    %3768 = vmatpush1.msra.mxu0 %v3674
    %3769 = vmatprep.subr.mxu0 0.0
    %3770 = vmatpush1.msra.mxu0 %v3673
    %3771 = vmatprep.subr.mxu0 0.0
    %3772 = vmatpush1.msra.mxu0 %v3672
    %3773 = vmatprep.subr.mxu0 0.0
    %3774 = vmatpush1.msra.mxu0 %v3671
    %3775 = vmatprep.subr.mxu0 0.0
    %3776 = vmatpush1.msra.mxu0 %v3670
    %3777 = vmatprep.subr.mxu0 0.0
    %3778 = vmatpush1.msra.mxu0 %v3669
    %3779 = vmatprep.subr.mxu0 0.0
    %3780 = vmatpush1.msra.mxu0 %v3668
    %3781 = vmatprep.subr.mxu0 0.0
    %3782 = vmatpush1.msra.mxu0 %v3667
    %3783 = vmatprep.subr.mxu0 0.0
    %3784 = vmatpush1.msra.mxu0 %v3666
    %3785 = vmatprep.subr.mxu0 0.0
    %3786 = vmatpush1.msra.mxu0 %v3665
    %3787 = vmatprep.subr.mxu0 0.0
    %3788 = vmatpush1.msra.mxu0 %v3664
    %3789 = vmatprep.subr.mxu0 0.0
    %3790 = vmatpush1.msra.mxu0 %v3663
    %3791 = vmatprep.subr.mxu0 0.0
    %3792 = vmatpush2.msra.mxu0 0.0
    %3793 = vmatprep.subr.mxu0 0.0
    %3794 = vmatpush2.msra.mxu0 0.0
    %3795 = vmatprep.subr.mxu0 0.0
    %3796 = vmatpush2.msra.mxu0 0.0
    %3797 = vmatprep.subr.mxu0 0.0
    %3798 = vmatpush2.msra.mxu0 0.0
    %3799 = vmatprep.subr.mxu0 0.0
    %3800 = vmatpush2.msra.mxu0 0.0
    %3801 = vmatprep.subr.mxu0 0.0
    %3802 = vmatpush2.msra.mxu0 0.0
    %3803 = vmatprep.subr.mxu0 0.0
    %3804 = vmatpush2.msra.mxu0 0.0
    %3805 = vmatprep.subr.mxu0 0.0
    %3806 = vmatpush2.msra.mxu0 0.0
    %3807 = vmatprep.subr.mxu0 0.0
    %3808 = vmatpush2.msra.mxu0 0.0
    %3809 = vmatprep.subr.mxu0 0.0
    %3810 = vmatpush2.msra.mxu0 0.0
    %3811 = vmatprep.subr.mxu0 0.0
    %3812 = vmatpush2.msra.mxu0 0.0
    %3813 = vmatprep.subr.mxu0 0.0
    %3814 = vmatpush2.msra.mxu0 0.0
    %3815 = vmatprep.subr.mxu0 0.0
    %3816 = vmatpush2.msra.mxu0 0.0
    %3817 = vmatprep.subr.mxu0 0.0
    %3818 = vmatpush2.msra.mxu0 0.0
    %3819 = vmatprep.subr.mxu0 0.0
    %3820 = vmatpush2.msra.mxu0 0.0
    %3821 = vmatprep.subr.mxu0 0.0
    %3822 = vmatpush2.msra.mxu0 0.0
    %3823 = vmatprep.mubr.f32.mxu0 0.0
    %3824 = vmatmul.mubr.f32.gmra.mxu0 %v3695
    %v3825 = vpop.f32.mrf.mxu0
    %v3826 = vadd.f32 0.0, %v3825
    %v3827 = vpop.f32.mrf.mxu0
    %3828 = vmatprep.mubr.f32.mxu0 0.0
    %3829 = vmatmul.mubr.f32.gmra.mxu0 %v3696
    %v3830 = vpop.f32.mrf.mxu0
    %v3831 = vadd.f32 0.0, %v3830
    %v3832 = vpop.f32.mrf.mxu0
    %3833 = vmatprep.mubr.f32.mxu0 0.0
    %3834 = vmatmul.mubr.f32.gmra.mxu0 %v3697
    %v3835 = vpop.f32.mrf.mxu0
    %v3836 = vadd.f32 0.0, %v3835
    %v3837 = vpop.f32.mrf.mxu0
    %3838 = vmatprep.mubr.f32.mxu0 0.0
    %3839 = vmatmul.mubr.f32.gmra.mxu0 %v3698
    %v3840 = vpop.f32.mrf.mxu0
    %v3841 = vadd.f32 0.0, %v3840
    %v3842 = vpop.f32.mrf.mxu0
    %3843 = vmatprep.mubr.f32.mxu0 0.0
    %3844 = vmatmul.mubr.f32.gmra.mxu0 %v3699
    %v3845 = vpop.f32.mrf.mxu0
    %v3846 = vadd.f32 0.0, %v3845
    %v3847 = vpop.f32.mrf.mxu0
    %3848 = vmatprep.mubr.f32.mxu0 0.0
    %3849 = vmatmul.mubr.f32.gmra.mxu0 %v3700
    %v3850 = vpop.f32.mrf.mxu0
    %v3851 = vadd.f32 0.0, %v3850
    %v3852 = vpop.f32.mrf.mxu0
    %3853 = vmatprep.mubr.f32.mxu0 0.0
    %3854 = vmatmul.mubr.f32.gmra.mxu0 %v3701
    %v3855 = vpop.f32.mrf.mxu0
    %v3856 = vadd.f32 0.0, %v3855
    %v3857 = vpop.f32.mrf.mxu0
    %3858 = vmatprep.mubr.f32.mxu0 0.0
    %3859 = vmatmul.mubr.f32.gmra.mxu0 %v3702
    %v3860 = vpop.f32.mrf.mxu0
    %v3861 = vadd.f32 0.0, %v3860
    %v3862 = vpop.f32.mrf.mxu0
    %3863 = vmatprep.mubr.f32.mxu0 0.0
    %3864 = vmatmul.mubr.f32.gmra.mxu0 %v3703
    %v3865 = vpop.f32.mrf.mxu0
    %v3866 = vadd.f32 0.0, %v3865
    %v3867 = vpop.f32.mrf.mxu0
    %3868 = vmatprep.mubr.f32.mxu0 0.0
    %3869 = vmatmul.mubr.f32.gmra.mxu0 %v3704
    %v3870 = vpop.f32.mrf.mxu0
    %v3871 = vadd.f32 0.0, %v3870
    %v3872 = vpop.f32.mrf.mxu0
    %3873 = vmatprep.mubr.f32.mxu0 0.0
    %3874 = vmatmul.mubr.f32.gmra.mxu0 %v3705
    %v3875 = vpop.f32.mrf.mxu0
    %v3876 = vadd.f32 0.0, %v3875
    %v3877 = vpop.f32.mrf.mxu0
    %3878 = vmatprep.mubr.f32.mxu0 0.0
    %3879 = vmatmul.mubr.f32.gmra.mxu0 %v3706
    %v3880 = vpop.f32.mrf.mxu0
    %v3881 = vadd.f32 0.0, %v3880
    %v3882 = vpop.f32.mrf.mxu0
    %3883 = vmatprep.mubr.f32.mxu0 0.0
    %3884 = vmatmul.mubr.f32.gmra.mxu0 %v3707
    %v3885 = vpop.f32.mrf.mxu0
    %v3886 = vadd.f32 0.0, %v3885
    %v3887 = vpop.f32.mrf.mxu0
    %3888 = vmatprep.mubr.f32.mxu0 0.0
    %3889 = vmatmul.mubr.f32.gmra.mxu0 %v3708
    %v3890 = vpop.f32.mrf.mxu0
    %v3891 = vadd.f32 0.0, %v3890
    %v3892 = vpop.f32.mrf.mxu0
    %3893 = vmatprep.mubr.f32.mxu0 0.0
    %3894 = vmatmul.mubr.f32.gmra.mxu0 %v3709
    %v3895 = vpop.f32.mrf.mxu0
    %v3896 = vadd.f32 0.0, %v3895
    %v3897 = vpop.f32.mrf.mxu0
    %3898 = vmatprep.mubr.f32.mxu0 0.0
    %3899 = vmatmul.mubr.f32.gmra.mxu0 %v3710
    %v3900 = vpop.f32.mrf.mxu0
    %v3901 = vadd.f32 0.0, %v3900
    %v3902 = vpop.f32.mrf.mxu0
    %3903 = vdwg.mxu0
    %3904 = vmatprep.subr.mxu0 0.0
    %3905 = vmatpush1.msra.mxu0 %v3710
    %3906 = vmatprep.subr.mxu0 0.0
    %3907 = vmatpush1.msra.mxu0 %v3709
    %3908 = vmatprep.subr.mxu0 0.0
    %3909 = vmatpush1.msra.mxu0 %v3708
    %3910 = vmatprep.subr.mxu0 0.0
    %3911 = vmatpush1.msra.mxu0 %v3707
    %3912 = vmatprep.subr.mxu0 0.0
    %3913 = vmatpush1.msra.mxu0 %v3706
    %3914 = vmatprep.subr.mxu0 0.0
    %3915 = vmatpush1.msra.mxu0 %v3705
    %3916 = vmatprep.subr.mxu0 0.0
    %3917 = vmatpush1.msra.mxu0 %v3704
    %3918 = vmatprep.subr.mxu0 0.0
    %3919 = vmatpush1.msra.mxu0 %v3703
    %3920 = vmatprep.subr.mxu0 0.0
    %3921 = vmatpush1.msra.mxu0 %v3702
    %3922 = vmatprep.subr.mxu0 0.0
    %3923 = vmatpush1.msra.mxu0 %v3701
    %3924 = vmatprep.subr.mxu0 0.0
    %3925 = vmatpush1.msra.mxu0 %v3700
    %3926 = vmatprep.subr.mxu0 0.0
    %3927 = vmatpush1.msra.mxu0 %v3699
    %3928 = vmatprep.subr.mxu0 0.0
    %3929 = vmatpush1.msra.mxu0 %v3698
    %3930 = vmatprep.subr.mxu0 0.0
    %3931 = vmatpush1.msra.mxu0 %v3697
    %3932 = vmatprep.subr.mxu0 0.0
    %3933 = vmatpush1.msra.mxu0 %v3696
    %3934 = vmatprep.subr.mxu0 0.0
    %3935 = vmatpush1.msra.mxu0 %v3695
    %3936 = vmatprep.subr.mxu0 0.0
    %3937 = vmatpush2.msra.mxu0 0.0
    %3938 = vmatprep.subr.mxu0 0.0
    %3939 = vmatpush2.msra.mxu0 0.0
    %3940 = vmatprep.subr.mxu0 0.0
    %3941 = vmatpush2.msra.mxu0 0.0
    %3942 = vmatprep.subr.mxu0 0.0
    %3943 = vmatpush2.msra.mxu0 0.0
    %3944 = vmatprep.subr.mxu0 0.0
    %3945 = vmatpush2.msra.mxu0 0.0
    %3946 = vmatprep.subr.mxu0 0.0
    %3947 = vmatpush2.msra.mxu0 0.0
    %3948 = vmatprep.subr.mxu0 0.0
    %3949 = vmatpush2.msra.mxu0 0.0
    %3950 = vmatprep.subr.mxu0 0.0
    %3951 = vmatpush2.msra.mxu0 0.0
    %3952 = vmatprep.subr.mxu0 0.0
    %3953 = vmatpush2.msra.mxu0 0.0
    %3954 = vmatprep.subr.mxu0 0.0
    %3955 = vmatpush2.msra.mxu0 0.0
    %3956 = vmatprep.subr.mxu0 0.0
    %3957 = vmatpush2.msra.mxu0 0.0
    %3958 = vmatprep.subr.mxu0 0.0
    %3959 = vmatpush2.msra.mxu0 0.0
    %3960 = vmatprep.subr.mxu0 0.0
    %3961 = vmatpush2.msra.mxu0 0.0
    %3962 = vmatprep.subr.mxu0 0.0
    %3963 = vmatpush2.msra.mxu0 0.0
    %3964 = vmatprep.subr.mxu0 0.0
    %3965 = vmatpush2.msra.mxu0 0.0
    %3966 = vmatprep.subr.mxu0 0.0
    %3967 = vmatpush2.msra.mxu0 0.0
    %3968 = vmatprep.mubr.f32.mxu0 0.0
    %3969 = vmatmul.mubr.f32.gmra.mxu0 %v3826
    %v3970 = vpop.f32.mrf.mxu0
    %v3971 = vadd.f32 0.0, %v3970
    %v3972 = vpop.f32.mrf.mxu0
    %3973 = vmatprep.mubr.f32.mxu0 0.0
    %3974 = vmatmul.mubr.f32.gmra.mxu0 %v3831
    %v3975 = vpop.f32.mrf.mxu0
    %v3976 = vadd.f32 0.0, %v3975
    %v3977 = vpop.f32.mrf.mxu0
    %3978 = vmatprep.mubr.f32.mxu0 0.0
    %3979 = vmatmul.mubr.f32.gmra.mxu0 %v3836
    %v3980 = vpop.f32.mrf.mxu0
    %v3981 = vadd.f32 0.0, %v3980
    %v3982 = vpop.f32.mrf.mxu0
    %3983 = vmatprep.mubr.f32.mxu0 0.0
    %3984 = vmatmul.mubr.f32.gmra.mxu0 %v3841
    %v3985 = vpop.f32.mrf.mxu0
    %v3986 = vadd.f32 0.0, %v3985
    %v3987 = vpop.f32.mrf.mxu0
    %3988 = vmatprep.mubr.f32.mxu0 0.0
    %3989 = vmatmul.mubr.f32.gmra.mxu0 %v3846
    %v3990 = vpop.f32.mrf.mxu0
    %v3991 = vadd.f32 0.0, %v3990
    %v3992 = vpop.f32.mrf.mxu0
    %3993 = vmatprep.mubr.f32.mxu0 0.0
    %3994 = vmatmul.mubr.f32.gmra.mxu0 %v3851
    %v3995 = vpop.f32.mrf.mxu0
    %v3996 = vadd.f32 0.0, %v3995
    %v3997 = vpop.f32.mrf.mxu0
    %3998 = vmatprep.mubr.f32.mxu0 0.0
    %3999 = vmatmul.mubr.f32.gmra.mxu0 %v3856
    %v4000 = vpop.f32.mrf.mxu0
    %v4001 = vadd.f32 0.0, %v4000
    %v4002 = vpop.f32.mrf.mxu0
    %4003 = vmatprep.mubr.f32.mxu0 0.0
    %4004 = vmatmul.mubr.f32.gmra.mxu0 %v3861
    %v4005 = vpop.f32.mrf.mxu0
    %v4006 = vadd.f32 0.0, %v4005
    %v4007 = vpop.f32.mrf.mxu0
    %4008 = vmatprep.mubr.f32.mxu0 0.0
    %4009 = vmatmul.mubr.f32.gmra.mxu0 %v3866
    %v4010 = vpop.f32.mrf.mxu0
    %v4011 = vadd.f32 0.0, %v4010
    %v4012 = vpop.f32.mrf.mxu0
    %4013 = vmatprep.mubr.f32.mxu0 0.0
    %4014 = vmatmul.mubr.f32.gmra.mxu0 %v3871
    %v4015 = vpop.f32.mrf.mxu0
    %v4016 = vadd.f32 0.0, %v4015
    %v4017 = vpop.f32.mrf.mxu0
    %4018 = vmatprep.mubr.f32.mxu0 0.0
    %4019 = vmatmul.mubr.f32.gmra.mxu0 %v3876
    %v4020 = vpop.f32.mrf.mxu0
    %v4021 = vadd.f32 0.0, %v4020
    %v4022 = vpop.f32.mrf.mxu0
    %4023 = vmatprep.mubr.f32.mxu0 0.0
    %4024 = vmatmul.mubr.f32.gmra.mxu0 %v3881
    %v4025 = vpop.f32.mrf.mxu0
    %v4026 = vadd.f32 0.0, %v4025
    %v4027 = vpop.f32.mrf.mxu0
    %4028 = vmatprep.mubr.f32.mxu0 0.0
    %4029 = vmatmul.mubr.f32.gmra.mxu0 %v3886
    %v4030 = vpop.f32.mrf.mxu0
    %v4031 = vadd.f32 0.0, %v4030
    %v4032 = vpop.f32.mrf.mxu0
    %4033 = vmatprep.mubr.f32.mxu0 0.0
    %4034 = vmatmul.mubr.f32.gmra.mxu0 %v3891
    %v4035 = vpop.f32.mrf.mxu0
    %v4036 = vadd.f32 0.0, %v4035
    %v4037 = vpop.f32.mrf.mxu0
    %4038 = vmatprep.mubr.f32.mxu0 0.0
    %4039 = vmatmul.mubr.f32.gmra.mxu0 %v3896
    %v4040 = vpop.f32.mrf.mxu0
    %v4041 = vadd.f32 0.0, %v4040
    %v4042 = vpop.f32.mrf.mxu0
    %4043 = vmatprep.mubr.f32.mxu0 0.0
    %4044 = vmatmul.mubr.f32.gmra.mxu0 %v3901
    %v4045 = vpop.f32.mrf.mxu0
    %v4046 = vadd.f32 0.0, %v4045
    %v4047 = vpop.f32.mrf.mxu0
    %4048 = vdwg.mxu0
    %4049 = vmatprep.subr.mxu0 0.0
    %4050 = vmatpush1.msra.mxu0 %v4046
    %4051 = vmatprep.subr.mxu0 0.0
    %4052 = vmatpush1.msra.mxu0 %v4041
    %4053 = vmatprep.subr.mxu0 0.0
    %4054 = vmatpush1.msra.mxu0 %v4036
    %4055 = vmatprep.subr.mxu0 0.0
    %4056 = vmatpush1.msra.mxu0 %v4031
    %4057 = vmatprep.subr.mxu0 0.0
    %4058 = vmatpush1.msra.mxu0 %v4026
    %4059 = vmatprep.subr.mxu0 0.0
    %4060 = vmatpush1.msra.mxu0 %v4021
    %4061 = vmatprep.subr.mxu0 0.0
    %4062 = vmatpush1.msra.mxu0 %v4016
    %4063 = vmatprep.subr.mxu0 0.0
    %4064 = vmatpush1.msra.mxu0 %v4011
    %4065 = vmatprep.subr.mxu0 0.0
    %4066 = vmatpush1.msra.mxu0 %v4006
    %4067 = vmatprep.subr.mxu0 0.0
    %4068 = vmatpush1.msra.mxu0 %v4001
    %4069 = vmatprep.subr.mxu0 0.0
    %4070 = vmatpush1.msra.mxu0 %v3996
    %4071 = vmatprep.subr.mxu0 0.0
    %4072 = vmatpush1.msra.mxu0 %v3991
    %4073 = vmatprep.subr.mxu0 0.0
    %4074 = vmatpush1.msra.mxu0 %v3986
    %4075 = vmatprep.subr.mxu0 0.0
    %4076 = vmatpush1.msra.mxu0 %v3981
    %4077 = vmatprep.subr.mxu0 0.0
    %4078 = vmatpush1.msra.mxu0 %v3976
    %4079 = vmatprep.subr.mxu0 0.0
    %4080 = vmatpush1.msra.mxu0 %v3971
    %4081 = vmatprep.subr.mxu0 0.0
    %4082 = vmatpush2.msra.mxu0 0.0
    %4083 = vmatprep.subr.mxu0 0.0
    %4084 = vmatpush2.msra.mxu0 0.0
    %4085 = vmatprep.subr.mxu0 0.0
    %4086 = vmatpush2.msra.mxu0 0.0
    %4087 = vmatprep.subr.mxu0 0.0
    %4088 = vmatpush2.msra.mxu0 0.0
    %4089 = vmatprep.subr.mxu0 0.0
    %4090 = vmatpush2.msra.mxu0 0.0
    %4091 = vmatprep.subr.mxu0 0.0
    %4092 = vmatpush2.msra.mxu0 0.0
    %4093 = vmatprep.subr.mxu0 0.0
    %4094 = vmatpush2.msra.mxu0 0.0
    %4095 = vmatprep.subr.mxu0 0.0
    %4096 = vmatpush2.msra.mxu0 0.0
    %4097 = vmatprep.subr.mxu0 0.0
    %4098 = vmatpush2.msra.mxu0 0.0
    %4099 = vmatprep.subr.mxu0 0.0
    %4100 = vmatpush2.msra.mxu0 0.0
    %4101 = vmatprep.subr.mxu0 0.0
    %4102 = vmatpush2.msra.mxu0 0.0
    %4103 = vmatprep.subr.mxu0 0.0
    %4104 = vmatpush2.msra.mxu0 0.0
    %4105 = vmatprep.subr.mxu0 0.0
    %4106 = vmatpush2.msra.mxu0 0.0
    %4107 = vmatprep.subr.mxu0 0.0
    %4108 = vmatpush2.msra.mxu0 0.0
    %4109 = vmatprep.subr.mxu0 0.0
    %4110 = vmatpush2.msra.mxu0 0.0
    %4111 = vmatprep.subr.mxu0 0.0
    %4112 = vmatpush2.msra.mxu0 0.0
    %4113 = vmatprep.mubr.f32.mxu0 0.0
    %4114 = vmatmul.mubr.f32.gmra.mxu0 %v3711
    %v4115 = vpop.f32.mrf.mxu0
    %v4116 = vadd.f32 0.0, %v4115
    %v4117 = vpop.f32.mrf.mxu0
    %4118 = vmatprep.mubr.f32.mxu0 0.0
    %4119 = vmatmul.mubr.f32.gmra.mxu0 %v3712
    %v4120 = vpop.f32.mrf.mxu0
    %v4121 = vadd.f32 0.0, %v4120
    %v4122 = vpop.f32.mrf.mxu0
    %4123 = vmatprep.mubr.f32.mxu0 0.0
    %4124 = vmatmul.mubr.f32.gmra.mxu0 %v3713
    %v4125 = vpop.f32.mrf.mxu0
    %v4126 = vadd.f32 0.0, %v4125
    %v4127 = vpop.f32.mrf.mxu0
    %4128 = vmatprep.mubr.f32.mxu0 0.0
    %4129 = vmatmul.mubr.f32.gmra.mxu0 %v3714
    %v4130 = vpop.f32.mrf.mxu0
    %v4131 = vadd.f32 0.0, %v4130
    %v4132 = vpop.f32.mrf.mxu0
    %4133 = vmatprep.mubr.f32.mxu0 0.0
    %4134 = vmatmul.mubr.f32.gmra.mxu0 %v3715
    %v4135 = vpop.f32.mrf.mxu0
    %v4136 = vadd.f32 0.0, %v4135
    %v4137 = vpop.f32.mrf.mxu0
    %4138 = vmatprep.mubr.f32.mxu0 0.0
    %4139 = vmatmul.mubr.f32.gmra.mxu0 %v3716
    %v4140 = vpop.f32.mrf.mxu0
    %v4141 = vadd.f32 0.0, %v4140
    %v4142 = vpop.f32.mrf.mxu0
    %4143 = vmatprep.mubr.f32.mxu0 0.0
    %4144 = vmatmul.mubr.f32.gmra.mxu0 %v3717
    %v4145 = vpop.f32.mrf.mxu0
    %v4146 = vadd.f32 0.0, %v4145
    %v4147 = vpop.f32.mrf.mxu0
    %4148 = vmatprep.mubr.f32.mxu0 0.0
    %4149 = vmatmul.mubr.f32.gmra.mxu0 %v3718
    %v4150 = vpop.f32.mrf.mxu0
    %v4151 = vadd.f32 0.0, %v4150
    %v4152 = vpop.f32.mrf.mxu0
    %4153 = vmatprep.mubr.f32.mxu0 0.0
    %4154 = vmatmul.mubr.f32.gmra.mxu0 %v3719
    %v4155 = vpop.f32.mrf.mxu0
    %v4156 = vadd.f32 0.0, %v4155
    %v4157 = vpop.f32.mrf.mxu0
    %4158 = vmatprep.mubr.f32.mxu0 0.0
    %4159 = vmatmul.mubr.f32.gmra.mxu0 %v3720
    %v4160 = vpop.f32.mrf.mxu0
    %v4161 = vadd.f32 0.0, %v4160
    %v4162 = vpop.f32.mrf.mxu0
    %4163 = vmatprep.mubr.f32.mxu0 0.0
    %4164 = vmatmul.mubr.f32.gmra.mxu0 %v3721
    %v4165 = vpop.f32.mrf.mxu0
    %v4166 = vadd.f32 0.0, %v4165
    %v4167 = vpop.f32.mrf.mxu0
    %4168 = vmatprep.mubr.f32.mxu0 0.0
    %4169 = vmatmul.mubr.f32.gmra.mxu0 %v3722
    %v4170 = vpop.f32.mrf.mxu0
    %v4171 = vadd.f32 0.0, %v4170
    %v4172 = vpop.f32.mrf.mxu0
    %4173 = vmatprep.mubr.f32.mxu0 0.0
    %4174 = vmatmul.mubr.f32.gmra.mxu0 %v3723
    %v4175 = vpop.f32.mrf.mxu0
    %v4176 = vadd.f32 0.0, %v4175
    %v4177 = vpop.f32.mrf.mxu0
    %4178 = vmatprep.mubr.f32.mxu0 0.0
    %4179 = vmatmul.mubr.f32.gmra.mxu0 %v3724
    %v4180 = vpop.f32.mrf.mxu0
    %v4181 = vadd.f32 0.0, %v4180
    %v4182 = vpop.f32.mrf.mxu0
    %4183 = vmatprep.mubr.f32.mxu0 0.0
    %4184 = vmatmul.mubr.f32.gmra.mxu0 %v3725
    %v4185 = vpop.f32.mrf.mxu0
    %v4186 = vadd.f32 0.0, %v4185
    %v4187 = vpop.f32.mrf.mxu0
    %4188 = vmatprep.mubr.f32.mxu0 0.0
    %4189 = vmatmul.mubr.f32.gmra.mxu0 %v3726
    %v4190 = vpop.f32.mrf.mxu0
    %v4191 = vadd.f32 0.0, %v4190
    %v4192 = vpop.f32.mrf.mxu0
    %4193 = vdwg.mxu0
    %4194 = vmatprep.subr.mxu0 0.0
    %4195 = vmatpush1.msra.mxu0 %v3758
    %4196 = vmatprep.subr.mxu0 0.0
    %4197 = vmatpush1.msra.mxu0 %v3757
    %4198 = vmatprep.subr.mxu0 0.0
    %4199 = vmatpush1.msra.mxu0 %v3756
    %4200 = vmatprep.subr.mxu0 0.0
    %4201 = vmatpush1.msra.mxu0 %v3755
    %4202 = vmatprep.subr.mxu0 0.0
    %4203 = vmatpush1.msra.mxu0 %v3754
    %4204 = vmatprep.subr.mxu0 0.0
    %4205 = vmatpush1.msra.mxu0 %v3753
    %4206 = vmatprep.subr.mxu0 0.0
    %4207 = vmatpush1.msra.mxu0 %v3752
    %4208 = vmatprep.subr.mxu0 0.0
    %4209 = vmatpush1.msra.mxu0 %v3751
    %4210 = vmatprep.subr.mxu0 0.0
    %4211 = vmatpush1.msra.mxu0 %v3750
    %4212 = vmatprep.subr.mxu0 0.0
    %4213 = vmatpush1.msra.mxu0 %v3749
    %4214 = vmatprep.subr.mxu0 0.0
    %4215 = vmatpush1.msra.mxu0 %v3748
    %4216 = vmatprep.subr.mxu0 0.0
    %4217 = vmatpush1.msra.mxu0 %v3747
    %4218 = vmatprep.subr.mxu0 0.0
    %4219 = vmatpush1.msra.mxu0 %v3746
    %4220 = vmatprep.subr.mxu0 0.0
    %4221 = vmatpush1.msra.mxu0 %v3745
    %4222 = vmatprep.subr.mxu0 0.0
    %4223 = vmatpush1.msra.mxu0 %v3744
    %4224 = vmatprep.subr.mxu0 0.0
    %4225 = vmatpush1.msra.mxu0 %v3743
    %4226 = vmatprep.subr.mxu0 0.0
    %4227 = vmatpush2.msra.mxu0 0.0
    %4228 = vmatprep.subr.mxu0 0.0
    %4229 = vmatpush2.msra.mxu0 0.0
    %4230 = vmatprep.subr.mxu0 0.0
    %4231 = vmatpush2.msra.mxu0 0.0
    %4232 = vmatprep.subr.mxu0 0.0
    %4233 = vmatpush2.msra.mxu0 0.0
    %4234 = vmatprep.subr.mxu0 0.0
    %4235 = vmatpush2.msra.mxu0 0.0
    %4236 = vmatprep.subr.mxu0 0.0
    %4237 = vmatpush2.msra.mxu0 0.0
    %4238 = vmatprep.subr.mxu0 0.0
    %4239 = vmatpush2.msra.mxu0 0.0
    %4240 = vmatprep.subr.mxu0 0.0
    %4241 = vmatpush2.msra.mxu0 0.0
    %4242 = vmatprep.subr.mxu0 0.0
    %4243 = vmatpush2.msra.mxu0 0.0
    %4244 = vmatprep.subr.mxu0 0.0
    %4245 = vmatpush2.msra.mxu0 0.0
    %4246 = vmatprep.subr.mxu0 0.0
    %4247 = vmatpush2.msra.mxu0 0.0
    %4248 = vmatprep.subr.mxu0 0.0
    %4249 = vmatpush2.msra.mxu0 0.0
    %4250 = vmatprep.subr.mxu0 0.0
    %4251 = vmatpush2.msra.mxu0 0.0
    %4252 = vmatprep.subr.mxu0 0.0
    %4253 = vmatpush2.msra.mxu0 0.0
    %4254 = vmatprep.subr.mxu0 0.0
    %4255 = vmatpush2.msra.mxu0 0.0
    %4256 = vmatprep.subr.mxu0 0.0
    %4257 = vmatpush2.msra.mxu0 0.0
    %4258 = vmatprep.mubr.f32.mxu0 0.0
    %4259 = vmatmul.mubr.f32.gmra.mxu0 %v4116
    %v4260 = vpop.f32.mrf.mxu0
    %v4261 = vadd.f32 0.0, %v4260
    %v4262 = vpop.f32.mrf.mxu0
    %4263 = vmatprep.mubr.f32.mxu0 0.0
    %4264 = vmatmul.mubr.f32.gmra.mxu0 %v4121
    %v4265 = vpop.f32.mrf.mxu0
    %v4266 = vadd.f32 0.0, %v4265
    %v4267 = vpop.f32.mrf.mxu0
    %4268 = vmatprep.mubr.f32.mxu0 0.0
    %4269 = vmatmul.mubr.f32.gmra.mxu0 %v4126
    %v4270 = vpop.f32.mrf.mxu0
    %v4271 = vadd.f32 0.0, %v4270
    %v4272 = vpop.f32.mrf.mxu0
    %4273 = vmatprep.mubr.f32.mxu0 0.0
    %4274 = vmatmul.mubr.f32.gmra.mxu0 %v4131
    %v4275 = vpop.f32.mrf.mxu0
    %v4276 = vadd.f32 0.0, %v4275
    %v4277 = vpop.f32.mrf.mxu0
    %4278 = vmatprep.mubr.f32.mxu0 0.0
    %4279 = vmatmul.mubr.f32.gmra.mxu0 %v4136
    %v4280 = vpop.f32.mrf.mxu0
    %v4281 = vadd.f32 0.0, %v4280
    %v4282 = vpop.f32.mrf.mxu0
    %4283 = vmatprep.mubr.f32.mxu0 0.0
    %4284 = vmatmul.mubr.f32.gmra.mxu0 %v4141
    %v4285 = vpop.f32.mrf.mxu0
    %v4286 = vadd.f32 0.0, %v4285
    %v4287 = vpop.f32.mrf.mxu0
    %4288 = vmatprep.mubr.f32.mxu0 0.0
    %4289 = vmatmul.mubr.f32.gmra.mxu0 %v4146
    %v4290 = vpop.f32.mrf.mxu0
    %v4291 = vadd.f32 0.0, %v4290
    %v4292 = vpop.f32.mrf.mxu0
    %4293 = vmatprep.mubr.f32.mxu0 0.0
    %4294 = vmatmul.mubr.f32.gmra.mxu0 %v4151
    %v4295 = vpop.f32.mrf.mxu0
    %v4296 = vadd.f32 0.0, %v4295
    %v4297 = vpop.f32.mrf.mxu0
    %4298 = vmatprep.mubr.f32.mxu0 0.0
    %4299 = vmatmul.mubr.f32.gmra.mxu0 %v4156
    %v4300 = vpop.f32.mrf.mxu0
    %v4301 = vadd.f32 0.0, %v4300
    %v4302 = vpop.f32.mrf.mxu0
    %4303 = vmatprep.mubr.f32.mxu0 0.0
    %4304 = vmatmul.mubr.f32.gmra.mxu0 %v4161
    %v4305 = vpop.f32.mrf.mxu0
    %v4306 = vadd.f32 0.0, %v4305
    %v4307 = vpop.f32.mrf.mxu0
    %4308 = vmatprep.mubr.f32.mxu0 0.0
    %4309 = vmatmul.mubr.f32.gmra.mxu0 %v4166
    %v4310 = vpop.f32.mrf.mxu0
    %v4311 = vadd.f32 0.0, %v4310
    %v4312 = vpop.f32.mrf.mxu0
    %4313 = vmatprep.mubr.f32.mxu0 0.0
    %4314 = vmatmul.mubr.f32.gmra.mxu0 %v4171
    %v4315 = vpop.f32.mrf.mxu0
    %v4316 = vadd.f32 0.0, %v4315
    %v4317 = vpop.f32.mrf.mxu0
    %4318 = vmatprep.mubr.f32.mxu0 0.0
    %4319 = vmatmul.mubr.f32.gmra.mxu0 %v4176
    %v4320 = vpop.f32.mrf.mxu0
    %v4321 = vadd.f32 0.0, %v4320
    %v4322 = vpop.f32.mrf.mxu0
    %4323 = vmatprep.mubr.f32.mxu0 0.0
    %4324 = vmatmul.mubr.f32.gmra.mxu0 %v4181
    %v4325 = vpop.f32.mrf.mxu0
    %v4326 = vadd.f32 0.0, %v4325
    %v4327 = vpop.f32.mrf.mxu0
    %4328 = vmatprep.mubr.f32.mxu0 0.0
    %4329 = vmatmul.mubr.f32.gmra.mxu0 %v4186
    %v4330 = vpop.f32.mrf.mxu0
    %v4331 = vadd.f32 0.0, %v4330
    %v4332 = vpop.f32.mrf.mxu0
    %4333 = vmatprep.mubr.f32.mxu0 0.0
    %4334 = vmatmul.mubr.f32.gmra.mxu0 %v4191
    %v4335 = vpop.f32.mrf.mxu0
    %v4336 = vadd.f32 0.0, %v4335
    %v4337 = vpop.f32.mrf.mxu0
    %4338 = vdwg.mxu0
    %4339 = vmatprep.subr.mxu0 0.0
    %4340 = vmatpush1.msra.mxu0 %v4046
    %4341 = vmatprep.subr.mxu0 0.0
    %4342 = vmatpush1.msra.mxu0 %v4041
    %4343 = vmatprep.subr.mxu0 0.0
    %4344 = vmatpush1.msra.mxu0 %v4036
    %4345 = vmatprep.subr.mxu0 0.0
    %4346 = vmatpush1.msra.mxu0 %v4031
    %4347 = vmatprep.subr.mxu0 0.0
    %4348 = vmatpush1.msra.mxu0 %v4026
    %4349 = vmatprep.subr.mxu0 0.0
    %4350 = vmatpush1.msra.mxu0 %v4021
    %4351 = vmatprep.subr.mxu0 0.0
    %4352 = vmatpush1.msra.mxu0 %v4016
    %4353 = vmatprep.subr.mxu0 0.0
    %4354 = vmatpush1.msra.mxu0 %v4011
    %4355 = vmatprep.subr.mxu0 0.0
    %4356 = vmatpush1.msra.mxu0 %v4006
    %4357 = vmatprep.subr.mxu0 0.0
    %4358 = vmatpush1.msra.mxu0 %v4001
    %4359 = vmatprep.subr.mxu0 0.0
    %4360 = vmatpush1.msra.mxu0 %v3996
    %4361 = vmatprep.subr.mxu0 0.0
    %4362 = vmatpush1.msra.mxu0 %v3991
    %4363 = vmatprep.subr.mxu0 0.0
    %4364 = vmatpush1.msra.mxu0 %v3986
    %4365 = vmatprep.subr.mxu0 0.0
    %4366 = vmatpush1.msra.mxu0 %v3981
    %4367 = vmatprep.subr.mxu0 0.0
    %4368 = vmatpush1.msra.mxu0 %v3976
    %4369 = vmatprep.subr.mxu0 0.0
    %4370 = vmatpush1.msra.mxu0 %v3971
    %4371 = vmatprep.subr.mxu0 0.0
    %4372 = vmatpush2.msra.mxu0 0.0
    %4373 = vmatprep.subr.mxu0 0.0
    %4374 = vmatpush2.msra.mxu0 0.0
    %4375 = vmatprep.subr.mxu0 0.0
    %4376 = vmatpush2.msra.mxu0 0.0
    %4377 = vmatprep.subr.mxu0 0.0
    %4378 = vmatpush2.msra.mxu0 0.0
    %4379 = vmatprep.subr.mxu0 0.0
    %4380 = vmatpush2.msra.mxu0 0.0
    %4381 = vmatprep.subr.mxu0 0.0
    %4382 = vmatpush2.msra.mxu0 0.0
    %4383 = vmatprep.subr.mxu0 0.0
    %4384 = vmatpush2.msra.mxu0 0.0
    %4385 = vmatprep.subr.mxu0 0.0
    %4386 = vmatpush2.msra.mxu0 0.0
    %4387 = vmatprep.subr.mxu0 0.0
    %4388 = vmatpush2.msra.mxu0 0.0
    %4389 = vmatprep.subr.mxu0 0.0
    %4390 = vmatpush2.msra.mxu0 0.0
    %4391 = vmatprep.subr.mxu0 0.0
    %4392 = vmatpush2.msra.mxu0 0.0
    %4393 = vmatprep.subr.mxu0 0.0
    %4394 = vmatpush2.msra.mxu0 0.0
    %4395 = vmatprep.subr.mxu0 0.0
    %4396 = vmatpush2.msra.mxu0 0.0
    %4397 = vmatprep.subr.mxu0 0.0
    %4398 = vmatpush2.msra.mxu0 0.0
    %4399 = vmatprep.subr.mxu0 0.0
    %4400 = vmatpush2.msra.mxu0 0.0
    %4401 = vmatprep.subr.mxu0 0.0
    %4402 = vmatpush2.msra.mxu0 0.0
    %4403 = vmatprep.mubr.f32.mxu0 0.0
    %4404 = vmatmul.mubr.f32.gmra.mxu0 %v3727
    %v4405 = vpop.f32.mrf.mxu0
    %v4406 = vadd.f32 0.0, %v4405
    %v4407 = vpop.f32.mrf.mxu0
    %4408 = vmatprep.mubr.f32.mxu0 0.0
    %4409 = vmatmul.mubr.f32.gmra.mxu0 %v3728
    %v4410 = vpop.f32.mrf.mxu0
    %v4411 = vadd.f32 0.0, %v4410
    %v4412 = vpop.f32.mrf.mxu0
    %4413 = vmatprep.mubr.f32.mxu0 0.0
    %4414 = vmatmul.mubr.f32.gmra.mxu0 %v3729
    %v4415 = vpop.f32.mrf.mxu0
    %v4416 = vadd.f32 0.0, %v4415
    %v4417 = vpop.f32.mrf.mxu0
    %4418 = vmatprep.mubr.f32.mxu0 0.0
    %4419 = vmatmul.mubr.f32.gmra.mxu0 %v3730
    %v4420 = vpop.f32.mrf.mxu0
    %v4421 = vadd.f32 0.0, %v4420
    %v4422 = vpop.f32.mrf.mxu0
    %4423 = vmatprep.mubr.f32.mxu0 0.0
    %4424 = vmatmul.mubr.f32.gmra.mxu0 %v3731
    %v4425 = vpop.f32.mrf.mxu0
    %v4426 = vadd.f32 0.0, %v4425
    %v4427 = vpop.f32.mrf.mxu0
    %4428 = vmatprep.mubr.f32.mxu0 0.0
    %4429 = vmatmul.mubr.f32.gmra.mxu0 %v3732
    %v4430 = vpop.f32.mrf.mxu0
    %v4431 = vadd.f32 0.0, %v4430
    %v4432 = vpop.f32.mrf.mxu0
    %4433 = vmatprep.mubr.f32.mxu0 0.0
    %4434 = vmatmul.mubr.f32.gmra.mxu0 %v3733
    %v4435 = vpop.f32.mrf.mxu0
    %v4436 = vadd.f32 0.0, %v4435
    %v4437 = vpop.f32.mrf.mxu0
    %4438 = vmatprep.mubr.f32.mxu0 0.0
    %4439 = vmatmul.mubr.f32.gmra.mxu0 %v3734
    %v4440 = vpop.f32.mrf.mxu0
    %v4441 = vadd.f32 0.0, %v4440
    %v4442 = vpop.f32.mrf.mxu0
    %4443 = vmatprep.mubr.f32.mxu0 0.0
    %4444 = vmatmul.mubr.f32.gmra.mxu0 %v3735
    %v4445 = vpop.f32.mrf.mxu0
    %v4446 = vadd.f32 0.0, %v4445
    %v4447 = vpop.f32.mrf.mxu0
    %4448 = vmatprep.mubr.f32.mxu0 0.0
    %4449 = vmatmul.mubr.f32.gmra.mxu0 %v3736
    %v4450 = vpop.f32.mrf.mxu0
    %v4451 = vadd.f32 0.0, %v4450
    %v4452 = vpop.f32.mrf.mxu0
    %4453 = vmatprep.mubr.f32.mxu0 0.0
    %4454 = vmatmul.mubr.f32.gmra.mxu0 %v3737
    %v4455 = vpop.f32.mrf.mxu0
    %v4456 = vadd.f32 0.0, %v4455
    %v4457 = vpop.f32.mrf.mxu0
    %4458 = vmatprep.mubr.f32.mxu0 0.0
    %4459 = vmatmul.mubr.f32.gmra.mxu0 %v3738
    %v4460 = vpop.f32.mrf.mxu0
    %v4461 = vadd.f32 0.0, %v4460
    %v4462 = vpop.f32.mrf.mxu0
    %4463 = vmatprep.mubr.f32.mxu0 0.0
    %4464 = vmatmul.mubr.f32.gmra.mxu0 %v3739
    %v4465 = vpop.f32.mrf.mxu0
    %v4466 = vadd.f32 0.0, %v4465
    %v4467 = vpop.f32.mrf.mxu0
    %4468 = vmatprep.mubr.f32.mxu0 0.0
    %4469 = vmatmul.mubr.f32.gmra.mxu0 %v3740
    %v4470 = vpop.f32.mrf.mxu0
    %v4471 = vadd.f32 0.0, %v4470
    %v4472 = vpop.f32.mrf.mxu0
    %4473 = vmatprep.mubr.f32.mxu0 0.0
    %4474 = vmatmul.mubr.f32.gmra.mxu0 %v3741
    %v4475 = vpop.f32.mrf.mxu0
    %v4476 = vadd.f32 0.0, %v4475
    %v4477 = vpop.f32.mrf.mxu0
    %4478 = vmatprep.mubr.f32.mxu0 0.0
    %4479 = vmatmul.mubr.f32.gmra.mxu0 %v3742
    %v4480 = vpop.f32.mrf.mxu0
    %v4481 = vadd.f32 0.0, %v4480
    %v4482 = vpop.f32.mrf.mxu0
    %4483 = vdwg.mxu0
    %4484 = vmatprep.subr.mxu0 0.0
    %4485 = vmatpush1.msra.mxu0 %v3726
    %4486 = vmatprep.subr.mxu0 0.0
    %4487 = vmatpush1.msra.mxu0 %v3725
    %4488 = vmatprep.subr.mxu0 0.0
    %4489 = vmatpush1.msra.mxu0 %v3724
    %4490 = vmatprep.subr.mxu0 0.0
    %4491 = vmatpush1.msra.mxu0 %v3723
    %4492 = vmatprep.subr.mxu0 0.0
    %4493 = vmatpush1.msra.mxu0 %v3722
    %4494 = vmatprep.subr.mxu0 0.0
    %4495 = vmatpush1.msra.mxu0 %v3721
    %4496 = vmatprep.subr.mxu0 0.0
    %4497 = vmatpush1.msra.mxu0 %v3720
    %4498 = vmatprep.subr.mxu0 0.0
    %4499 = vmatpush1.msra.mxu0 %v3719
    %4500 = vmatprep.subr.mxu0 0.0
    %4501 = vmatpush1.msra.mxu0 %v3718
    %4502 = vmatprep.subr.mxu0 0.0
    %4503 = vmatpush1.msra.mxu0 %v3717
    %4504 = vmatprep.subr.mxu0 0.0
    %4505 = vmatpush1.msra.mxu0 %v3716
    %4506 = vmatprep.subr.mxu0 0.0
    %4507 = vmatpush1.msra.mxu0 %v3715
    %4508 = vmatprep.subr.mxu0 0.0
    %4509 = vmatpush1.msra.mxu0 %v3714
    %4510 = vmatprep.subr.mxu0 0.0
    %4511 = vmatpush1.msra.mxu0 %v3713
    %4512 = vmatprep.subr.mxu0 0.0
    %4513 = vmatpush1.msra.mxu0 %v3712
    %4514 = vmatprep.subr.mxu0 0.0
    %4515 = vmatpush1.msra.mxu0 %v3711
    %4516 = vmatprep.subr.mxu0 0.0
    %4517 = vmatpush2.msra.mxu0 0.0
    %4518 = vmatprep.subr.mxu0 0.0
    %4519 = vmatpush2.msra.mxu0 0.0
    %4520 = vmatprep.subr.mxu0 0.0
    %4521 = vmatpush2.msra.mxu0 0.0
    %4522 = vmatprep.subr.mxu0 0.0
    %4523 = vmatpush2.msra.mxu0 0.0
    %4524 = vmatprep.subr.mxu0 0.0
    %4525 = vmatpush2.msra.mxu0 0.0
    %4526 = vmatprep.subr.mxu0 0.0
    %4527 = vmatpush2.msra.mxu0 0.0
    %4528 = vmatprep.subr.mxu0 0.0
    %4529 = vmatpush2.msra.mxu0 0.0
    %4530 = vmatprep.subr.mxu0 0.0
    %4531 = vmatpush2.msra.mxu0 0.0
    %4532 = vmatprep.subr.mxu0 0.0
    %4533 = vmatpush2.msra.mxu0 0.0
    %4534 = vmatprep.subr.mxu0 0.0
    %4535 = vmatpush2.msra.mxu0 0.0
    %4536 = vmatprep.subr.mxu0 0.0
    %4537 = vmatpush2.msra.mxu0 0.0
    %4538 = vmatprep.subr.mxu0 0.0
    %4539 = vmatpush2.msra.mxu0 0.0
    %4540 = vmatprep.subr.mxu0 0.0
    %4541 = vmatpush2.msra.mxu0 0.0
    %4542 = vmatprep.subr.mxu0 0.0
    %4543 = vmatpush2.msra.mxu0 0.0
    %4544 = vmatprep.subr.mxu0 0.0
    %4545 = vmatpush2.msra.mxu0 0.0
    %4546 = vmatprep.subr.mxu0 0.0
    %4547 = vmatpush2.msra.mxu0 0.0
    %4548 = vmatprep.mubr.f32.mxu0 0.0
    %4549 = vmatmul.mubr.f32.gmra.mxu0 %v4406
    %v4550 = vpop.f32.mrf.mxu0
    %v4551 = vadd.f32 0.0, %v4550
    %v4552 = vpop.f32.mrf.mxu0
    %4553 = vmatprep.mubr.f32.mxu0 0.0
    %4554 = vmatmul.mubr.f32.gmra.mxu0 %v4411
    %v4555 = vpop.f32.mrf.mxu0
    %v4556 = vadd.f32 0.0, %v4555
    %v4557 = vpop.f32.mrf.mxu0
    %4558 = vmatprep.mubr.f32.mxu0 0.0
    %4559 = vmatmul.mubr.f32.gmra.mxu0 %v4416
    %v4560 = vpop.f32.mrf.mxu0
    %v4561 = vadd.f32 0.0, %v4560
    %v4562 = vpop.f32.mrf.mxu0
    %4563 = vmatprep.mubr.f32.mxu0 0.0
    %4564 = vmatmul.mubr.f32.gmra.mxu0 %v4421
    %v4565 = vpop.f32.mrf.mxu0
    %v4566 = vadd.f32 0.0, %v4565
    %v4567 = vpop.f32.mrf.mxu0
    %4568 = vmatprep.mubr.f32.mxu0 0.0
    %4569 = vmatmul.mubr.f32.gmra.mxu0 %v4426
    %v4570 = vpop.f32.mrf.mxu0
    %v4571 = vadd.f32 0.0, %v4570
    %v4572 = vpop.f32.mrf.mxu0
    %4573 = vmatprep.mubr.f32.mxu0 0.0
    %4574 = vmatmul.mubr.f32.gmra.mxu0 %v4431
    %v4575 = vpop.f32.mrf.mxu0
    %v4576 = vadd.f32 0.0, %v4575
    %v4577 = vpop.f32.mrf.mxu0
    %4578 = vmatprep.mubr.f32.mxu0 0.0
    %4579 = vmatmul.mubr.f32.gmra.mxu0 %v4436
    %v4580 = vpop.f32.mrf.mxu0
    %v4581 = vadd.f32 0.0, %v4580
    %v4582 = vpop.f32.mrf.mxu0
    %4583 = vmatprep.mubr.f32.mxu0 0.0
    %4584 = vmatmul.mubr.f32.gmra.mxu0 %v4441
    %v4585 = vpop.f32.mrf.mxu0
    %v4586 = vadd.f32 0.0, %v4585
    %v4587 = vpop.f32.mrf.mxu0
    %4588 = vmatprep.mubr.f32.mxu0 0.0
    %4589 = vmatmul.mubr.f32.gmra.mxu0 %v4446
    %v4590 = vpop.f32.mrf.mxu0
    %v4591 = vadd.f32 0.0, %v4590
    %v4592 = vpop.f32.mrf.mxu0
    %4593 = vmatprep.mubr.f32.mxu0 0.0
    %4594 = vmatmul.mubr.f32.gmra.mxu0 %v4451
    %v4595 = vpop.f32.mrf.mxu0
    %v4596 = vadd.f32 0.0, %v4595
    %v4597 = vpop.f32.mrf.mxu0
    %4598 = vmatprep.mubr.f32.mxu0 0.0
    %4599 = vmatmul.mubr.f32.gmra.mxu0 %v4456
    %v4600 = vpop.f32.mrf.mxu0
    %v4601 = vadd.f32 0.0, %v4600
    %v4602 = vpop.f32.mrf.mxu0
    %4603 = vmatprep.mubr.f32.mxu0 0.0
    %4604 = vmatmul.mubr.f32.gmra.mxu0 %v4461
    %v4605 = vpop.f32.mrf.mxu0
    %v4606 = vadd.f32 0.0, %v4605
    %v4607 = vpop.f32.mrf.mxu0
    %4608 = vmatprep.mubr.f32.mxu0 0.0
    %4609 = vmatmul.mubr.f32.gmra.mxu0 %v4466
    %v4610 = vpop.f32.mrf.mxu0
    %v4611 = vadd.f32 0.0, %v4610
    %v4612 = vpop.f32.mrf.mxu0
    %4613 = vmatprep.mubr.f32.mxu0 0.0
    %4614 = vmatmul.mubr.f32.gmra.mxu0 %v4471
    %v4615 = vpop.f32.mrf.mxu0
    %v4616 = vadd.f32 0.0, %v4615
    %v4617 = vpop.f32.mrf.mxu0
    %4618 = vmatprep.mubr.f32.mxu0 0.0
    %4619 = vmatmul.mubr.f32.gmra.mxu0 %v4476
    %v4620 = vpop.f32.mrf.mxu0
    %v4621 = vadd.f32 0.0, %v4620
    %v4622 = vpop.f32.mrf.mxu0
    %4623 = vmatprep.mubr.f32.mxu0 0.0
    %4624 = vmatmul.mubr.f32.gmra.mxu0 %v4481
    %v4625 = vpop.f32.mrf.mxu0
    %v4626 = vadd.f32 0.0, %v4625
    %v4627 = vpop.f32.mrf.mxu0
    %4628 = vdwg.mxu0
    %v4629 = vmul.f32 %v4261, %v4261
    %v4630 = vmul.f32 %v4266, %v4266
    %v4631 = vmul.f32 %v4271, %v4271
    %v4632 = vmul.f32 %v4276, %v4276
    %v4633 = vmul.f32 %v4281, %v4281
    %v4634 = vmul.f32 %v4286, %v4286
    %v4635 = vmul.f32 %v4291, %v4291
    %v4636 = vmul.f32 %v4296, %v4296
    %v4637 = vmul.f32 %v4301, %v4301
    %v4638 = vmul.f32 %v4306, %v4306
    %v4639 = vmul.f32 %v4311, %v4311
    %v4640 = vmul.f32 %v4316, %v4316
    %v4641 = vmul.f32 %v4321, %v4321
    %v4642 = vmul.f32 %v4326, %v4326
    %v4643 = vmul.f32 %v4331, %v4331
    %v4644 = vmul.f32 %v4336, %v4336
    %v4645 = vmul.f32 %v4551, %v4551
    %v4646 = vmul.f32 %v4556, %v4556
    %v4647 = vmul.f32 %v4561, %v4561
    %v4648 = vmul.f32 %v4566, %v4566
    %v4649 = vmul.f32 %v4571, %v4571
    %v4650 = vmul.f32 %v4576, %v4576
    %v4651 = vmul.f32 %v4581, %v4581
    %v4652 = vmul.f32 %v4586, %v4586
    %v4653 = vmul.f32 %v4591, %v4591
    %v4654 = vmul.f32 %v4596, %v4596
    %v4655 = vmul.f32 %v4601, %v4601
    %v4656 = vmul.f32 %v4606, %v4606
    %v4657 = vmul.f32 %v4611, %v4611
    %v4658 = vmul.f32 %v4616, %v4616
    %v4659 = vmul.f32 %v4621, %v4621
    %v4660 = vmul.f32 %v4626, %v4626
    %v4661 = vadd.f32 %v4629, %v4645
    %v4662 = vadd.f32 %v4630, %v4646
    %v4663 = vadd.f32 %v4631, %v4647
    %v4664 = vadd.f32 %v4632, %v4648
    %v4665 = vadd.f32 %v4633, %v4649
    %v4666 = vadd.f32 %v4634, %v4650
    %v4667 = vadd.f32 %v4635, %v4651
    %v4668 = vadd.f32 %v4636, %v4652
    %v4669 = vadd.f32 %v4637, %v4653
    %v4670 = vadd.f32 %v4638, %v4654
    %v4671 = vadd.f32 %v4639, %v4655
    %v4672 = vadd.f32 %v4640, %v4656
    %v4673 = vadd.f32 %v4641, %v4657
    %v4674 = vadd.f32 %v4642, %v4658
    %v4675 = vadd.f32 %v4643, %v4659
    %v4676 = vadd.f32 %v4644, %v4660
    %v4677 = vrsqrt.pop %v4661
    %v4678 = vmul.f32 %v4661, %v4677
    %vm4679 = vcmp.eq.f32.partialorder %v4661, inf
    %v4680 = vsel %vm4679, %v4661, %v4678
    %vm4681 = vcmp.eq.f32.partialorder %v4661, 0.0
    %v4682 = vand.u32 %v4661, 2147483648
    %v4683 = vsel %vm4681, %v4682, %v4680
    %v4684 = vrsqrt.pop %v4662
    %v4685 = vmul.f32 %v4662, %v4684
    %vm4686 = vcmp.eq.f32.partialorder %v4662, inf
    %v4687 = vsel %vm4686, %v4662, %v4685
    %vm4688 = vcmp.eq.f32.partialorder %v4662, 0.0
    %v4689 = vand.u32 %v4662, 2147483648
    %v4690 = vsel %vm4688, %v4689, %v4687
    %v4691 = vrsqrt.pop %v4663
    %v4692 = vmul.f32 %v4663, %v4691
    %vm4693 = vcmp.eq.f32.partialorder %v4663, inf
    %v4694 = vsel %vm4693, %v4663, %v4692
    %vm4695 = vcmp.eq.f32.partialorder %v4663, 0.0
    %v4696 = vand.u32 %v4663, 2147483648
    %v4697 = vsel %vm4695, %v4696, %v4694
    %v4698 = vrsqrt.pop %v4664
    %v4699 = vmul.f32 %v4664, %v4698
    %vm4700 = vcmp.eq.f32.partialorder %v4664, inf
    %v4701 = vsel %vm4700, %v4664, %v4699
    %vm4702 = vcmp.eq.f32.partialorder %v4664, 0.0
    %v4703 = vand.u32 %v4664, 2147483648
    %v4704 = vsel %vm4702, %v4703, %v4701
    %v4705 = vrsqrt.pop %v4665
    %v4706 = vmul.f32 %v4665, %v4705
    %vm4707 = vcmp.eq.f32.partialorder %v4665, inf
    %v4708 = vsel %vm4707, %v4665, %v4706
    %vm4709 = vcmp.eq.f32.partialorder %v4665, 0.0
    %v4710 = vand.u32 %v4665, 2147483648
    %v4711 = vsel %vm4709, %v4710, %v4708
    %v4712 = vrsqrt.pop %v4666
    %v4713 = vmul.f32 %v4666, %v4712
    %vm4714 = vcmp.eq.f32.partialorder %v4666, inf
    %v4715 = vsel %vm4714, %v4666, %v4713
    %vm4716 = vcmp.eq.f32.partialorder %v4666, 0.0
    %v4717 = vand.u32 %v4666, 2147483648
    %v4718 = vsel %vm4716, %v4717, %v4715
    %v4719 = vrsqrt.pop %v4667
    %v4720 = vmul.f32 %v4667, %v4719
    %vm4721 = vcmp.eq.f32.partialorder %v4667, inf
    %v4722 = vsel %vm4721, %v4667, %v4720
    %vm4723 = vcmp.eq.f32.partialorder %v4667, 0.0
    %v4724 = vand.u32 %v4667, 2147483648
    %v4725 = vsel %vm4723, %v4724, %v4722
    %v4726 = vrsqrt.pop %v4668
    %v4727 = vmul.f32 %v4668, %v4726
    %vm4728 = vcmp.eq.f32.partialorder %v4668, inf
    %v4729 = vsel %vm4728, %v4668, %v4727
    %vm4730 = vcmp.eq.f32.partialorder %v4668, 0.0
    %v4731 = vand.u32 %v4668, 2147483648
    %v4732 = vsel %vm4730, %v4731, %v4729
    %v4733 = vrsqrt.pop %v4669
    %v4734 = vmul.f32 %v4669, %v4733
    %vm4735 = vcmp.eq.f32.partialorder %v4669, inf
    %v4736 = vsel %vm4735, %v4669, %v4734
    %vm4737 = vcmp.eq.f32.partialorder %v4669, 0.0
    %v4738 = vand.u32 %v4669, 2147483648
    %v4739 = vsel %vm4737, %v4738, %v4736
    %v4740 = vrsqrt.pop %v4670
    %v4741 = vmul.f32 %v4670, %v4740
    %vm4742 = vcmp.eq.f32.partialorder %v4670, inf
    %v4743 = vsel %vm4742, %v4670, %v4741
    %vm4744 = vcmp.eq.f32.partialorder %v4670, 0.0
    %v4745 = vand.u32 %v4670, 2147483648
    %v4746 = vsel %vm4744, %v4745, %v4743
    %v4747 = vrsqrt.pop %v4671
    %v4748 = vmul.f32 %v4671, %v4747
    %vm4749 = vcmp.eq.f32.partialorder %v4671, inf
    %v4750 = vsel %vm4749, %v4671, %v4748
    %vm4751 = vcmp.eq.f32.partialorder %v4671, 0.0
    %v4752 = vand.u32 %v4671, 2147483648
    %v4753 = vsel %vm4751, %v4752, %v4750
    %v4754 = vrsqrt.pop %v4672
    %v4755 = vmul.f32 %v4672, %v4754
    %vm4756 = vcmp.eq.f32.partialorder %v4672, inf
    %v4757 = vsel %vm4756, %v4672, %v4755
    %vm4758 = vcmp.eq.f32.partialorder %v4672, 0.0
    %v4759 = vand.u32 %v4672, 2147483648
    %v4760 = vsel %vm4758, %v4759, %v4757
    %v4761 = vrsqrt.pop %v4673
    %v4762 = vmul.f32 %v4673, %v4761
    %vm4763 = vcmp.eq.f32.partialorder %v4673, inf
    %v4764 = vsel %vm4763, %v4673, %v4762
    %vm4765 = vcmp.eq.f32.partialorder %v4673, 0.0
    %v4766 = vand.u32 %v4673, 2147483648
    %v4767 = vsel %vm4765, %v4766, %v4764
    %v4768 = vrsqrt.pop %v4674
    %v4769 = vmul.f32 %v4674, %v4768
    %vm4770 = vcmp.eq.f32.partialorder %v4674, inf
    %v4771 = vsel %vm4770, %v4674, %v4769
    %vm4772 = vcmp.eq.f32.partialorder %v4674, 0.0
    %v4773 = vand.u32 %v4674, 2147483648
    %v4774 = vsel %vm4772, %v4773, %v4771
    %v4775 = vrsqrt.pop %v4675
    %v4776 = vmul.f32 %v4675, %v4775
    %vm4777 = vcmp.eq.f32.partialorder %v4675, inf
    %v4778 = vsel %vm4777, %v4675, %v4776
    %vm4779 = vcmp.eq.f32.partialorder %v4675, 0.0
    %v4780 = vand.u32 %v4675, 2147483648
    %v4781 = vsel %vm4779, %v4780, %v4778
    %v4782 = vrsqrt.pop %v4676
    %v4783 = vmul.f32 %v4676, %v4782
    %vm4784 = vcmp.eq.f32.partialorder %v4676, inf
    %v4785 = vsel %vm4784, %v4676, %v4783
    %vm4786 = vcmp.eq.f32.partialorder %v4676, 0.0
    %v4787 = vand.u32 %v4676, 2147483648
    %v4788 = vsel %vm4786, %v4787, %v4785
    %4789 = vst [vmem:[#allocation14] sm:$0xff] %v4683
    %4790 = vst [vmem:[#allocation14 + $0x8] sm:$0xff] %v4690
    %4791 = vst [vmem:[#allocation14 + $0x10] sm:$0xff] %v4697
    %4792 = vst [vmem:[#allocation14 + $0x18] sm:$0xff] %v4704
    %4793 = vst [vmem:[#allocation14 + $0x20] sm:$0xff] %v4711
    %4794 = vst [vmem:[#allocation14 + $0x28] sm:$0xff] %v4718
    %4795 = vst [vmem:[#allocation14 + $0x30] sm:$0xff] %v4725
    %4796 = vst [vmem:[#allocation14 + $0x38] sm:$0xff] %v4732
    %4797 = vst [vmem:[#allocation14 + $0x40] sm:$0xff] %v4739
    %4798 = vst [vmem:[#allocation14 + $0x48] sm:$0xff] %v4746
    %4799 = vst [vmem:[#allocation14 + $0x50] sm:$0xff] %v4753
    %4800 = vst [vmem:[#allocation14 + $0x58] sm:$0xff] %v4760
    %4801 = vst [vmem:[#allocation14 + $0x60] sm:$0xff] %v4767
    %4802 = vst [vmem:[#allocation14 + $0x68] sm:$0xff] %v4774
    %4803 = vst [vmem:[#allocation14 + $0x70] sm:$0xff] %v4781
    %4804 = vst [vmem:[#allocation14 + $0x78] sm:$0xff] %v4788
    %v4805 = vadd.f32 %v4683, %v4690
    %v4806 = vadd.f32 %v4805, %v4697
    %v4807 = vadd.f32 %v4806, %v4704
    %v4808 = vadd.f32 %v4807, %v4711
    %v4809 = vadd.f32 %v4808, %v4718
    %v4810 = vadd.f32 %v4809, %v4725
    %v4811 = vadd.f32 %v4810, %v4732
    %v4812 = vadd.f32 %v4811, %v4739
    %v4813 = vadd.f32 %v4812, %v4746
    %v4814 = vadd.f32 %v4813, %v4753
    %v4815 = vadd.f32 %v4814, %v4760
    %v4816 = vadd.f32 %v4815, %v4767
    %v4817 = vadd.f32 %v4816, %v4774
    %v4818 = vadd.f32 %v4817, %v4781
    %v4819 = vadd.f32 %v4818, %v4788
    %4820 = vadd.xlane.f32.xlu0 %v4819
    %v4821 = vpop.xlane.xlu0 %4820
    %v4822 = vrot.slane %v4821, 4
    %v4823 = vadd.f32 %v4821, %v4822
    %v4824 = vrot.slane %v4823, 2
    %v4825 = vadd.f32 %v4823, %v4824
    %v4826 = vrot.slane %v4825, 1
    %v4827 = vadd.f32 %v4825, %v4826
    %s4828 = vtos %v4827
    %s4829 = smul.f32 %s4828, 6.1035156e-05
    %s4830 = scalar_lea.smem [#allocation16], 0
    %4831 = sst [smem:[%s4830]] %s4829
    // Predicated region
    $region42: #{tpu_custom_call.1} parent=1 // pred_check
      _
    $region43: #{tpu_custom_call.1} parent=1 // pred_check_branch
      %4833 = sbr.rel (0) target = $region45
    $region44: #{tpu_custom_call.1} parent=1 // pred_region
      %s4835 = ssub.s32 2048, 2048
      %4836 = vsyncadd [#allocation4], %s4835
      %s4837 = sshll.u32 [#allocation13], 4
      %s4838 = int_to_ptr.vmem [resolvable:$true] %s4837
      %4843 = dma.vmem_to_hbm [thread:$0]  %s4838, 2048, %s5, [#allocation4], 128, 128, 8
    $region45: #{tpu_custom_call.1} parent=1 // pred_fallthru
      _
    // Predicated region
    $region46: #{tpu_custom_call.1} parent=1 // pred_check
      _
    $region47: #{tpu_custom_call.1} parent=1 // pred_check_branch
      %4845 = sbr.rel (0) target = $region49
    $region48: #{tpu_custom_call.1} parent=1 // pred_region
      %s4847 = ssub.s32 2048, 2048
      %4848 = vsyncadd [#allocation15], %s4847
      %s4849 = sshll.u32 [#allocation14], 4
      %s4850 = int_to_ptr.vmem [resolvable:$true] %s4849
      %4855 = dma.vmem_to_hbm [thread:$0]  %s4850, 2048, %s6, [#allocation15], 128, 128, 8
    $region49: #{tpu_custom_call.1} parent=1 // pred_fallthru
      _
    // Predicated region
    $region50: #{tpu_custom_call.1} parent=1 // pred_check
      _
    $region51: #{tpu_custom_call.1} parent=1 // pred_check_branch
      %4857 = sbr.rel (0) target = $region53
    $region52: #{tpu_custom_call.1} parent=1 // pred_region
      %s4859 = ssub.s32 16, 16
      %4860 = vsyncadd [#allocation6], %s4859
      %4863 = dma.smem_to_hbm [#allocation16], 16, %s7, [#allocation6]
    $region53: #{tpu_custom_call.1} parent=1 // pred_fallthru
      _
    // Predicated region
    $region54: #{tpu_custom_call.1} parent=1 // pred_check
      _
    $region55: #{tpu_custom_call.1} parent=1 // pred_check_branch
      %4865 = sbr.rel (0) target = $region57
    $region56: #{tpu_custom_call.1} parent=1 // pred_region
      %4866 = dma.done [#allocation4], 2048
    $region57: #{tpu_custom_call.1} parent=1 // pred_fallthru
      _
    // Predicated region
    $region58: #{tpu_custom_call.1} parent=1 // pred_check
      _
    $region59: #{tpu_custom_call.1} parent=1 // pred_check_branch
      %4868 = sbr.rel (0) target = $region61
    $region60: #{tpu_custom_call.1} parent=1 // pred_region
      %4869 = dma.done [#allocation15], 2048
    $region61: #{tpu_custom_call.1} parent=1 // pred_fallthru
      _
    // Predicated region
    $region62: #{tpu_custom_call.1} parent=1 // pred_check
      _
    $region63: #{tpu_custom_call.1} parent=1 // pred_check_branch
      %4871 = sbr.rel (0) target = $region65
    $region64: #{tpu_custom_call.1} parent=1 // pred_region
      %4872 = dma.done [#allocation6], 16
    $region65: #{tpu_custom_call.1} parent=1 // pred_fallthru
      _
    %4873 = sfence
    %4874 = vsyncpa [#allocation3], 1
    %4875 = vsyncpa [#allocation9], 1
    %4876 = vsyncpa [#allocation12], 1
    %4877 = vsyncpa [#allocation4], 1
    %4878 = vsyncpa [#allocation15], 1
    %4879 = vsyncpa [#allocation5], 1
    %4880 = vsyncpa [#allocation6], 1

</llo_original>
